<compile_context>
chip_gen: v5e
topology: v5e:2x2
jax: 0.10.0
libtpu: 0.0.40
codegen_flags: <defaults>
</compile_context>

<pallas_src>
import functools

import jax
import jax.numpy as jnp
from jax import lax
from jax.experimental import pallas as pl
from jax.experimental.pallas import tpu as pltpu


def _round_up(x, m):
    return (x + m - 1) // m * m


# ----------------------------- Pallas kernels --------------------------------

def _head_kernel(x_ref, noise_ref, enc_w_ref, enc_b_ref, ml_w_ref, ml_b_ref,
                 win_w_ref, win_shift_ref, u_ref, *, d_pad):
    """encoder -> (mu|logvar) -> reparameterize -> input ConvUpBlock (direct GEMM).

    All operands live in VMEM (no grid); every matmul is a plain 2-D MXU dot
    with f32 accumulation; the epilogue (bias add, exp, relu) stays in f32.
    """
    # frozen encoder: h = x @ W_enc + b_enc            (Bp, Fp) @ (Fp, dp)
    h = jnp.dot(x_ref[...], enc_w_ref[...], preferred_element_type=jnp.float32)
    h = h + enc_b_ref[...]

    # GaussianLayer heads fused along N: (Bp, dp) @ (dp, 2*dp)
    ml = jnp.dot(h.astype(jnp.bfloat16), ml_w_ref[...],
                 preferred_element_type=jnp.float32) + ml_b_ref[...]
    mu = ml[:, :d_pad]
    logvar = ml[:, d_pad:]
    z = mu + jnp.exp(0.5 * logvar) * noise_ref[...]

    # input ConvUpBlock on a 1x1 map == direct GEMM: (Bp, dp) @ (dp, C0p*k*k)
    u = jnp.dot(z.astype(jnp.bfloat16), win_w_ref[...],
                preferred_element_type=jnp.float32) + win_shift_ref[...]
    u_ref[...] = jnp.maximum(u, 0.0).astype(u_ref.dtype)


def _gemm_bias_act_kernel(w_ref, p_ref, shift_ref, o_ref, *, act):
    """o = act(W @ P + shift) -- single K block, fused f32 epilogue."""
    acc = jnp.dot(w_ref[...], p_ref[...], preferred_element_type=jnp.float32)
    y = acc + shift_ref[...]
    if act == "relu":
        y = jnp.maximum(y, 0.0)
    elif act == "tanh":
        y = jnp.tanh(y)
    o_ref[...] = y.astype(o_ref.dtype)


def _fused_gemm(w_mat, patches, shift, *, act, out_dtype):
    """(M, K) @ (K, N) with +shift (+act) epilogue; lane-dense output slab.

    M (= Cout_pad) and K (= Cin_pad*k*k) are pre-padded at init; only the
    spatial N axis may need padding here.  N is split in two "parallel" grid
    steps when large enough so v7x's second TensorCore gets work.
    """
    M, K = w_mat.shape
    K2, N = patches.shape
    assert K == K2

    Np = _round_up(N, 128)
    if Np != N:
        patches = jnp.pad(patches, ((0, 0), (0, Np - N)))

    if Np >= 256 and Np % 256 == 0:
        tn = Np // 2
    else:
        tn = Np
    while tn >= 4096 and tn % 256 == 0:   # cap per-block VMEM at large batch
        tn //= 2

    out = pl.pallas_call(
        functools.partial(_gemm_bias_act_kernel, act=act),
        out_shape=jax.ShapeDtypeStruct((M, Np), out_dtype),
        grid=(Np // tn,),
        in_specs=[
            pl.BlockSpec((M, K), lambda j: (0, 0)),
            pl.BlockSpec((K, tn), lambda j: (0, j)),
            pl.BlockSpec((M, 1), lambda j: (0, 0)),
        ],
        out_specs=pl.BlockSpec((M, tn), lambda j: (0, j)),
        compiler_params=pltpu.CompilerParams(
            dimension_semantics=("parallel",)),
    )(w_mat, patches, shift)

    if Np != N:
        out = out[:, :N]
    return out


# --------------------------- ConvTranspose2d (+BN+act) -----------------------

def conv_transpose2d_cf(x_cf, layer, *, k, stride, padding, act,
                        out_dtype=jnp.bfloat16):
    """ConvTranspose2d (+ folded BN) + activation on a channel-first input.

    x_cf: (Cin_pad, B, H, W) bf16.  layer["w_mat"]: (Cout_pad, Cin_pad*k*k),
    pre-flipped / BN-scale-folded / channel-padded at init.  Lowered as a
    fractionally-strided direct conv: one lax.pad (interior dilation + edge
    padding), k*k window slices -> (Cin_pad*k*k, B*Ho*Wo) patches, and one
    fused Pallas GEMM writing a lane-dense (Cout_pad, B*Ho*Wo) slab.
    """
    Cin, B, H, W = x_cf.shape
    Cout = layer["w_mat"].shape[0]
    s, p = stride, padding
    Ho = (H - 1) * s - 2 * p + k
    Wo = (W - 1) * s - 2 * p + k
    pd = k - 1 - p
    assert pd >= 0, "lowering assumes padding <= kernel_size - 1"

    xp = lax.pad(x_cf, jnp.array(0, x_cf.dtype),
                 ((0, 0, 0), (0, 0, 0), (pd, pd, s - 1), (pd, pd, s - 1)))
    windows = [xp[:, :, ky:ky + Ho, kx:kx + Wo]
               for ky in range(k) for kx in range(k)]
    patches = jnp.stack(windows, axis=1).reshape(Cin * k * k, B * Ho * Wo)

    out = _fused_gemm(layer["w_mat"], patches, layer["shift"],
                      act=act, out_dtype=out_dtype)
    return out.reshape(Cout, B, Ho, Wo)


# --------------------------- parameters (hoisted preprocessing) --------------

def _prep_head(key, in_features, d_model, max_channels, k, *, f_pad, d_pad,
               c0_pad):
    keys = jax.random.split(key, 12)

    def nrm(k_, shape, s=0.05):
        return s * jax.random.normal(k_, shape, jnp.float32)

    enc_w = jnp.zeros((f_pad, d_pad), jnp.float32).at[
        :in_features, :d_model].set(nrm(keys[0], (in_features, d_model)))
    enc_b = jnp.zeros((1, d_pad), jnp.float32).at[0, :d_model].set(
        nrm(keys[1], (d_model,)))

    ml_w = jnp.zeros((d_pad, 2 * d_pad), jnp.float32)
    ml_w = ml_w.at[:d_model, :d_model].set(nrm(keys[2], (d_model, d_model)))
    ml_w = ml_w.at[:d_model, d_pad:d_pad + d_model].set(
        nrm(keys[3], (d_model, d_model)))
    ml_b = jnp.zeros((1, 2 * d_pad), jnp.float32)
    ml_b = ml_b.at[0, :d_model].set(nrm(keys[4], (d_model,)))
    ml_b = ml_b.at[0, d_pad:d_pad + d_model].set(nrm(keys[5], (d_model,)))

    # input ConvUpBlock(d_model, max_channels, k, 1, 0) on a 1x1 input is a
    # direct GEMM (no spatial flip needed); BN scale folded into columns.
    w = nrm(keys[6], (d_model, max_channels, k, k))
    bias = nrm(keys[7], (max_channels,))
    gamma = 1.0 + nrm(keys[8], (max_channels,))
    beta = nrm(keys[9], (max_channels,))
    mean = nrm(keys[10], (max_channels,))
    var = 0.5 + jnp.abs(nrm(keys[11], (max_channels,)))
    scale = gamma / jnp.sqrt(var + 1e-5)
    shift = (bias - mean) * scale + beta

    w = w * scale[None, :, None, None]
    w_p = jnp.zeros((d_pad, c0_pad, k, k), jnp.float32).at[
        :d_model, :max_channels].set(w)
    win_w = w_p.reshape(d_pad, c0_pad * k * k)
    shift_p = jnp.zeros((c0_pad,), jnp.float32).at[:max_channels].set(shift)
    win_shift = jnp.repeat(shift_p, k * k).reshape(1, c0_pad * k * k)

    return dict(enc_w=enc_w.astype(jnp.bfloat16), enc_b=enc_b,
                ml_w=ml_w.astype(jnp.bfloat16), ml_b=ml_b,
                win_w=win_w.astype(jnp.bfloat16), win_shift=win_shift)


def _prep_conv_block(key, cin, cout, k, *, with_bn, cin_pad, cout_pad):
    k1, k2, k3, k4, k5, k6 = jax.random.split(key, 6)
    w = 0.05 * jax.random.normal(k1, (cin, cout, k, k), jnp.float32)
    bias = 0.05 * jax.random.normal(k2, (cout,), jnp.float32)
    if with_bn:
        gamma = 1.0 + 0.05 * jax.random.normal(k3, (cout,), jnp.float32)
        beta = 0.05 * jax.random.normal(k4, (cout,), jnp.float32)
        mean = 0.05 * jax.random.normal(k5, (cout,), jnp.float32)
        var = 0.5 + jnp.abs(0.05 * jax.random.normal(k6, (cout,), jnp.float32))
        scale = gamma / jnp.sqrt(var + 1e-5)
        shift = (bias - mean) * scale + beta
    else:
        scale = jnp.ones((cout,), jnp.float32)
        shift = bias

    # Equivalent direct-conv weight: spatial flip, BN scale folded into the
    # rows, zero-padded channels, (Cout_pad, Cin_pad*k*k) layout -- done once
    # here, off the forward hot path.
    w_flip = w[:, :, ::-1, ::-1] * scale[None, :, None, None]
    w_flip = jnp.pad(w_flip, ((0, cin_pad - cin), (0, cout_pad - cout),
                              (0, 0), (0, 0)))
    w_mat = w_flip.transpose(1, 0, 2, 3).reshape(cout_pad, cin_pad * k * k)
    shift = jnp.pad(shift, (0, cout_pad - cout)).reshape(cout_pad, 1)
    return dict(w_mat=w_mat.astype(jnp.bfloat16),
                shift=shift.astype(jnp.float32))


def init_params(key, in_features, d_model, max_channels, out_channels,
                kernel_size, num_blocks):
    f_pad = _round_up(in_features, 128)
    d_pad = _round_up(d_model, 128)
    c0_pad = _round_up(max_channels, 16)

    khead, kblocks = jax.random.split(key)
    params = _prep_head(khead, in_features, d_model, max_channels, kernel_size,
                        f_pad=f_pad, d_pad=d_pad, c0_pad=c0_pad)

    bkeys = jax.random.split(kblocks, num_blocks + 1)
    blocks = []
    for i in range(num_blocks):
        cin = max_channels // 2 ** i
        cout = max_channels // 2 ** (i + 1)
        blocks.append(_prep_conv_block(
            bkeys[i], cin, cout, kernel_size, with_bn=True,
            cin_pad=_round_up(cin, 16), cout_pad=_round_up(cout, 16)))
    params["blocks"] = blocks

    cin = max_channels // 2 ** num_blocks
    params["output"] = _prep_conv_block(
        bkeys[num_blocks], cin, out_channels, kernel_size, with_bn=False,
        cin_pad=_round_up(cin, 16), cout_pad=_round_up(out_channels, 16))
    return params


# --------------------------------- forward -----------------------------------

def eeg_generator_forward(params, x, noise_key, *, d_model, kernel_size,
                          stride, padding, out_channels):
    B, F = x.shape
    k = kernel_size
    f_pad, d_pad = params["enc_w"].shape
    c0_pad = params["win_w"].shape[1] // (k * k)
    b_pad = _round_up(B, 16)

    # Pad batch rows to full bf16 sublane packing; padded rows/cols are zero
    # and never pollute real rows (all head GEMMs are row-wise independent).
    x_p = jnp.zeros((b_pad, f_pad), jnp.bfloat16).at[:B, :F].set(
        x.astype(jnp.bfloat16))
    noise = jax.random.normal(noise_key, (B, d_model), jnp.float32)
    noise_p = jnp.zeros((b_pad, d_pad), jnp.float32).at[:B, :d_model].set(noise)

    # Fused head: encoder + mu/logvar + reparameterize + input ConvUpBlock.
    u = pl.pallas_call(
        functools.partial(_head_kernel, d_pad=d_pad),
        out_shape=jax.ShapeDtypeStruct((b_pad, c0_pad * k * k), jnp.bfloat16),
    )(x_p, noise_p, params["enc_w"], params["enc_b"], params["ml_w"],
      params["ml_b"], params["win_w"], params["win_shift"])

    # Single tiny layout fix-up to channel-first (C0_pad, B, k, k).
    y = u[:B].reshape(B, c0_pad, k, k).transpose(1, 0, 2, 3)

    # Stride-2 ConvUpBlocks + output ConvTranspose2d + Tanh.
    for blk in params["blocks"]:
        y = conv_transpose2d_cf(y, blk, k=k, stride=stride, padding=padding,
                                act="relu")
    y = conv_transpose2d_cf(y, params["output"], k=k, stride=stride,
                            padding=padding, act="tanh",
                            out_dtype=jnp.float32)

    # Drop padded channels, channel-first -> NCHW.
    return y[:out_channels].transpose(1, 0, 2, 3)


if __name__ == "__main__":
    B, F = 2, 16
    d_model, max_channels, out_channels = 32, 64, 3
    kernel_size, stride, padding, num_blocks = 4, 2, 1, 2

    key = jax.random.PRNGKey(0)
    pkey, xkey, nkey = jax.random.split(key, 3)
    params = init_params(pkey, F, d_model, max_channels, out_channels,
                         kernel_size, num_blocks)
    x = jax.random.normal(xkey, (B, F), jnp.float32)

    fwd = jax.jit(functools.partial(
        eeg_generator_forward, d_model=d_model, kernel_size=kernel_size,
        stride=stride, padding=padding, out_channels=out_channels))
    out = jax.block_until_ready(fwd(params, x, nkey))

    # spatial: 1 -> 4 (input block) -> 8 -> 16 (gen blocks) -> 32 (output)
    assert out.shape == (B, out_channels, 32, 32), out.shape
    assert bool(jnp.all(jnp.isfinite(out)))
    print("KERNEL_OK")
</pallas_src>

<mosaic_0001>
module attributes {stable_mosaic.version = 11 : i64} {
  func.func @_head_kernel(%arg0: memref<16x128xbf16, #tpu.memory_space<vmem>>, %arg1: memref<16x128xf32, #tpu.memory_space<vmem>>, %arg2: memref<128x128xbf16, #tpu.memory_space<vmem>>, %arg3: memref<1x128xf32, #tpu.memory_space<vmem>>, %arg4: memref<128x256xbf16, #tpu.memory_space<vmem>>, %arg5: memref<1x256xf32, #tpu.memory_space<vmem>>, %arg6: memref<128x1024xbf16, #tpu.memory_space<vmem>>, %arg7: memref<1x1024xf32, #tpu.memory_space<vmem>>, %arg8: memref<16x1024xbf16, #tpu.memory_space<vmem>>) attributes {dimension_semantics = [], scalar_prefetch = 0 : i64, scratch_operands = 0 : i64, tpu.core_type = #tpu.core_type<tc>} {
    %c0 = arith.constant 0 : index
    %c0_0 = arith.constant 0 : index
    %0 = vector.load %arg0[%c0, %c0_0] : memref<16x128xbf16, #tpu.memory_space<vmem>>, vector<16x128xbf16>
    %c0_1 = arith.constant 0 : index
    %c0_2 = arith.constant 0 : index
    %1 = vector.load %arg2[%c0_1, %c0_2] : memref<128x128xbf16, #tpu.memory_space<vmem>>, vector<128x128xbf16>
    %cst = arith.constant dense<0.000000e+00> : vector<16x128xf32>
    %2 = tpu.matmul %0, %1, %cst {dimension_numbers = #tpu.dot_dimension_numbers<[1], [0], [0], [1], [0, 0, 1, 1], [], []>} : vector<16x128xbf16>, vector<128x128xbf16>, vector<16x128xf32> -> vector<16x128xf32>
    %c0_3 = arith.constant 0 : index
    %c0_4 = arith.constant 0 : index
    %3 = vector.load %arg3[%c0_3, %c0_4] : memref<1x128xf32, #tpu.memory_space<vmem>>, vector<1x128xf32>
    %4 = vector.broadcast %3 : vector<1x128xf32> to vector<16x128xf32>
    %5 = arith.addf %2, %4 : vector<16x128xf32>
    %6 = arith.truncf %5 : vector<16x128xf32> to vector<16x128xbf16>
    %c0_5 = arith.constant 0 : index
    %c0_6 = arith.constant 0 : index
    %7 = vector.load %arg4[%c0_5, %c0_6] : memref<128x256xbf16, #tpu.memory_space<vmem>>, vector<128x256xbf16>
    %cst_7 = arith.constant dense<0.000000e+00> : vector<16x256xf32>
    %8 = tpu.matmul %6, %7, %cst_7 {dimension_numbers = #tpu.dot_dimension_numbers<[1], [0], [0], [1], [0, 0, 1, 1], [], []>} : vector<16x128xbf16>, vector<128x256xbf16>, vector<16x256xf32> -> vector<16x256xf32>
    %c0_8 = arith.constant 0 : index
    %c0_9 = arith.constant 0 : index
    %9 = vector.load %arg5[%c0_8, %c0_9] : memref<1x256xf32, #tpu.memory_space<vmem>>, vector<1x256xf32>
    %10 = vector.broadcast %9 : vector<1x256xf32> to vector<16x256xf32>
    %11 = arith.addf %8, %10 : vector<16x256xf32>
    %12 = vector.extract_strided_slice %11 {offsets = [0, 0], sizes = [16, 128], strides = [1, 1]} : vector<16x256xf32> to vector<16x128xf32>
    %13 = vector.extract_strided_slice %11 {offsets = [0, 128], sizes = [16, 128], strides = [1, 1]} : vector<16x256xf32> to vector<16x128xf32>
    %cst_10 = arith.constant 5.000000e-01 : f32
    %14 = vector.broadcast %cst_10 : f32 to vector<16x128xf32>
    %15 = arith.mulf %14, %13 : vector<16x128xf32>
    %16 = math.exp %15 : vector<16x128xf32>
    %c0_11 = arith.constant 0 : index
    %c0_12 = arith.constant 0 : index
    %17 = vector.load %arg1[%c0_11, %c0_12] : memref<16x128xf32, #tpu.memory_space<vmem>>, vector<16x128xf32>
    %18 = arith.mulf %16, %17 : vector<16x128xf32>
    %19 = arith.addf %12, %18 : vector<16x128xf32>
    %20 = arith.truncf %19 : vector<16x128xf32> to vector<16x128xbf16>
    %c0_13 = arith.constant 0 : index
    %c0_14 = arith.constant 0 : index
    %21 = vector.load %arg6[%c0_13, %c0_14] : memref<128x1024xbf16, #tpu.memory_space<vmem>>, vector<128x1024xbf16>
    %cst_15 = arith.constant dense<0.000000e+00> : vector<16x1024xf32>
    %22 = tpu.matmul %20, %21, %cst_15 {dimension_numbers = #tpu.dot_dimension_numbers<[1], [0], [0], [1], [0, 0, 1, 1], [], []>} : vector<16x128xbf16>, vector<128x1024xbf16>, vector<16x1024xf32> -> vector<16x1024xf32>
    %c0_16 = arith.constant 0 : index
    %c0_17 = arith.constant 0 : index
    %23 = vector.load %arg7[%c0_16, %c0_17] : memref<1x1024xf32, #tpu.memory_space<vmem>>, vector<1x1024xf32>
    %24 = vector.broadcast %23 : vector<1x1024xf32> to vector<16x1024xf32>
    %25 = arith.addf %22, %24 : vector<16x1024xf32>
    %cst_18 = arith.constant 0.000000e+00 : f32
    %26 = vector.broadcast %cst_18 : f32 to vector<16x1024xf32>
    %27 = arith.maximumf %25, %26 : vector<16x1024xf32>
    %28 = arith.truncf %27 : vector<16x1024xf32> to vector<16x1024xbf16>
    %c0_19 = arith.constant 0 : index
    %c0_20 = arith.constant 0 : index
    %29 = vector.load %arg8[%c0_19, %c0_20] : memref<16x1024xbf16, #tpu.memory_space<vmem>>, vector<16x1024xbf16>
    tpu.vector_store %arg8[%c0_19, %c0_20], %28 {strides = array<i32>} : memref<16x1024xbf16, #tpu.memory_space<vmem>>, vector<16x1024xbf16>,
    return
  }
}

module attributes {stable_mosaic.version = 11 : i64} {
  func.func @_gemm_bias_act_kernel(%arg0: i32, %arg1: memref<32x1024xbf16, #tpu.memory_space<vmem>>, %arg2: memref<1024x128xbf16, #tpu.memory_space<vmem>>, %arg3: memref<32x1xf32, #tpu.memory_space<vmem>>, %arg4: memref<32x128xbf16, #tpu.memory_space<vmem>>) attributes {dimension_semantics = [#tpu.dimension_semantics<parallel>], iteration_bounds = array<i64: 1>, scalar_prefetch = 0 : i64, scratch_operands = 0 : i64, tpu.core_type = #tpu.core_type<tc>, window_params = [{pipeline_mode = #tpu.pipeline_mode<synchronous>, transform_indices = @transform_0, window_bounds = array<i64: 32, 1024>}, {transform_indices = @transform_1, window_bounds = array<i64: 1024, 128>}, {pipeline_mode = #tpu.pipeline_mode<synchronous>, transform_indices = @transform_2, window_bounds = array<i64: 32, 1>}, {transform_indices = @transform_3, window_bounds = array<i64: 32, 128>}]} {
    %c0 = arith.constant 0 : index
    %c0_0 = arith.constant 0 : index
    %0 = vector.load %arg1[%c0, %c0_0] : memref<32x1024xbf16, #tpu.memory_space<vmem>>, vector<32x1024xbf16>
    %c0_1 = arith.constant 0 : index
    %c0_2 = arith.constant 0 : index
    %1 = vector.load %arg2[%c0_1, %c0_2] : memref<1024x128xbf16, #tpu.memory_space<vmem>>, vector<1024x128xbf16>
    %cst = arith.constant dense<0.000000e+00> : vector<32x128xf32>
    %2 = tpu.matmul %0, %1, %cst {dimension_numbers = #tpu.dot_dimension_numbers<[1], [0], [0], [1], [0, 0, 1, 1], [], []>} : vector<32x1024xbf16>, vector<1024x128xbf16>, vector<32x128xf32> -> vector<32x128xf32>
    %c0_3 = arith.constant 0 : index
    %c0_4 = arith.constant 0 : index
    %3 = vector.load %arg3[%c0_3, %c0_4] : memref<32x1xf32, #tpu.memory_space<vmem>>, vector<32x1xf32>
    %4 = vector.broadcast %3 : vector<32x1xf32> to vector<32x128xf32>
    %5 = arith.addf %2, %4 : vector<32x128xf32>
    %cst_5 = arith.constant 0.000000e+00 : f32
    %6 = vector.broadcast %cst_5 : f32 to vector<32x128xf32>
    %7 = arith.maximumf %5, %6 : vector<32x128xf32>
    %8 = arith.truncf %7 : vector<32x128xf32> to vector<32x128xbf16>
    %c0_6 = arith.constant 0 : index
    %c0_7 = arith.constant 0 : index
    %9 = vector.load %arg4[%c0_6, %c0_7] : memref<32x128xbf16, #tpu.memory_space<vmem>>, vector<32x128xbf16>
    tpu.vector_store %arg4[%c0_6, %c0_7], %8 {strides = array<i32>} : memref<32x128xbf16, #tpu.memory_space<vmem>>, vector<32x128xbf16>,
    return
  }
  func.func @transform_0(%arg0: i32) -> (i32, i32) {
    %c0_i32 = arith.constant 0 : i32
    %c0_i32_0 = arith.constant 0 : i32
    %c0_i32_1 = arith.constant 0 : i32
    return %c0_i32, %c0_i32_0 : i32, i32
  }
  func.func @transform_1(%arg0: i32) -> (i32, i32) {
    %c0_i32 = arith.constant 0 : i32
    %c0_i32_0 = arith.constant 0 : i32
    return %c0_i32, %arg0 : i32, i32
  }
  func.func @transform_2(%arg0: i32) -> (i32, i32) {
    %c0_i32 = arith.constant 0 : i32
    %c0_i32_0 = arith.constant 0 : i32
    %c0_i32_1 = arith.constant 0 : i32
    return %c0_i32, %c0_i32_0 : i32, i32
  }
  func.func @transform_3(%arg0: i32) -> (i32, i32) {
    %c0_i32 = arith.constant 0 : i32
    %c0_i32_0 = arith.constant 0 : i32
    return %c0_i32, %arg0 : i32, i32
  }
}

module attributes {stable_mosaic.version = 11 : i64} {
  func.func @_gemm_bias_act_kernel(%arg0: i32, %arg1: memref<16x512xbf16, #tpu.memory_space<vmem>>, %arg2: memref<512x256xbf16, #tpu.memory_space<vmem>>, %arg3: memref<16x1xf32, #tpu.memory_space<vmem>>, %arg4: memref<16x256xbf16, #tpu.memory_space<vmem>>) attributes {dimension_semantics = [#tpu.dimension_semantics<parallel>], iteration_bounds = array<i64: 2>, scalar_prefetch = 0 : i64, scratch_operands = 0 : i64, tpu.core_type = #tpu.core_type<tc>, window_params = [{pipeline_mode = #tpu.pipeline_mode<synchronous>, transform_indices = @transform_0, window_bounds = array<i64: 16, 512>}, {transform_indices = @transform_1, window_bounds = array<i64: 512, 256>}, {pipeline_mode = #tpu.pipeline_mode<synchronous>, transform_indices = @transform_2, window_bounds = array<i64: 16, 1>}, {transform_indices = @transform_3, window_bounds = array<i64: 16, 256>}]} {
    %c0 = arith.constant 0 : index
    %c0_0 = arith.constant 0 : index
    %0 = vector.load %arg1[%c0, %c0_0] : memref<16x512xbf16, #tpu.memory_space<vmem>>, vector<16x512xbf16>
    %c0_1 = arith.constant 0 : index
    %c0_2 = arith.constant 0 : index
    %1 = vector.load %arg2[%c0_1, %c0_2] : memref<512x256xbf16, #tpu.memory_space<vmem>>, vector<512x256xbf16>
    %cst = arith.constant dense<0.000000e+00> : vector<16x256xf32>
    %2 = tpu.matmul %0, %1, %cst {dimension_numbers = #tpu.dot_dimension_numbers<[1], [0], [0], [1], [0, 0, 1, 1], [], []>} : vector<16x512xbf16>, vector<512x256xbf16>, vector<16x256xf32> -> vector<16x256xf32>
    %c0_3 = arith.constant 0 : index
    %c0_4 = arith.constant 0 : index
    %3 = vector.load %arg3[%c0_3, %c0_4] : memref<16x1xf32, #tpu.memory_space<vmem>>, vector<16x1xf32>
    %4 = vector.broadcast %3 : vector<16x1xf32> to vector<16x256xf32>
    %5 = arith.addf %2, %4 : vector<16x256xf32>
    %cst_5 = arith.constant 0.000000e+00 : f32
    %6 = vector.broadcast %cst_5 : f32 to vector<16x256xf32>
    %7 = arith.maximumf %5, %6 : vector<16x256xf32>
    %8 = arith.truncf %7 : vector<16x256xf32> to vector<16x256xbf16>
    %c0_6 = arith.constant 0 : index
    %c0_7 = arith.constant 0 : index
    %9 = vector.load %arg4[%c0_6, %c0_7] : memref<16x256xbf16, #tpu.memory_space<vmem>>, vector<16x256xbf16>
    tpu.vector_store %arg4[%c0_6, %c0_7], %8 {strides = array<i32>} : memref<16x256xbf16, #tpu.memory_space<vmem>>, vector<16x256xbf16>,
    return
  }
  func.func @transform_0(%arg0: i32) -> (i32, i32) {
    %c0_i32 = arith.constant 0 : i32
    %c0_i32_0 = arith.constant 0 : i32
    %c0_i32_1 = arith.constant 0 : i32
    return %c0_i32, %c0_i32_0 : i32, i32
  }
  func.func @transform_1(%arg0: i32) -> (i32, i32) {
    %c0_i32 = arith.constant 0 : i32
    %c0_i32_0 = arith.constant 0 : i32
    return %c0_i32, %arg0 : i32, i32
  }
  func.func @transform_2(%arg0: i32) -> (i32, i32) {
    %c0_i32 = arith.constant 0 : i32
    %c0_i32_0 = arith.constant 0 : i32
    %c0_i32_1 = arith.constant 0 : i32
    return %c0_i32, %c0_i32_0 : i32, i32
  }
  func.func @transform_3(%arg0: i32) -> (i32, i32) {
    %c0_i32 = arith.constant 0 : i32
    %c0_i32_0 = arith.constant 0 : i32
    return %c0_i32, %arg0 : i32, i32
  }
}

module attributes {stable_mosaic.version = 11 : i64} {
  func.func @_gemm_bias_act_kernel(%arg0: i32, %arg1: memref<16x256xbf16, #tpu.memory_space<vmem>>, %arg2: memref<256x1024xbf16, #tpu.memory_space<vmem>>, %arg3: memref<16x1xf32, #tpu.memory_space<vmem>>, %arg4: memref<16x1024xf32, #tpu.memory_space<vmem>>) attributes {dimension_semantics = [#tpu.dimension_semantics<parallel>], iteration_bounds = array<i64: 2>, scalar_prefetch = 0 : i64, scratch_operands = 0 : i64, tpu.core_type = #tpu.core_type<tc>, window_params = [{pipeline_mode = #tpu.pipeline_mode<synchronous>, transform_indices = @transform_0, window_bounds = array<i64: 16, 256>}, {transform_indices = @transform_1, window_bounds = array<i64: 256, 1024>}, {pipeline_mode = #tpu.pipeline_mode<synchronous>, transform_indices = @transform_2, window_bounds = array<i64: 16, 1>}, {transform_indices = @transform_3, window_bounds = array<i64: 16, 1024>}]} {
    %c0 = arith.constant 0 : index
    %c0_0 = arith.constant 0 : index
    %0 = vector.load %arg1[%c0, %c0_0] : memref<16x256xbf16, #tpu.memory_space<vmem>>, vector<16x256xbf16>
    %c0_1 = arith.constant 0 : index
    %c0_2 = arith.constant 0 : index
    %1 = vector.load %arg2[%c0_1, %c0_2] : memref<256x1024xbf16, #tpu.memory_space<vmem>>, vector<256x1024xbf16>
    %cst = arith.constant dense<0.000000e+00> : vector<16x1024xf32>
    %2 = tpu.matmul %0, %1, %cst {dimension_numbers = #tpu.dot_dimension_numbers<[1], [0], [0], [1], [0, 0, 1, 1], [], []>} : vector<16x256xbf16>, vector<256x1024xbf16>, vector<16x1024xf32> -> vector<16x1024xf32>
    %c0_3 = arith.constant 0 : index
    %c0_4 = arith.constant 0 : index
    %3 = vector.load %arg3[%c0_3, %c0_4] : memref<16x1xf32, #tpu.memory_space<vmem>>, vector<16x1xf32>
    %4 = vector.broadcast %3 : vector<16x1xf32> to vector<16x1024xf32>
    %5 = arith.addf %2, %4 : vector<16x1024xf32>
    %6 = math.tanh %5 : vector<16x1024xf32>
    %c0_5 = arith.constant 0 : index
    %c0_6 = arith.constant 0 : index
    %7 = vector.load %arg4[%c0_5, %c0_6] : memref<16x1024xf32, #tpu.memory_space<vmem>>, vector<16x1024xf32>
    tpu.vector_store %arg4[%c0_5, %c0_6], %6 {strides = array<i32>} : memref<16x1024xf32, #tpu.memory_space<vmem>>, vector<16x1024xf32>,
    return
  }
  func.func @transform_0(%arg0: i32) -> (i32, i32) {
    %c0_i32 = arith.constant 0 : i32
    %c0_i32_0 = arith.constant 0 : i32
    %c0_i32_1 = arith.constant 0 : i32
    return %c0_i32, %c0_i32_0 : i32, i32
  }
  func.func @transform_1(%arg0: i32) -> (i32, i32) {
    %c0_i32 = arith.constant 0 : i32
    %c0_i32_0 = arith.constant 0 : i32
    return %c0_i32, %arg0 : i32, i32
  }
  func.func @transform_2(%arg0: i32) -> (i32, i32) {
    %c0_i32 = arith.constant 0 : i32
    %c0_i32_0 = arith.constant 0 : i32
    %c0_i32_1 = arith.constant 0 : i32
    return %c0_i32, %c0_i32_0 : i32, i32
  }
  func.func @transform_3(%arg0: i32) -> (i32, i32) {
    %c0_i32 = arith.constant 0 : i32
    %c0_i32_0 = arith.constant 0 : i32
    return %c0_i32, %arg0 : i32, i32
  }
}

</mosaic_0001>

<llo_original>
// kernel: eeg_generator_forward.4
$region0: #{eeg_generator_forward.4}
  #allocation0 [shape = 'u32[]', space=smem, size = 0x4, offset = 0x4, fixed_abs, tag = 'smem constant byte address 0x4 - core index']
  #allocation1 [shape = 'u32[72,128]{1,0:T(1,128)}', space=vmem, size = 0x9000, scoped, tag = 'internal scratch']
  %s0 = inlined_call_operand.vmem [shape: bf16[16,128], index: 0, kind: input, shape index: {}]
  %s1 = inlined_call_operand.vmem [shape: f32[16,128], index: 1, kind: input, shape index: {}]
  %s2 = inlined_call_operand.hbm [shape: bf16[128,128], index: 2, kind: input, shape index: {}]
  %s3 = inlined_call_operand.hbm [shape: f32[1,128], index: 3, kind: input, shape index: {}]
  %s4 = inlined_call_operand.hbm [shape: bf16[128,256], index: 4, kind: input, shape index: {}]
  %s5 = inlined_call_operand.hbm [shape: f32[1,256], index: 5, kind: input, shape index: {}]
  %s6 = inlined_call_operand.hbm [shape: bf16[128,1024], index: 6, kind: input, shape index: {}]
  %s7 = inlined_call_operand.hbm [shape: f32[1,1024], index: 7, kind: input, shape index: {}]
  %s8 = inlined_call_operand.vmem [shape: bf16[16,1024], index: 8, kind: output, shape index: {}]
  %s9 = sld [smem:[#allocation0]]
  $region66: #{eeg_generator_forward.4} parent=0
    _
  %s11 = ssub.s32 1, %s9
  %s12 = scalar_select 0, %s11, %s9
  $region1: #{eeg_generator_forward.4} parent=0
    #allocation2 [shape = 'u8[32768]{0}', space=vmem, size = 0x8000, scoped, tag = 'input window, operand 2, single buffered']
    #allocation3 [shape = 's32[1]{0}', space=sflag, size = 0x4, scoped, tag = 'scoped memory for eeg_generator_forward.4']
    #allocation4 [shape = 'u8[512]{0}', space=vmem, size = 0x400, scoped, tag = 'input window, operand 3, single buffered']
    #allocation5 [shape = 's32[1]{0}', space=sflag, size = 0x4, scoped, tag = 'scoped memory for eeg_generator_forward.4']
    #allocation6 [shape = 'u8[65536]{0}', space=vmem, size = 0x10000, scoped, tag = 'input window, operand 4, single buffered']
    #allocation7 [shape = 'u8[1024]{0}', space=vmem, size = 0x400, scoped, tag = 'input window, operand 5, single buffered']
    #allocation8 [shape = 's32[1]{0}', space=sflag, size = 0x4, scoped, tag = 'scoped memory for eeg_generator_forward.4']
    #allocation9 [shape = 'u8[262144]{0}', space=vmem, size = 0x40000, scoped, tag = 'input window, operand 6, single buffered']
    #allocation10 [shape = 'u8[4096]{0}', space=vmem, size = 0x1000, scoped, tag = 'input window, operand 7, single buffered']
    #allocation11 [shape = 's32[1]{0}', space=sflag, size = 0x4, scoped, tag = 'scoped memory for eeg_generator_forward.4']
    %13 = vsyncpa [#allocation3], 0
    %14 = vsyncpa [#allocation5], 0
    %15 = vsyncpa [#allocation8], 0
    %16 = vsyncpa [#allocation11], 0
    // Predicated region
    $region2: #{eeg_generator_forward.4} parent=1 // pred_check
      _
    $region3: #{eeg_generator_forward.4} parent=1 // pred_check_branch
      %18 = sbr.rel (0) target = $region5
    $region4: #{eeg_generator_forward.4} parent=1 // pred_region
      _
    $region5: #{eeg_generator_forward.4} parent=1 // pred_fallthru
      _
    // Predicated region
    $region6: #{eeg_generator_forward.4} parent=1 // pred_check
      _
    $region7: #{eeg_generator_forward.4} parent=1 // pred_check_branch
      %20 = sbr.rel (0) target = $region9
    $region8: #{eeg_generator_forward.4} parent=1 // pred_region
      _
    $region9: #{eeg_generator_forward.4} parent=1 // pred_fallthru
      _
    // Predicated region
    $region10: #{eeg_generator_forward.4} parent=1 // pred_check
      _
    $region11: #{eeg_generator_forward.4} parent=1 // pred_check_branch
      %22 = sbr.rel (0) target = $region13
    $region12: #{eeg_generator_forward.4} parent=1 // pred_region
      %24 = vsyncadd [#allocation3], 0
      %s25 = sshll.u32 %s2, 4
      %s26 = int_to_ptr.hbm [resolvable:$true] %s25
      %s27 = sshll.u32 [#allocation2], 4
      %s28 = int_to_ptr.vmem [resolvable:$true] %s27
      %33 = dma.hbm_to_vmem [thread:$0]  %s26, 1024, %s28, [#allocation3], 64, 64, 4
    $region13: #{eeg_generator_forward.4} parent=1 // pred_fallthru
      _
    // Predicated region
    $region14: #{eeg_generator_forward.4} parent=1 // pred_check
      _
    $region15: #{eeg_generator_forward.4} parent=1 // pred_check_branch
      %35 = sbr.rel (0) target = $region17
    $region16: #{eeg_generator_forward.4} parent=1 // pred_region
      %37 = vsyncadd [#allocation5], 0
      %s39 = sshll.u32 %s3, 4
      %s40 = int_to_ptr.hbm [resolvable:$true] %s39
      %s41 = sshll.u32 [#allocation4], 4
      %s42 = int_to_ptr.vmem [resolvable:$true] %s41
      %44 = dma.hbm_to_vmem [thread:$0]  %s40, 16, %s42, [#allocation5]
    $region17: #{eeg_generator_forward.4} parent=1 // pred_fallthru
      _
    // Predicated region
    $region18: #{eeg_generator_forward.4} parent=1 // pred_check
      _
    $region19: #{eeg_generator_forward.4} parent=1 // pred_check_branch
      %46 = sbr.rel (0) target = $region21
    $region20: #{eeg_generator_forward.4} parent=1 // pred_region
      %48 = vsyncadd [#allocation5], 0
      %s49 = sshll.u32 %s4, 4
      %s50 = int_to_ptr.hbm [resolvable:$true] %s49
      %s51 = sshll.u32 [#allocation6], 4
      %s52 = int_to_ptr.vmem [resolvable:$true] %s51
      %57 = dma.hbm_to_vmem [thread:$0]  %s50, 2048, %s52, [#allocation5], 128, 128, 8
    $region21: #{eeg_generator_forward.4} parent=1 // pred_fallthru
      _
    // Predicated region
    $region22: #{eeg_generator_forward.4} parent=1 // pred_check
      _
    $region23: #{eeg_generator_forward.4} parent=1 // pred_check_branch
      %59 = sbr.rel (0) target = $region25
    $region24: #{eeg_generator_forward.4} parent=1 // pred_region
      %61 = vsyncadd [#allocation8], 0
      %s63 = sshll.u32 %s5, 4
      %s64 = int_to_ptr.hbm [resolvable:$true] %s63
      %s65 = sshll.u32 [#allocation7], 4
      %s66 = int_to_ptr.vmem [resolvable:$true] %s65
      %68 = dma.hbm_to_vmem [thread:$0]  %s64, 32, %s66, [#allocation8]
    $region25: #{eeg_generator_forward.4} parent=1 // pred_fallthru
      _
    // Predicated region
    $region26: #{eeg_generator_forward.4} parent=1 // pred_check
      _
    $region27: #{eeg_generator_forward.4} parent=1 // pred_check_branch
      %70 = sbr.rel (0) target = $region29
    $region28: #{eeg_generator_forward.4} parent=1 // pred_region
      %72 = vsyncadd [#allocation8], 0
      %s73 = sshll.u32 %s6, 4
      %s74 = int_to_ptr.hbm [resolvable:$true] %s73
      %s75 = sshll.u32 [#allocation9], 4
      %s76 = int_to_ptr.vmem [resolvable:$true] %s75
      %81 = dma.hbm_to_vmem [thread:$0]  %s74, 8192, %s76, [#allocation8], 512, 512, 32
    $region29: #{eeg_generator_forward.4} parent=1 // pred_fallthru
      _
    // Predicated region
    $region30: #{eeg_generator_forward.4} parent=1 // pred_check
      _
    $region31: #{eeg_generator_forward.4} parent=1 // pred_check_branch
      %83 = sbr.rel (0) target = $region33
    $region32: #{eeg_generator_forward.4} parent=1 // pred_region
      %85 = vsyncadd [#allocation11], 0
      %s87 = sshll.u32 %s7, 4
      %s88 = int_to_ptr.hbm [resolvable:$true] %s87
      %s89 = sshll.u32 [#allocation10], 4
      %s90 = int_to_ptr.vmem [resolvable:$true] %s89
      %92 = dma.hbm_to_vmem [thread:$0]  %s88, 128, %s90, [#allocation11]
    $region33: #{eeg_generator_forward.4} parent=1 // pred_fallthru
      _
    // Predicated region
    $region34: #{eeg_generator_forward.4} parent=1 // pred_check
      _
    $region35: #{eeg_generator_forward.4} parent=1 // pred_check_branch
      %94 = sbr.rel (0) target = $region37
    $region36: #{eeg_generator_forward.4} parent=1 // pred_region
      %96 = dma.done [#allocation3], 1024
    $region37: #{eeg_generator_forward.4} parent=1 // pred_fallthru
      _
    // Predicated region
    $region38: #{eeg_generator_forward.4} parent=1 // pred_check
      _
    $region39: #{eeg_generator_forward.4} parent=1 // pred_check_branch
      %98 = sbr.rel (0) target = $region41
    $region40: #{eeg_generator_forward.4} parent=1 // pred_region
      %100 = dma.done [#allocation5], 16
    $region41: #{eeg_generator_forward.4} parent=1 // pred_fallthru
      _
    // Predicated region
    $region42: #{eeg_generator_forward.4} parent=1 // pred_check
      _
    $region43: #{eeg_generator_forward.4} parent=1 // pred_check_branch
      %102 = sbr.rel (0) target = $region45
    $region44: #{eeg_generator_forward.4} parent=1 // pred_region
      %104 = dma.done [#allocation5], 2048
    $region45: #{eeg_generator_forward.4} parent=1 // pred_fallthru
      _
    // Predicated region
    $region46: #{eeg_generator_forward.4} parent=1 // pred_check
      _
    $region47: #{eeg_generator_forward.4} parent=1 // pred_check_branch
      %106 = sbr.rel (0) target = $region49
    $region48: #{eeg_generator_forward.4} parent=1 // pred_region
      %108 = dma.done [#allocation8], 32
    $region49: #{eeg_generator_forward.4} parent=1 // pred_fallthru
      _
    // Predicated region
    $region50: #{eeg_generator_forward.4} parent=1 // pred_check
      _
    $region51: #{eeg_generator_forward.4} parent=1 // pred_check_branch
      %110 = sbr.rel (0) target = $region53
    $region52: #{eeg_generator_forward.4} parent=1 // pred_region
      %112 = dma.done [#allocation8], 8192
    $region53: #{eeg_generator_forward.4} parent=1 // pred_fallthru
      _
    // Predicated region
    $region54: #{eeg_generator_forward.4} parent=1 // pred_check
      _
    $region55: #{eeg_generator_forward.4} parent=1 // pred_check_branch
      %114 = sbr.rel (0) target = $region57
    $region56: #{eeg_generator_forward.4} parent=1 // pred_region
      %116 = dma.done [#allocation11], 128
    $region57: #{eeg_generator_forward.4} parent=1 // pred_fallthru
      _
    %v117 = vld [vmem:[%s0] sm:$0xf]
    %v118 = vld [vmem:[%s0 + $0x4] sm:$0xf]
    %v119 = vld [vmem:[#allocation2] sm:$0xf]
    %v120 = vld [vmem:[#allocation2 + $0x4] sm:$0xf]
    %v121 = vld [vmem:[#allocation2 + $0x8] sm:$0xf]
    %v122 = vld [vmem:[#allocation2 + $0xc] sm:$0xf]
    %v123 = vld [vmem:[#allocation2 + $0x10] sm:$0xf]
    %v124 = vld [vmem:[#allocation2 + $0x14] sm:$0xf]
    %v125 = vld [vmem:[#allocation2 + $0x18] sm:$0xf]
    %v126 = vld [vmem:[#allocation2 + $0x1c] sm:$0xf]
    %v127 = vld [vmem:[#allocation2 + $0x20] sm:$0xf]
    %v128 = vld [vmem:[#allocation2 + $0x24] sm:$0xf]
    %v129 = vld [vmem:[#allocation2 + $0x28] sm:$0xf]
    %v130 = vld [vmem:[#allocation2 + $0x2c] sm:$0xf]
    %v131 = vld [vmem:[#allocation2 + $0x30] sm:$0xf]
    %v132 = vld [vmem:[#allocation2 + $0x34] sm:$0xf]
    %v133 = vld [vmem:[#allocation2 + $0x38] sm:$0xf]
    %v134 = vld [vmem:[#allocation2 + $0x3c] sm:$0xf]
    %v135 = vld [vmem:[#allocation4] sm:$0x1]
    %v137 = vperm.slane %v135, 0
    %v141 = vunpack.c.l.b16 %v117
    %v142 = vunpack.c.l.b16 %v118
    %v143 = vpack.c.b16 %v142, %v141
    %v161 = vunpack.c.l.b16 %v119
    %v162 = vunpack.c.l.b16 %v120
    %v163 = vunpack.c.l.b16 %v121
    %v164 = vunpack.c.l.b16 %v122
    %v165 = vunpack.c.l.b16 %v123
    %v166 = vunpack.c.l.b16 %v124
    %v167 = vunpack.c.l.b16 %v125
    %v168 = vunpack.c.l.b16 %v126
    %v169 = vunpack.c.l.b16 %v127
    %v170 = vunpack.c.l.b16 %v128
    %v171 = vunpack.c.l.b16 %v129
    %v172 = vunpack.c.l.b16 %v130
    %v173 = vunpack.c.l.b16 %v131
    %v174 = vunpack.c.l.b16 %v132
    %v175 = vunpack.c.l.b16 %v133
    %v176 = vunpack.c.l.b16 %v134
    %v177 = vpack.c.b16 %v162, %v161
    %v178 = vpack.c.b16 %v164, %v163
    %v179 = vpack.c.b16 %v166, %v165
    %v180 = vpack.c.b16 %v168, %v167
    %v181 = vpack.c.b16 %v170, %v169
    %v182 = vpack.c.b16 %v172, %v171
    %v183 = vpack.c.b16 %v174, %v173
    %v184 = vpack.c.b16 %v176, %v175
    %193 = vmatpush.bf16.msra.mxu0 %v184
    %194 = vmatpush.bf16.msra.mxu0 %v183
    %195 = vmatpush.bf16.msra.mxu0 %v182
    %196 = vmatpush.bf16.msra.mxu0 %v181
    %197 = vmatpush.bf16.msra.mxu0 %v180
    %198 = vmatpush.bf16.msra.mxu0 %v179
    %199 = vmatpush.bf16.msra.mxu0 %v178
    %200 = vmatpush.bf16.msra.mxu0 %v177
    %201 = vmatmul.bf16.gmra.mxu0 %v143
    %v202 = vpop.f32.mrf.mxu0
    %v203 = vadd.f32 %v137, %v202
    %v204 = vpop.f32.mrf.mxu0
    %v205 = vadd.f32 %v137, %v204
    %206 = vdwg.mxu0
    %v207 = vpack.c.bf16 %v205, %v203
    %v208 = vld [vmem:[#allocation6] sm:$0xff]
    %v209 = vld [vmem:[#allocation6 + $0x8] sm:$0xff]
    %v210 = vld [vmem:[#allocation6 + $0x10] sm:$0xff]
    %v211 = vld [vmem:[#allocation6 + $0x18] sm:$0xff]
    %v212 = vld [vmem:[#allocation6 + $0x20] sm:$0xff]
    %v213 = vld [vmem:[#allocation6 + $0x28] sm:$0xff]
    %v214 = vld [vmem:[#allocation6 + $0x30] sm:$0xff]
    %v215 = vld [vmem:[#allocation6 + $0x38] sm:$0xff]
    %v216 = vld [vmem:[#allocation6 + $0x40] sm:$0xff]
    %v217 = vld [vmem:[#allocation6 + $0x48] sm:$0xff]
    %v218 = vld [vmem:[#allocation6 + $0x50] sm:$0xff]
    %v219 = vld [vmem:[#allocation6 + $0x58] sm:$0xff]
    %v220 = vld [vmem:[#allocation6 + $0x60] sm:$0xff]
    %v221 = vld [vmem:[#allocation6 + $0x68] sm:$0xff]
    %v222 = vld [vmem:[#allocation6 + $0x70] sm:$0xff]
    %v223 = vld [vmem:[#allocation6 + $0x78] sm:$0xff]
    %v224 = vld [vmem:[#allocation7] sm:$0x3]
    %v226 = vperm.slane %v224, 0
    %v227 = vperm.slane %v224, 1
    %v246 = vunpack.c.l.b16 %v208
    %v247 = vunpack.c.h.b16 %v208
    %v248 = vunpack.c.l.b16 %v209
    %v249 = vunpack.c.h.b16 %v209
    %v250 = vunpack.c.l.b16 %v210
    %v251 = vunpack.c.h.b16 %v210
    %v252 = vunpack.c.l.b16 %v211
    %v253 = vunpack.c.h.b16 %v211
    %v254 = vunpack.c.l.b16 %v212
    %v255 = vunpack.c.h.b16 %v212
    %v256 = vunpack.c.l.b16 %v213
    %v257 = vunpack.c.h.b16 %v213
    %v258 = vunpack.c.l.b16 %v214
    %v259 = vunpack.c.h.b16 %v214
    %v260 = vunpack.c.l.b16 %v215
    %v261 = vunpack.c.h.b16 %v215
    %v262 = vunpack.c.l.b16 %v216
    %v263 = vunpack.c.h.b16 %v216
    %v264 = vunpack.c.l.b16 %v217
    %v265 = vunpack.c.h.b16 %v217
    %v266 = vunpack.c.l.b16 %v218
    %v267 = vunpack.c.h.b16 %v218
    %v268 = vunpack.c.l.b16 %v219
    %v269 = vunpack.c.h.b16 %v219
    %v270 = vunpack.c.l.b16 %v220
    %v271 = vunpack.c.h.b16 %v220
    %v272 = vunpack.c.l.b16 %v221
    %v273 = vunpack.c.h.b16 %v221
    %v274 = vunpack.c.l.b16 %v222
    %v275 = vunpack.c.h.b16 %v222
    %v276 = vunpack.c.l.b16 %v223
    %v277 = vunpack.c.h.b16 %v223
    %v278 = vpack.c.b16 %v248, %v246
    %v279 = vpack.c.b16 %v249, %v247
    %v280 = vpack.c.b16 %v252, %v250
    %v281 = vpack.c.b16 %v253, %v251
    %v282 = vpack.c.b16 %v256, %v254
    %v283 = vpack.c.b16 %v257, %v255
    %v284 = vpack.c.b16 %v260, %v258
    %v285 = vpack.c.b16 %v261, %v259
    %v286 = vpack.c.b16 %v264, %v262
    %v287 = vpack.c.b16 %v265, %v263
    %v288 = vpack.c.b16 %v268, %v266
    %v289 = vpack.c.b16 %v269, %v267
    %v290 = vpack.c.b16 %v272, %v270
    %v291 = vpack.c.b16 %v273, %v271
    %v292 = vpack.c.b16 %v276, %v274
    %v293 = vpack.c.b16 %v277, %v275
    %310 = vmatpush.bf16.msra.mxu0 %v292
    %311 = vmatpush.bf16.msra.mxu0 %v290
    %312 = vmatpush.bf16.msra.mxu0 %v288
    %313 = vmatpush.bf16.msra.mxu0 %v286
    %314 = vmatpush.bf16.msra.mxu0 %v284
    %315 = vmatpush.bf16.msra.mxu0 %v282
    %316 = vmatpush.bf16.msra.mxu0 %v280
    %317 = vmatpush.bf16.msra.mxu0 %v278
    %318 = vmatmul.bf16.gmra.mxu0 %v207
    %v319 = vpop.f32.mrf.mxu0
    %v320 = vadd.f32 %v226, %v319
    %v321 = vpop.f32.mrf.mxu0
    %v322 = vadd.f32 %v226, %v321
    %323 = vdwg.mxu0
    %324 = vmatpush.bf16.msra.mxu0 %v293
    %325 = vmatpush.bf16.msra.mxu0 %v291
    %326 = vmatpush.bf16.msra.mxu0 %v289
    %327 = vmatpush.bf16.msra.mxu0 %v287
    %328 = vmatpush.bf16.msra.mxu0 %v285
    %329 = vmatpush.bf16.msra.mxu0 %v283
    %330 = vmatpush.bf16.msra.mxu0 %v281
    %331 = vmatpush.bf16.msra.mxu0 %v279
    %332 = vmatmul.bf16.gmra.mxu0 %v207
    %v333 = vpop.f32.mrf.mxu0
    %v334 = vadd.f32 %v227, %v333
    %v335 = vpop.f32.mrf.mxu0
    %v336 = vadd.f32 %v227, %v335
    %337 = vdwg.mxu0
    %v338 = vmul.f32 %v334, 0.5
    %v339 = vmul.f32 %v336, 0.5
    %v340 = vmul.f32 %v338, 1.442695
    %v341 = vpow.pop %v340
    %v342 = vmul.f32 %v339, 1.442695
    %v343 = vpow.pop %v342
    %v344 = vld [vmem:[%s1] sm:$0xff]
    %v345 = vld [vmem:[%s1 + $0x8] sm:$0xff]
    %v346 = vmul.f32 %v341, %v344
    %v347 = vmul.f32 %v343, %v345
    %v348 = vadd.f32 %v320, %v346
    %v349 = vadd.f32 %v322, %v347
    %v350 = vpack.c.bf16 %v349, %v348
    %v351 = vld [vmem:[#allocation9] sm:$0xff]
    %v352 = vld [vmem:[#allocation9 + $0x8] sm:$0xff]
    %v353 = vld [vmem:[#allocation9 + $0x10] sm:$0xff]
    %v354 = vld [vmem:[#allocation9 + $0x18] sm:$0xff]
    %v355 = vld [vmem:[#allocation9 + $0x20] sm:$0xff]
    %v356 = vld [vmem:[#allocation9 + $0x28] sm:$0xff]
    %v357 = vld [vmem:[#allocation9 + $0x30] sm:$0xff]
    %v358 = vld [vmem:[#allocation9 + $0x38] sm:$0xff]
    %v359 = vld [vmem:[#allocation9 + $0x40] sm:$0xff]
    %v360 = vld [vmem:[#allocation9 + $0x48] sm:$0xff]
    %v361 = vld [vmem:[#allocation9 + $0x50] sm:$0xff]
    %v362 = vld [vmem:[#allocation9 + $0x58] sm:$0xff]
    %v363 = vld [vmem:[#allocation9 + $0x60] sm:$0xff]
    %v364 = vld [vmem:[#allocation9 + $0x68] sm:$0xff]
    %v365 = vld [vmem:[#allocation9 + $0x70] sm:$0xff]
    %v366 = vld [vmem:[#allocation9 + $0x78] sm:$0xff]
    %v367 = vld [vmem:[#allocation9 + $0x80] sm:$0xff]
    %v368 = vld [vmem:[#allocation9 + $0x88] sm:$0xff]
    %v369 = vld [vmem:[#allocation9 + $0x90] sm:$0xff]
    %v370 = vld [vmem:[#allocation9 + $0x98] sm:$0xff]
    %v371 = vld [vmem:[#allocation9 + $0xa0] sm:$0xff]
    %v372 = vld [vmem:[#allocation9 + $0xa8] sm:$0xff]
    %v373 = vld [vmem:[#allocation9 + $0xb0] sm:$0xff]
    %v374 = vld [vmem:[#allocation9 + $0xb8] sm:$0xff]
    %v375 = vld [vmem:[#allocation9 + $0xc0] sm:$0xff]
    %v376 = vld [vmem:[#allocation9 + $0xc8] sm:$0xff]
    %v377 = vld [vmem:[#allocation9 + $0xd0] sm:$0xff]
    %v378 = vld [vmem:[#allocation9 + $0xd8] sm:$0xff]
    %v379 = vld [vmem:[#allocation9 + $0xe0] sm:$0xff]
    %v380 = vld [vmem:[#allocation9 + $0xe8] sm:$0xff]
    %v381 = vld [vmem:[#allocation9 + $0xf0] sm:$0xff]
    %v382 = vld [vmem:[#allocation9 + $0xf8] sm:$0xff]
    %v383 = vld [vmem:[#allocation9 + $0x100] sm:$0xff]
    %v384 = vld [vmem:[#allocation9 + $0x108] sm:$0xff]
    %v385 = vld [vmem:[#allocation9 + $0x110] sm:$0xff]
    %v386 = vld [vmem:[#allocation9 + $0x118] sm:$0xff]
    %v387 = vld [vmem:[#allocation9 + $0x120] sm:$0xff]
    %v388 = vld [vmem:[#allocation9 + $0x128] sm:$0xff]
    %v389 = vld [vmem:[#allocation9 + $0x130] sm:$0xff]
    %v390 = vld [vmem:[#allocation9 + $0x138] sm:$0xff]
    %v391 = vld [vmem:[#allocation9 + $0x140] sm:$0xff]
    %v392 = vld [vmem:[#allocation9 + $0x148] sm:$0xff]
    %v393 = vld [vmem:[#allocation9 + $0x150] sm:$0xff]
    %v394 = vld [vmem:[#allocation9 + $0x158] sm:$0xff]
    %v395 = vld [vmem:[#allocation9 + $0x160] sm:$0xff]
    %v396 = vld [vmem:[#allocation9 + $0x168] sm:$0xff]
    %v397 = vld [vmem:[#allocation9 + $0x170] sm:$0xff]
    %v398 = vld [vmem:[#allocation9 + $0x178] sm:$0xff]
    %v399 = vld [vmem:[#allocation9 + $0x180] sm:$0xff]
    %v400 = vld [vmem:[#allocation9 + $0x188] sm:$0xff]
    %v401 = vld [vmem:[#allocation9 + $0x190] sm:$0xff]
    %v402 = vld [vmem:[#allocation9 + $0x198] sm:$0xff]
    %v403 = vld [vmem:[#allocation9 + $0x1a0] sm:$0xff]
    %v404 = vld [vmem:[#allocation9 + $0x1a8] sm:$0xff]
    %v405 = vld [vmem:[#allocation9 + $0x1b0] sm:$0xff]
    %v406 = vld [vmem:[#allocation9 + $0x1b8] sm:$0xff]
    %v407 = vld [vmem:[#allocation9 + $0x1c0] sm:$0xff]
    %v408 = vld [vmem:[#allocation9 + $0x1c8] sm:$0xff]
    %v409 = vld [vmem:[#allocation9 + $0x1d0] sm:$0xff]
    %v410 = vld [vmem:[#allocation9 + $0x1d8] sm:$0xff]
    %v411 = vld [vmem:[#allocation9 + $0x1e0] sm:$0xff]
    %v412 = vld [vmem:[#allocation9 + $0x1e8] sm:$0xff]
    %v413 = vld [vmem:[#allocation9 + $0x1f0] sm:$0xff]
    %v414 = vld [vmem:[#allocation9 + $0x1f8] sm:$0xff]
    %v415 = vld [vmem:[#allocation10] sm:$0xff]
    %v417 = vperm.slane %v415, 0
    %v418 = vperm.slane %v415, 1
    %v419 = vperm.slane %v415, 2
    %v420 = vperm.slane %v415, 3
    %v421 = vperm.slane %v415, 4
    %v422 = vperm.slane %v415, 5
    %v423 = vperm.slane %v415, 6
    %v424 = vperm.slane %v415, 7
    %v497 = vunpack.c.l.b16 %v351
    %v498 = vunpack.c.h.b16 %v351
    %v499 = vunpack.c.l.b16 %v352
    %v500 = vunpack.c.h.b16 %v352
    %v501 = vunpack.c.l.b16 %v353
    %v502 = vunpack.c.h.b16 %v353
    %v503 = vunpack.c.l.b16 %v354
    %v504 = vunpack.c.h.b16 %v354
    %v505 = vunpack.c.l.b16 %v355
    %v506 = vunpack.c.h.b16 %v355
    %v507 = vunpack.c.l.b16 %v356
    %v508 = vunpack.c.h.b16 %v356
    %v509 = vunpack.c.l.b16 %v357
    %v510 = vunpack.c.h.b16 %v357
    %v511 = vunpack.c.l.b16 %v358
    %v512 = vunpack.c.h.b16 %v358
    %v513 = vunpack.c.l.b16 %v359
    %v514 = vunpack.c.h.b16 %v359
    %v515 = vunpack.c.l.b16 %v360
    %v516 = vunpack.c.h.b16 %v360
    %v517 = vunpack.c.l.b16 %v361
    %v518 = vunpack.c.h.b16 %v361
    %v519 = vunpack.c.l.b16 %v362
    %v520 = vunpack.c.h.b16 %v362
    %v521 = vunpack.c.l.b16 %v363
    %v522 = vunpack.c.h.b16 %v363
    %v523 = vunpack.c.l.b16 %v364
    %v524 = vunpack.c.h.b16 %v364
    %v525 = vunpack.c.l.b16 %v365
    %v526 = vunpack.c.h.b16 %v365
    %v527 = vunpack.c.l.b16 %v366
    %v528 = vunpack.c.h.b16 %v366
    %v529 = vunpack.c.l.b16 %v367
    %v530 = vunpack.c.h.b16 %v367
    %v531 = vunpack.c.l.b16 %v368
    %v532 = vunpack.c.h.b16 %v368
    %v533 = vunpack.c.l.b16 %v369
    %v534 = vunpack.c.h.b16 %v369
    %v535 = vunpack.c.l.b16 %v370
    %v536 = vunpack.c.h.b16 %v370
    %v537 = vunpack.c.l.b16 %v371
    %v538 = vunpack.c.h.b16 %v371
    %v539 = vunpack.c.l.b16 %v372
    %v540 = vunpack.c.h.b16 %v372
    %v541 = vunpack.c.l.b16 %v373
    %v542 = vunpack.c.h.b16 %v373
    %v543 = vunpack.c.l.b16 %v374
    %v544 = vunpack.c.h.b16 %v374
    %v545 = vunpack.c.l.b16 %v375
    %v546 = vunpack.c.h.b16 %v375
    %v547 = vunpack.c.l.b16 %v376
    %v548 = vunpack.c.h.b16 %v376
    %v549 = vunpack.c.l.b16 %v377
    %v550 = vunpack.c.h.b16 %v377
    %v551 = vunpack.c.l.b16 %v378
    %v552 = vunpack.c.h.b16 %v378
    %v553 = vunpack.c.l.b16 %v379
    %v554 = vunpack.c.h.b16 %v379
    %v555 = vunpack.c.l.b16 %v380
    %v556 = vunpack.c.h.b16 %v380
    %v557 = vunpack.c.l.b16 %v381
    %v558 = vunpack.c.h.b16 %v381
    %v559 = vunpack.c.l.b16 %v382
    %v560 = vunpack.c.h.b16 %v382
    %v561 = vunpack.c.l.b16 %v383
    %v562 = vunpack.c.h.b16 %v383
    %v563 = vunpack.c.l.b16 %v384
    %v564 = vunpack.c.h.b16 %v384
    %v565 = vunpack.c.l.b16 %v385
    %v566 = vunpack.c.h.b16 %v385
    %v567 = vunpack.c.l.b16 %v386
    %v568 = vunpack.c.h.b16 %v386
    %v569 = vunpack.c.l.b16 %v387
    %v570 = vunpack.c.h.b16 %v387
    %v571 = vunpack.c.l.b16 %v388
    %v572 = vunpack.c.h.b16 %v388
    %v573 = vunpack.c.l.b16 %v389
    %v574 = vunpack.c.h.b16 %v389
    %v575 = vunpack.c.l.b16 %v390
    %v576 = vunpack.c.h.b16 %v390
    %v577 = vunpack.c.l.b16 %v391
    %v578 = vunpack.c.h.b16 %v391
    %v579 = vunpack.c.l.b16 %v392
    %v580 = vunpack.c.h.b16 %v392
    %v581 = vunpack.c.l.b16 %v393
    %v582 = vunpack.c.h.b16 %v393
    %v583 = vunpack.c.l.b16 %v394
    %v584 = vunpack.c.h.b16 %v394
    %v585 = vunpack.c.l.b16 %v395
    %v586 = vunpack.c.h.b16 %v395
    %v587 = vunpack.c.l.b16 %v396
    %v588 = vunpack.c.h.b16 %v396
    %v589 = vunpack.c.l.b16 %v397
    %v590 = vunpack.c.h.b16 %v397
    %v591 = vunpack.c.l.b16 %v398
    %v592 = vunpack.c.h.b16 %v398
    %v593 = vunpack.c.l.b16 %v399
    %v594 = vunpack.c.h.b16 %v399
    %v595 = vunpack.c.l.b16 %v400
    %v596 = vunpack.c.h.b16 %v400
    %v597 = vunpack.c.l.b16 %v401
    %v598 = vunpack.c.h.b16 %v401
    %v599 = vunpack.c.l.b16 %v402
    %v600 = vunpack.c.h.b16 %v402
    %v601 = vunpack.c.l.b16 %v403
    %v602 = vunpack.c.h.b16 %v403
    %v603 = vunpack.c.l.b16 %v404
    %v604 = vunpack.c.h.b16 %v404
    %v605 = vunpack.c.l.b16 %v405
    %v606 = vunpack.c.h.b16 %v405
    %v607 = vunpack.c.l.b16 %v406
    %v608 = vunpack.c.h.b16 %v406
    %v609 = vunpack.c.l.b16 %v407
    %v610 = vunpack.c.h.b16 %v407
    %v611 = vunpack.c.l.b16 %v408
    %v612 = vunpack.c.h.b16 %v408
    %v613 = vunpack.c.l.b16 %v409
    %v614 = vunpack.c.h.b16 %v409
    %v615 = vunpack.c.l.b16 %v410
    %v616 = vunpack.c.h.b16 %v410
    %v617 = vunpack.c.l.b16 %v411
    %v618 = vunpack.c.h.b16 %v411
    %v619 = vunpack.c.l.b16 %v412
    %v620 = vunpack.c.h.b16 %v412
    %v621 = vunpack.c.l.b16 %v413
    %v622 = vunpack.c.h.b16 %v413
    %v623 = vunpack.c.l.b16 %v414
    %v624 = vunpack.c.h.b16 %v414
    %v625 = vpack.c.b16 %v505, %v497
    %v626 = vpack.c.b16 %v506, %v498
    %v627 = vpack.c.b16 %v507, %v499
    %v628 = vpack.c.b16 %v508, %v500
    %v629 = vpack.c.b16 %v509, %v501
    %v630 = vpack.c.b16 %v510, %v502
    %v631 = vpack.c.b16 %v511, %v503
    %v632 = vpack.c.b16 %v512, %v504
    %v633 = vpack.c.b16 %v521, %v513
    %v634 = vpack.c.b16 %v522, %v514
    %v635 = vpack.c.b16 %v523, %v515
    %v636 = vpack.c.b16 %v524, %v516
    %v637 = vpack.c.b16 %v525, %v517
    %v638 = vpack.c.b16 %v526, %v518
    %v639 = vpack.c.b16 %v527, %v519
    %v640 = vpack.c.b16 %v528, %v520
    %v641 = vpack.c.b16 %v537, %v529
    %v642 = vpack.c.b16 %v538, %v530
    %v643 = vpack.c.b16 %v539, %v531
    %v644 = vpack.c.b16 %v540, %v532
    %v645 = vpack.c.b16 %v541, %v533
    %v646 = vpack.c.b16 %v542, %v534
    %v647 = vpack.c.b16 %v543, %v535
    %v648 = vpack.c.b16 %v544, %v536
    %v649 = vpack.c.b16 %v553, %v545
    %v650 = vpack.c.b16 %v554, %v546
    %v651 = vpack.c.b16 %v555, %v547
    %v652 = vpack.c.b16 %v556, %v548
    %v653 = vpack.c.b16 %v557, %v549
    %v654 = vpack.c.b16 %v558, %v550
    %v655 = vpack.c.b16 %v559, %v551
    %v656 = vpack.c.b16 %v560, %v552
    %v657 = vpack.c.b16 %v569, %v561
    %v658 = vpack.c.b16 %v570, %v562
    %v659 = vpack.c.b16 %v571, %v563
    %v660 = vpack.c.b16 %v572, %v564
    %v661 = vpack.c.b16 %v573, %v565
    %v662 = vpack.c.b16 %v574, %v566
    %v663 = vpack.c.b16 %v575, %v567
    %v664 = vpack.c.b16 %v576, %v568
    %v665 = vpack.c.b16 %v585, %v577
    %v666 = vpack.c.b16 %v586, %v578
    %v667 = vpack.c.b16 %v587, %v579
    %v668 = vpack.c.b16 %v588, %v580
    %v669 = vpack.c.b16 %v589, %v581
    %v670 = vpack.c.b16 %v590, %v582
    %v671 = vpack.c.b16 %v591, %v583
    %v672 = vpack.c.b16 %v592, %v584
    %v673 = vpack.c.b16 %v601, %v593
    %v674 = vpack.c.b16 %v602, %v594
    %v675 = vpack.c.b16 %v603, %v595
    %v676 = vpack.c.b16 %v604, %v596
    %v677 = vpack.c.b16 %v605, %v597
    %v678 = vpack.c.b16 %v606, %v598
    %v679 = vpack.c.b16 %v607, %v599
    %v680 = vpack.c.b16 %v608, %v600
    %v681 = vpack.c.b16 %v617, %v609
    %v682 = vpack.c.b16 %v618, %v610
    %v683 = vpack.c.b16 %v619, %v611
    %v684 = vpack.c.b16 %v620, %v612
    %v685 = vpack.c.b16 %v621, %v613
    %v686 = vpack.c.b16 %v622, %v614
    %v687 = vpack.c.b16 %v623, %v615
    %v688 = vpack.c.b16 %v624, %v616
    %753 = vmatpush.bf16.msra.mxu0 %v681
    %754 = vmatpush.bf16.msra.mxu0 %v673
    %755 = vmatpush.bf16.msra.mxu0 %v665
    %756 = vmatpush.bf16.msra.mxu0 %v657
    %757 = vmatpush.bf16.msra.mxu0 %v649
    %758 = vmatpush.bf16.msra.mxu0 %v641
    %759 = vmatpush.bf16.msra.mxu0 %v633
    %760 = vmatpush.bf16.msra.mxu0 %v625
    %761 = vmatmul.bf16.gmra.mxu0 %v350
    %v762 = vpop.f32.mrf.mxu0
    %v763 = vadd.f32 %v417, %v762
    %v764 = vpop.f32.mrf.mxu0
    %v765 = vadd.f32 %v417, %v764
    %766 = vdwg.mxu0
    %767 = vmatpush.bf16.msra.mxu0 %v682
    %768 = vmatpush.bf16.msra.mxu0 %v674
    %769 = vmatpush.bf16.msra.mxu0 %v666
    %770 = vmatpush.bf16.msra.mxu0 %v658
    %771 = vmatpush.bf16.msra.mxu0 %v650
    %772 = vmatpush.bf16.msra.mxu0 %v642
    %773 = vmatpush.bf16.msra.mxu0 %v634
    %774 = vmatpush.bf16.msra.mxu0 %v626
    %775 = vmatmul.bf16.gmra.mxu0 %v350
    %v776 = vpop.f32.mrf.mxu0
    %v777 = vadd.f32 %v418, %v776
    %v778 = vpop.f32.mrf.mxu0
    %v779 = vadd.f32 %v418, %v778
    %780 = vdwg.mxu0
    %781 = vmatpush.bf16.msra.mxu0 %v683
    %782 = vmatpush.bf16.msra.mxu0 %v675
    %783 = vmatpush.bf16.msra.mxu0 %v667
    %784 = vmatpush.bf16.msra.mxu0 %v659
    %785 = vmatpush.bf16.msra.mxu0 %v651
    %786 = vmatpush.bf16.msra.mxu0 %v643
    %787 = vmatpush.bf16.msra.mxu0 %v635
    %788 = vmatpush.bf16.msra.mxu0 %v627
    %789 = vmatmul.bf16.gmra.mxu0 %v350
    %v790 = vpop.f32.mrf.mxu0
    %v791 = vadd.f32 %v419, %v790
    %v792 = vpop.f32.mrf.mxu0
    %v793 = vadd.f32 %v419, %v792
    %794 = vdwg.mxu0
    %795 = vmatpush.bf16.msra.mxu0 %v684
    %796 = vmatpush.bf16.msra.mxu0 %v676
    %797 = vmatpush.bf16.msra.mxu0 %v668
    %798 = vmatpush.bf16.msra.mxu0 %v660
    %799 = vmatpush.bf16.msra.mxu0 %v652
    %800 = vmatpush.bf16.msra.mxu0 %v644
    %801 = vmatpush.bf16.msra.mxu0 %v636
    %802 = vmatpush.bf16.msra.mxu0 %v628
    %803 = vmatmul.bf16.gmra.mxu0 %v350
    %v804 = vpop.f32.mrf.mxu0
    %v805 = vadd.f32 %v420, %v804
    %v806 = vpop.f32.mrf.mxu0
    %v807 = vadd.f32 %v420, %v806
    %808 = vdwg.mxu0
    %809 = vmatpush.bf16.msra.mxu0 %v685
    %810 = vmatpush.bf16.msra.mxu0 %v677
    %811 = vmatpush.bf16.msra.mxu0 %v669
    %812 = vmatpush.bf16.msra.mxu0 %v661
    %813 = vmatpush.bf16.msra.mxu0 %v653
    %814 = vmatpush.bf16.msra.mxu0 %v645
    %815 = vmatpush.bf16.msra.mxu0 %v637
    %816 = vmatpush.bf16.msra.mxu0 %v629
    %817 = vmatmul.bf16.gmra.mxu0 %v350
    %v818 = vpop.f32.mrf.mxu0
    %v819 = vadd.f32 %v421, %v818
    %v820 = vpop.f32.mrf.mxu0
    %v821 = vadd.f32 %v421, %v820
    %822 = vdwg.mxu0
    %823 = vmatpush.bf16.msra.mxu0 %v686
    %824 = vmatpush.bf16.msra.mxu0 %v678
    %825 = vmatpush.bf16.msra.mxu0 %v670
    %826 = vmatpush.bf16.msra.mxu0 %v662
    %827 = vmatpush.bf16.msra.mxu0 %v654
    %828 = vmatpush.bf16.msra.mxu0 %v646
    %829 = vmatpush.bf16.msra.mxu0 %v638
    %830 = vmatpush.bf16.msra.mxu0 %v630
    %831 = vmatmul.bf16.gmra.mxu0 %v350
    %v832 = vpop.f32.mrf.mxu0
    %v833 = vadd.f32 %v422, %v832
    %v834 = vpop.f32.mrf.mxu0
    %v835 = vadd.f32 %v422, %v834
    %836 = vdwg.mxu0
    %837 = vmatpush.bf16.msra.mxu0 %v687
    %838 = vmatpush.bf16.msra.mxu0 %v679
    %839 = vmatpush.bf16.msra.mxu0 %v671
    %840 = vmatpush.bf16.msra.mxu0 %v663
    %841 = vmatpush.bf16.msra.mxu0 %v655
    %842 = vmatpush.bf16.msra.mxu0 %v647
    %843 = vmatpush.bf16.msra.mxu0 %v639
    %844 = vmatpush.bf16.msra.mxu0 %v631
    %845 = vmatmul.bf16.gmra.mxu0 %v350
    %v846 = vpop.f32.mrf.mxu0
    %v847 = vadd.f32 %v423, %v846
    %v848 = vpop.f32.mrf.mxu0
    %v849 = vadd.f32 %v423, %v848
    %850 = vdwg.mxu0
    %851 = vmatpush.bf16.msra.mxu0 %v688
    %852 = vmatpush.bf16.msra.mxu0 %v680
    %853 = vmatpush.bf16.msra.mxu0 %v672
    %854 = vmatpush.bf16.msra.mxu0 %v664
    %855 = vmatpush.bf16.msra.mxu0 %v656
    %856 = vmatpush.bf16.msra.mxu0 %v648
    %857 = vmatpush.bf16.msra.mxu0 %v640
    %858 = vmatpush.bf16.msra.mxu0 %v632
    %859 = vmatmul.bf16.gmra.mxu0 %v350
    %v860 = vpop.f32.mrf.mxu0
    %v861 = vadd.f32 %v424, %v860
    %v862 = vpop.f32.mrf.mxu0
    %v863 = vadd.f32 %v424, %v862
    %864 = vdwg.mxu0
    %v865 = vmax.f32 %v763, 0.0
    %v866 = vmax.f32 %v777, 0.0
    %v867 = vmax.f32 %v791, 0.0
    %v868 = vmax.f32 %v805, 0.0
    %v869 = vmax.f32 %v819, 0.0
    %v870 = vmax.f32 %v833, 0.0
    %v871 = vmax.f32 %v847, 0.0
    %v872 = vmax.f32 %v861, 0.0
    %v873 = vmax.f32 %v765, 0.0
    %v874 = vmax.f32 %v779, 0.0
    %v875 = vmax.f32 %v793, 0.0
    %v876 = vmax.f32 %v807, 0.0
    %v877 = vmax.f32 %v821, 0.0
    %v878 = vmax.f32 %v835, 0.0
    %v879 = vmax.f32 %v849, 0.0
    %v880 = vmax.f32 %v863, 0.0
    %v881 = vpack.c.bf16 %v866, %v865
    %v882 = vpack.c.bf16 %v868, %v867
    %v883 = vpack.c.bf16 %v870, %v869
    %v884 = vpack.c.bf16 %v872, %v871
    %v885 = vpack.c.bf16 %v874, %v873
    %v886 = vpack.c.bf16 %v876, %v875
    %v887 = vpack.c.bf16 %v878, %v877
    %v888 = vpack.c.bf16 %v880, %v879
    %889 = vst [vmem:[%s8] sm:$0xff] %v881
    %890 = vst [vmem:[%s8 + $0x8] sm:$0xff] %v882
    %891 = vst [vmem:[%s8 + $0x10] sm:$0xff] %v883
    %892 = vst [vmem:[%s8 + $0x18] sm:$0xff] %v884
    %893 = vst [vmem:[%s8 + $0x20] sm:$0xff] %v885
    %894 = vst [vmem:[%s8 + $0x28] sm:$0xff] %v886
    %895 = vst [vmem:[%s8 + $0x30] sm:$0xff] %v887
    %896 = vst [vmem:[%s8 + $0x38] sm:$0xff] %v888
    // Predicated region
    $region58: #{eeg_generator_forward.4} parent=1 // pred_check
      _
    $region59: #{eeg_generator_forward.4} parent=1 // pred_check_branch
      %898 = sbr.rel (0) target = $region61
    $region60: #{eeg_generator_forward.4} parent=1 // pred_region
      _
    $region61: #{eeg_generator_forward.4} parent=1 // pred_fallthru
      _
    // Predicated region
    $region62: #{eeg_generator_forward.4} parent=1 // pred_check
      _
    $region63: #{eeg_generator_forward.4} parent=1 // pred_check_branch
      %900 = sbr.rel (0) target = $region65
    $region64: #{eeg_generator_forward.4} parent=1 // pred_region
      _
    $region65: #{eeg_generator_forward.4} parent=1 // pred_fallthru
      _
    %901 = vsyncpa [#allocation3], 1
    %902 = vsyncpa [#allocation5], 1
    %903 = vsyncpa [#allocation8], 1
    %904 = vsyncpa [#allocation11], 1

// kernel: eeg_generator_forward.5
$region0: #{eeg_generator_forward.5}
  #allocation0 [shape = 'u32[]', space=smem, size = 0x4, offset = 0x4, fixed_abs, tag = 'smem constant byte address 0x4 - core index']
  #allocation1 [shape = 'u32[72,128]{1,0:T(1,128)}', space=vmem, size = 0x9000, scoped, tag = 'internal scratch']
  %s0 = inlined_call_operand.vmem [shape: bf16[32,1024], index: 0, kind: input, shape index: {}]
  %s1 = inlined_call_operand.vmem [shape: bf16[1024,128], index: 1, kind: input, shape index: {}]
  %s2 = inlined_call_operand.vmem [shape: f32[32,1], index: 2, kind: input, shape index: {}]
  %s3 = inlined_call_operand.vmem [shape: bf16[32,128], index: 3, kind: output, shape index: {}]
  %s4 = sld [smem:[#allocation0]]
  $region22: #{eeg_generator_forward.5} parent=0
    _
  %s6 = ssub.s32 1, %s4
  %s7 = scalar_select 0, %s6, %s4
  // Predicated region
  $region2: #{eeg_generator_forward.5} parent=0 // pred_check
    _
  $region3: #{eeg_generator_forward.5} parent=0 // pred_check_branch
    %9 = sbr.rel (0) target = $region5
  $region4: #{eeg_generator_forward.5} parent=0 // pred_region
    _
  $region5: #{eeg_generator_forward.5} parent=0 // pred_fallthru
    _
  // Predicated region
  $region6: #{eeg_generator_forward.5} parent=0 // pred_check
    _
  $region7: #{eeg_generator_forward.5} parent=0 // pred_check_branch
    %11 = sbr.rel (0) target = $region9
  $region8: #{eeg_generator_forward.5} parent=0 // pred_region
    _
  $region9: #{eeg_generator_forward.5} parent=0 // pred_fallthru
    _
  // Predicated region
  $region10: #{eeg_generator_forward.5} parent=0 // pred_check
    _
  $region11: #{eeg_generator_forward.5} parent=0 // pred_check_branch
    %13 = sbr.rel (0) target = $region13
  $region12: #{eeg_generator_forward.5} parent=0 // pred_region
    _
  $region13: #{eeg_generator_forward.5} parent=0 // pred_fallthru
    _
  %v14 = vld [vmem:[%s0] sm:$0xff]
  %v15 = vld [vmem:[%s0 + $0x8] sm:$0xff]
  %v16 = vld [vmem:[%s0 + $0x10] sm:$0xff]
  %v17 = vld [vmem:[%s0 + $0x18] sm:$0xff]
  %v18 = vld [vmem:[%s0 + $0x20] sm:$0xff]
  %v19 = vld [vmem:[%s0 + $0x28] sm:$0xff]
  %v20 = vld [vmem:[%s0 + $0x30] sm:$0xff]
  %v21 = vld [vmem:[%s0 + $0x38] sm:$0xff]
  %v22 = vld [vmem:[%s0 + $0x40] sm:$0xff]
  %v23 = vld [vmem:[%s0 + $0x48] sm:$0xff]
  %v24 = vld [vmem:[%s0 + $0x50] sm:$0xff]
  %v25 = vld [vmem:[%s0 + $0x58] sm:$0xff]
  %v26 = vld [vmem:[%s0 + $0x60] sm:$0xff]
  %v27 = vld [vmem:[%s0 + $0x68] sm:$0xff]
  %v28 = vld [vmem:[%s0 + $0x70] sm:$0xff]
  %v29 = vld [vmem:[%s0 + $0x78] sm:$0xff]
  %v30 = vld [vmem:[%s1] sm:$0xf]
  %v31 = vld [vmem:[%s1 + $0x4] sm:$0xf]
  %v32 = vld [vmem:[%s1 + $0x8] sm:$0xf]
  %v33 = vld [vmem:[%s1 + $0xc] sm:$0xf]
  %v34 = vld [vmem:[%s1 + $0x10] sm:$0xf]
  %v35 = vld [vmem:[%s1 + $0x14] sm:$0xf]
  %v36 = vld [vmem:[%s1 + $0x18] sm:$0xf]
  %v37 = vld [vmem:[%s1 + $0x1c] sm:$0xf]
  %v38 = vld [vmem:[%s1 + $0x20] sm:$0xf]
  %v39 = vld [vmem:[%s1 + $0x24] sm:$0xf]
  %v40 = vld [vmem:[%s1 + $0x28] sm:$0xf]
  %v41 = vld [vmem:[%s1 + $0x2c] sm:$0xf]
  %v42 = vld [vmem:[%s1 + $0x30] sm:$0xf]
  %v43 = vld [vmem:[%s1 + $0x34] sm:$0xf]
  %v44 = vld [vmem:[%s1 + $0x38] sm:$0xf]
  %v45 = vld [vmem:[%s1 + $0x3c] sm:$0xf]
  %v46 = vld [vmem:[%s1 + $0x40] sm:$0xf]
  %v47 = vld [vmem:[%s1 + $0x44] sm:$0xf]
  %v48 = vld [vmem:[%s1 + $0x48] sm:$0xf]
  %v49 = vld [vmem:[%s1 + $0x4c] sm:$0xf]
  %v50 = vld [vmem:[%s1 + $0x50] sm:$0xf]
  %v51 = vld [vmem:[%s1 + $0x54] sm:$0xf]
  %v52 = vld [vmem:[%s1 + $0x58] sm:$0xf]
  %v53 = vld [vmem:[%s1 + $0x5c] sm:$0xf]
  %v54 = vld [vmem:[%s1 + $0x60] sm:$0xf]
  %v55 = vld [vmem:[%s1 + $0x64] sm:$0xf]
  %v56 = vld [vmem:[%s1 + $0x68] sm:$0xf]
  %v57 = vld [vmem:[%s1 + $0x6c] sm:$0xf]
  %v58 = vld [vmem:[%s1 + $0x70] sm:$0xf]
  %v59 = vld [vmem:[%s1 + $0x74] sm:$0xf]
  %v60 = vld [vmem:[%s1 + $0x78] sm:$0xf]
  %v61 = vld [vmem:[%s1 + $0x7c] sm:$0xf]
  %v62 = vld [vmem:[%s1 + $0x80] sm:$0xf]
  %v63 = vld [vmem:[%s1 + $0x84] sm:$0xf]
  %v64 = vld [vmem:[%s1 + $0x88] sm:$0xf]
  %v65 = vld [vmem:[%s1 + $0x8c] sm:$0xf]
  %v66 = vld [vmem:[%s1 + $0x90] sm:$0xf]
  %v67 = vld [vmem:[%s1 + $0x94] sm:$0xf]
  %v68 = vld [vmem:[%s1 + $0x98] sm:$0xf]
  %v69 = vld [vmem:[%s1 + $0x9c] sm:$0xf]
  %v70 = vld [vmem:[%s1 + $0xa0] sm:$0xf]
  %v71 = vld [vmem:[%s1 + $0xa4] sm:$0xf]
  %v72 = vld [vmem:[%s1 + $0xa8] sm:$0xf]
  %v73 = vld [vmem:[%s1 + $0xac] sm:$0xf]
  %v74 = vld [vmem:[%s1 + $0xb0] sm:$0xf]
  %v75 = vld [vmem:[%s1 + $0xb4] sm:$0xf]
  %v76 = vld [vmem:[%s1 + $0xb8] sm:$0xf]
  %v77 = vld [vmem:[%s1 + $0xbc] sm:$0xf]
  %v78 = vld [vmem:[%s1 + $0xc0] sm:$0xf]
  %v79 = vld [vmem:[%s1 + $0xc4] sm:$0xf]
  %v80 = vld [vmem:[%s1 + $0xc8] sm:$0xf]
  %v81 = vld [vmem:[%s1 + $0xcc] sm:$0xf]
  %v82 = vld [vmem:[%s1 + $0xd0] sm:$0xf]
  %v83 = vld [vmem:[%s1 + $0xd4] sm:$0xf]
  %v84 = vld [vmem:[%s1 + $0xd8] sm:$0xf]
  %v85 = vld [vmem:[%s1 + $0xdc] sm:$0xf]
  %v86 = vld [vmem:[%s1 + $0xe0] sm:$0xf]
  %v87 = vld [vmem:[%s1 + $0xe4] sm:$0xf]
  %v88 = vld [vmem:[%s1 + $0xe8] sm:$0xf]
  %v89 = vld [vmem:[%s1 + $0xec] sm:$0xf]
  %v90 = vld [vmem:[%s1 + $0xf0] sm:$0xf]
  %v91 = vld [vmem:[%s1 + $0xf4] sm:$0xf]
  %v92 = vld [vmem:[%s1 + $0xf8] sm:$0xf]
  %v93 = vld [vmem:[%s1 + $0xfc] sm:$0xf]
  %v94 = vld [vmem:[%s1 + $0x100] sm:$0xf]
  %v95 = vld [vmem:[%s1 + $0x104] sm:$0xf]
  %v96 = vld [vmem:[%s1 + $0x108] sm:$0xf]
  %v97 = vld [vmem:[%s1 + $0x10c] sm:$0xf]
  %v98 = vld [vmem:[%s1 + $0x110] sm:$0xf]
  %v99 = vld [vmem:[%s1 + $0x114] sm:$0xf]
  %v100 = vld [vmem:[%s1 + $0x118] sm:$0xf]
  %v101 = vld [vmem:[%s1 + $0x11c] sm:$0xf]
  %v102 = vld [vmem:[%s1 + $0x120] sm:$0xf]
  %v103 = vld [vmem:[%s1 + $0x124] sm:$0xf]
  %v104 = vld [vmem:[%s1 + $0x128] sm:$0xf]
  %v105 = vld [vmem:[%s1 + $0x12c] sm:$0xf]
  %v106 = vld [vmem:[%s1 + $0x130] sm:$0xf]
  %v107 = vld [vmem:[%s1 + $0x134] sm:$0xf]
  %v108 = vld [vmem:[%s1 + $0x138] sm:$0xf]
  %v109 = vld [vmem:[%s1 + $0x13c] sm:$0xf]
  %v110 = vld [vmem:[%s1 + $0x140] sm:$0xf]
  %v111 = vld [vmem:[%s1 + $0x144] sm:$0xf]
  %v112 = vld [vmem:[%s1 + $0x148] sm:$0xf]
  %v113 = vld [vmem:[%s1 + $0x14c] sm:$0xf]
  %v114 = vld [vmem:[%s1 + $0x150] sm:$0xf]
  %v115 = vld [vmem:[%s1 + $0x154] sm:$0xf]
  %v116 = vld [vmem:[%s1 + $0x158] sm:$0xf]
  %v117 = vld [vmem:[%s1 + $0x15c] sm:$0xf]
  %v118 = vld [vmem:[%s1 + $0x160] sm:$0xf]
  %v119 = vld [vmem:[%s1 + $0x164] sm:$0xf]
  %v120 = vld [vmem:[%s1 + $0x168] sm:$0xf]
  %v121 = vld [vmem:[%s1 + $0x16c] sm:$0xf]
  %v122 = vld [vmem:[%s1 + $0x170] sm:$0xf]
  %v123 = vld [vmem:[%s1 + $0x174] sm:$0xf]
  %v124 = vld [vmem:[%s1 + $0x178] sm:$0xf]
  %v125 = vld [vmem:[%s1 + $0x17c] sm:$0xf]
  %v126 = vld [vmem:[%s1 + $0x180] sm:$0xf]
  %v127 = vld [vmem:[%s1 + $0x184] sm:$0xf]
  %v128 = vld [vmem:[%s1 + $0x188] sm:$0xf]
  %v129 = vld [vmem:[%s1 + $0x18c] sm:$0xf]
  %v130 = vld [vmem:[%s1 + $0x190] sm:$0xf]
  %v131 = vld [vmem:[%s1 + $0x194] sm:$0xf]
  %v132 = vld [vmem:[%s1 + $0x198] sm:$0xf]
  %v133 = vld [vmem:[%s1 + $0x19c] sm:$0xf]
  %v134 = vld [vmem:[%s1 + $0x1a0] sm:$0xf]
  %v135 = vld [vmem:[%s1 + $0x1a4] sm:$0xf]
  %v136 = vld [vmem:[%s1 + $0x1a8] sm:$0xf]
  %v137 = vld [vmem:[%s1 + $0x1ac] sm:$0xf]
  %v138 = vld [vmem:[%s1 + $0x1b0] sm:$0xf]
  %v139 = vld [vmem:[%s1 + $0x1b4] sm:$0xf]
  %v140 = vld [vmem:[%s1 + $0x1b8] sm:$0xf]
  %v141 = vld [vmem:[%s1 + $0x1bc] sm:$0xf]
  %v142 = vld [vmem:[%s1 + $0x1c0] sm:$0xf]
  %v143 = vld [vmem:[%s1 + $0x1c4] sm:$0xf]
  %v144 = vld [vmem:[%s1 + $0x1c8] sm:$0xf]
  %v145 = vld [vmem:[%s1 + $0x1cc] sm:$0xf]
  %v146 = vld [vmem:[%s1 + $0x1d0] sm:$0xf]
  %v147 = vld [vmem:[%s1 + $0x1d4] sm:$0xf]
  %v148 = vld [vmem:[%s1 + $0x1d8] sm:$0xf]
  %v149 = vld [vmem:[%s1 + $0x1dc] sm:$0xf]
  %v150 = vld [vmem:[%s1 + $0x1e0] sm:$0xf]
  %v151 = vld [vmem:[%s1 + $0x1e4] sm:$0xf]
  %v152 = vld [vmem:[%s1 + $0x1e8] sm:$0xf]
  %v153 = vld [vmem:[%s1 + $0x1ec] sm:$0xf]
  %v154 = vld [vmem:[%s1 + $0x1f0] sm:$0xf]
  %v155 = vld [vmem:[%s1 + $0x1f4] sm:$0xf]
  %v156 = vld [vmem:[%s1 + $0x1f8] sm:$0xf]
  %v157 = vld [vmem:[%s1 + $0x1fc] sm:$0xf]
  %v158 = vld [vmem:[%s2] sm:$0xff]
  %v159 = vld [vmem:[%s2 + $0x8] sm:$0xff]
  %v160 = vld [vmem:[%s2 + $0x10] sm:$0xff]
  %v161 = vld [vmem:[%s2 + $0x18] sm:$0xff]
  %163 = vset.pattern.permute.xlu0 0
  %164 = vperm.xlu0 %163, %v158
  %v165 = vpop.permute.xlu0 %164
  %168 = vset.pattern.permute.xlu0 0
  %169 = vperm.xlu0 %168, %v159
  %v170 = vpop.permute.xlu0 %169
  %173 = vset.pattern.permute.xlu0 0
  %174 = vperm.xlu0 %173, %v160
  %v175 = vpop.permute.xlu0 %174
  %178 = vset.pattern.permute.xlu0 0
  %179 = vperm.xlu0 %178, %v161
  %v180 = vpop.permute.xlu0 %179
  %v198 = vunpack.c.l.b16 %v14
  %v199 = vunpack.c.h.b16 %v14
  %v200 = vunpack.c.l.b16 %v15
  %v201 = vunpack.c.h.b16 %v15
  %v202 = vunpack.c.l.b16 %v16
  %v203 = vunpack.c.h.b16 %v16
  %v204 = vunpack.c.l.b16 %v17
  %v205 = vunpack.c.h.b16 %v17
  %v206 = vunpack.c.l.b16 %v18
  %v207 = vunpack.c.h.b16 %v18
  %v208 = vunpack.c.l.b16 %v19
  %v209 = vunpack.c.h.b16 %v19
  %v210 = vunpack.c.l.b16 %v20
  %v211 = vunpack.c.h.b16 %v20
  %v212 = vunpack.c.l.b16 %v21
  %v213 = vunpack.c.h.b16 %v21
  %v214 = vunpack.c.l.b16 %v22
  %v215 = vunpack.c.h.b16 %v22
  %v216 = vunpack.c.l.b16 %v23
  %v217 = vunpack.c.h.b16 %v23
  %v218 = vunpack.c.l.b16 %v24
  %v219 = vunpack.c.h.b16 %v24
  %v220 = vunpack.c.l.b16 %v25
  %v221 = vunpack.c.h.b16 %v25
  %v222 = vunpack.c.l.b16 %v26
  %v223 = vunpack.c.h.b16 %v26
  %v224 = vunpack.c.l.b16 %v27
  %v225 = vunpack.c.h.b16 %v27
  %v226 = vunpack.c.l.b16 %v28
  %v227 = vunpack.c.h.b16 %v28
  %v228 = vunpack.c.l.b16 %v29
  %v229 = vunpack.c.h.b16 %v29
  %v230 = vpack.c.b16 %v206, %v198
  %v231 = vpack.c.b16 %v207, %v199
  %v232 = vpack.c.b16 %v208, %v200
  %v233 = vpack.c.b16 %v209, %v201
  %v234 = vpack.c.b16 %v210, %v202
  %v235 = vpack.c.b16 %v211, %v203
  %v236 = vpack.c.b16 %v212, %v204
  %v237 = vpack.c.b16 %v213, %v205
  %v238 = vpack.c.b16 %v222, %v214
  %v239 = vpack.c.b16 %v223, %v215
  %v240 = vpack.c.b16 %v224, %v216
  %v241 = vpack.c.b16 %v225, %v217
  %v242 = vpack.c.b16 %v226, %v218
  %v243 = vpack.c.b16 %v227, %v219
  %v244 = vpack.c.b16 %v228, %v220
  %v245 = vpack.c.b16 %v229, %v221
  %v390 = vunpack.c.l.b16 %v30
  %v391 = vunpack.c.l.b16 %v31
  %v392 = vunpack.c.l.b16 %v32
  %v393 = vunpack.c.l.b16 %v33
  %v394 = vunpack.c.l.b16 %v34
  %v395 = vunpack.c.l.b16 %v35
  %v396 = vunpack.c.l.b16 %v36
  %v397 = vunpack.c.l.b16 %v37
  %v398 = vunpack.c.l.b16 %v38
  %v399 = vunpack.c.l.b16 %v39
  %v400 = vunpack.c.l.b16 %v40
  %v401 = vunpack.c.l.b16 %v41
  %v402 = vunpack.c.l.b16 %v42
  %v403 = vunpack.c.l.b16 %v43
  %v404 = vunpack.c.l.b16 %v44
  %v405 = vunpack.c.l.b16 %v45
  %v406 = vunpack.c.l.b16 %v46
  %v407 = vunpack.c.l.b16 %v47
  %v408 = vunpack.c.l.b16 %v48
  %v409 = vunpack.c.l.b16 %v49
  %v410 = vunpack.c.l.b16 %v50
  %v411 = vunpack.c.l.b16 %v51
  %v412 = vunpack.c.l.b16 %v52
  %v413 = vunpack.c.l.b16 %v53
  %v414 = vunpack.c.l.b16 %v54
  %v415 = vunpack.c.l.b16 %v55
  %v416 = vunpack.c.l.b16 %v56
  %v417 = vunpack.c.l.b16 %v57
  %v418 = vunpack.c.l.b16 %v58
  %v419 = vunpack.c.l.b16 %v59
  %v420 = vunpack.c.l.b16 %v60
  %v421 = vunpack.c.l.b16 %v61
  %v422 = vunpack.c.l.b16 %v62
  %v423 = vunpack.c.l.b16 %v63
  %v424 = vunpack.c.l.b16 %v64
  %v425 = vunpack.c.l.b16 %v65
  %v426 = vunpack.c.l.b16 %v66
  %v427 = vunpack.c.l.b16 %v67
  %v428 = vunpack.c.l.b16 %v68
  %v429 = vunpack.c.l.b16 %v69
  %v430 = vunpack.c.l.b16 %v70
  %v431 = vunpack.c.l.b16 %v71
  %v432 = vunpack.c.l.b16 %v72
  %v433 = vunpack.c.l.b16 %v73
  %v434 = vunpack.c.l.b16 %v74
  %v435 = vunpack.c.l.b16 %v75
  %v436 = vunpack.c.l.b16 %v76
  %v437 = vunpack.c.l.b16 %v77
  %v438 = vunpack.c.l.b16 %v78
  %v439 = vunpack.c.l.b16 %v79
  %v440 = vunpack.c.l.b16 %v80
  %v441 = vunpack.c.l.b16 %v81
  %v442 = vunpack.c.l.b16 %v82
  %v443 = vunpack.c.l.b16 %v83
  %v444 = vunpack.c.l.b16 %v84
  %v445 = vunpack.c.l.b16 %v85
  %v446 = vunpack.c.l.b16 %v86
  %v447 = vunpack.c.l.b16 %v87
  %v448 = vunpack.c.l.b16 %v88
  %v449 = vunpack.c.l.b16 %v89
  %v450 = vunpack.c.l.b16 %v90
  %v451 = vunpack.c.l.b16 %v91
  %v452 = vunpack.c.l.b16 %v92
  %v453 = vunpack.c.l.b16 %v93
  %v454 = vunpack.c.l.b16 %v94
  %v455 = vunpack.c.l.b16 %v95
  %v456 = vunpack.c.l.b16 %v96
  %v457 = vunpack.c.l.b16 %v97
  %v458 = vunpack.c.l.b16 %v98
  %v459 = vunpack.c.l.b16 %v99
  %v460 = vunpack.c.l.b16 %v100
  %v461 = vunpack.c.l.b16 %v101
  %v462 = vunpack.c.l.b16 %v102
  %v463 = vunpack.c.l.b16 %v103
  %v464 = vunpack.c.l.b16 %v104
  %v465 = vunpack.c.l.b16 %v105
  %v466 = vunpack.c.l.b16 %v106
  %v467 = vunpack.c.l.b16 %v107
  %v468 = vunpack.c.l.b16 %v108
  %v469 = vunpack.c.l.b16 %v109
  %v470 = vunpack.c.l.b16 %v110
  %v471 = vunpack.c.l.b16 %v111
  %v472 = vunpack.c.l.b16 %v112
  %v473 = vunpack.c.l.b16 %v113
  %v474 = vunpack.c.l.b16 %v114
  %v475 = vunpack.c.l.b16 %v115
  %v476 = vunpack.c.l.b16 %v116
  %v477 = vunpack.c.l.b16 %v117
  %v478 = vunpack.c.l.b16 %v118
  %v479 = vunpack.c.l.b16 %v119
  %v480 = vunpack.c.l.b16 %v120
  %v481 = vunpack.c.l.b16 %v121
  %v482 = vunpack.c.l.b16 %v122
  %v483 = vunpack.c.l.b16 %v123
  %v484 = vunpack.c.l.b16 %v124
  %v485 = vunpack.c.l.b16 %v125
  %v486 = vunpack.c.l.b16 %v126
  %v487 = vunpack.c.l.b16 %v127
  %v488 = vunpack.c.l.b16 %v128
  %v489 = vunpack.c.l.b16 %v129
  %v490 = vunpack.c.l.b16 %v130
  %v491 = vunpack.c.l.b16 %v131
  %v492 = vunpack.c.l.b16 %v132
  %v493 = vunpack.c.l.b16 %v133
  %v494 = vunpack.c.l.b16 %v134
  %v495 = vunpack.c.l.b16 %v135
  %v496 = vunpack.c.l.b16 %v136
  %v497 = vunpack.c.l.b16 %v137
  %v498 = vunpack.c.l.b16 %v138
  %v499 = vunpack.c.l.b16 %v139
  %v500 = vunpack.c.l.b16 %v140
  %v501 = vunpack.c.l.b16 %v141
  %v502 = vunpack.c.l.b16 %v142
  %v503 = vunpack.c.l.b16 %v143
  %v504 = vunpack.c.l.b16 %v144
  %v505 = vunpack.c.l.b16 %v145
  %v506 = vunpack.c.l.b16 %v146
  %v507 = vunpack.c.l.b16 %v147
  %v508 = vunpack.c.l.b16 %v148
  %v509 = vunpack.c.l.b16 %v149
  %v510 = vunpack.c.l.b16 %v150
  %v511 = vunpack.c.l.b16 %v151
  %v512 = vunpack.c.l.b16 %v152
  %v513 = vunpack.c.l.b16 %v153
  %v514 = vunpack.c.l.b16 %v154
  %v515 = vunpack.c.l.b16 %v155
  %v516 = vunpack.c.l.b16 %v156
  %v517 = vunpack.c.l.b16 %v157
  %v518 = vpack.c.b16 %v391, %v390
  %v519 = vpack.c.b16 %v393, %v392
  %v520 = vpack.c.b16 %v395, %v394
  %v521 = vpack.c.b16 %v397, %v396
  %v522 = vpack.c.b16 %v399, %v398
  %v523 = vpack.c.b16 %v401, %v400
  %v524 = vpack.c.b16 %v403, %v402
  %v525 = vpack.c.b16 %v405, %v404
  %v526 = vpack.c.b16 %v407, %v406
  %v527 = vpack.c.b16 %v409, %v408
  %v528 = vpack.c.b16 %v411, %v410
  %v529 = vpack.c.b16 %v413, %v412
  %v530 = vpack.c.b16 %v415, %v414
  %v531 = vpack.c.b16 %v417, %v416
  %v532 = vpack.c.b16 %v419, %v418
  %v533 = vpack.c.b16 %v421, %v420
  %v534 = vpack.c.b16 %v423, %v422
  %v535 = vpack.c.b16 %v425, %v424
  %v536 = vpack.c.b16 %v427, %v426
  %v537 = vpack.c.b16 %v429, %v428
  %v538 = vpack.c.b16 %v431, %v430
  %v539 = vpack.c.b16 %v433, %v432
  %v540 = vpack.c.b16 %v435, %v434
  %v541 = vpack.c.b16 %v437, %v436
  %v542 = vpack.c.b16 %v439, %v438
  %v543 = vpack.c.b16 %v441, %v440
  %v544 = vpack.c.b16 %v443, %v442
  %v545 = vpack.c.b16 %v445, %v444
  %v546 = vpack.c.b16 %v447, %v446
  %v547 = vpack.c.b16 %v449, %v448
  %v548 = vpack.c.b16 %v451, %v450
  %v549 = vpack.c.b16 %v453, %v452
  %v550 = vpack.c.b16 %v455, %v454
  %v551 = vpack.c.b16 %v457, %v456
  %v552 = vpack.c.b16 %v459, %v458
  %v553 = vpack.c.b16 %v461, %v460
  %v554 = vpack.c.b16 %v463, %v462
  %v555 = vpack.c.b16 %v465, %v464
  %v556 = vpack.c.b16 %v467, %v466
  %v557 = vpack.c.b16 %v469, %v468
  %v558 = vpack.c.b16 %v471, %v470
  %v559 = vpack.c.b16 %v473, %v472
  %v560 = vpack.c.b16 %v475, %v474
  %v561 = vpack.c.b16 %v477, %v476
  %v562 = vpack.c.b16 %v479, %v478
  %v563 = vpack.c.b16 %v481, %v480
  %v564 = vpack.c.b16 %v483, %v482
  %v565 = vpack.c.b16 %v485, %v484
  %v566 = vpack.c.b16 %v487, %v486
  %v567 = vpack.c.b16 %v489, %v488
  %v568 = vpack.c.b16 %v491, %v490
  %v569 = vpack.c.b16 %v493, %v492
  %v570 = vpack.c.b16 %v495, %v494
  %v571 = vpack.c.b16 %v497, %v496
  %v572 = vpack.c.b16 %v499, %v498
  %v573 = vpack.c.b16 %v501, %v500
  %v574 = vpack.c.b16 %v503, %v502
  %v575 = vpack.c.b16 %v505, %v504
  %v576 = vpack.c.b16 %v507, %v506
  %v577 = vpack.c.b16 %v509, %v508
  %v578 = vpack.c.b16 %v511, %v510
  %v579 = vpack.c.b16 %v513, %v512
  %v580 = vpack.c.b16 %v515, %v514
  %v581 = vpack.c.b16 %v517, %v516
  %646 = vmatpush.bf16.msra.mxu0 %v525
  %647 = vmatpush.bf16.msra.mxu0 %v524
  %648 = vmatpush.bf16.msra.mxu0 %v523
  %649 = vmatpush.bf16.msra.mxu0 %v522
  %650 = vmatpush.bf16.msra.mxu0 %v521
  %651 = vmatpush.bf16.msra.mxu0 %v520
  %652 = vmatpush.bf16.msra.mxu0 %v519
  %653 = vmatpush.bf16.msra.mxu0 %v518
  %654 = vmatmul.bf16.gmra.mxu0 %v230
  %v655 = vpop.f32.mrf.mxu0
  %v656 = vadd.f32 %v165, %v655
  %v657 = vpop.f32.mrf.mxu0
  %v658 = vadd.f32 %v170, %v657
  %659 = vmatmul.bf16.gmra.mxu0 %v238
  %v660 = vpop.f32.mrf.mxu0
  %v661 = vadd.f32 %v175, %v660
  %v662 = vpop.f32.mrf.mxu0
  %v663 = vadd.f32 %v180, %v662
  %664 = vdwg.mxu0
  %665 = vmatpush.bf16.msra.mxu0 %v533
  %666 = vmatpush.bf16.msra.mxu0 %v532
  %667 = vmatpush.bf16.msra.mxu0 %v531
  %668 = vmatpush.bf16.msra.mxu0 %v530
  %669 = vmatpush.bf16.msra.mxu0 %v529
  %670 = vmatpush.bf16.msra.mxu0 %v528
  %671 = vmatpush.bf16.msra.mxu0 %v527
  %672 = vmatpush.bf16.msra.mxu0 %v526
  %673 = vmatmul.bf16.gmra.mxu0 %v231
  %v674 = vpop.f32.mrf.mxu0
  %v675 = vadd.f32 %v656, %v674
  %v676 = vpop.f32.mrf.mxu0
  %v677 = vadd.f32 %v658, %v676
  %678 = vmatmul.bf16.gmra.mxu0 %v239
  %v679 = vpop.f32.mrf.mxu0
  %v680 = vadd.f32 %v661, %v679
  %v681 = vpop.f32.mrf.mxu0
  %v682 = vadd.f32 %v663, %v681
  %683 = vdwg.mxu0
  %684 = vmatpush.bf16.msra.mxu0 %v541
  %685 = vmatpush.bf16.msra.mxu0 %v540
  %686 = vmatpush.bf16.msra.mxu0 %v539
  %687 = vmatpush.bf16.msra.mxu0 %v538
  %688 = vmatpush.bf16.msra.mxu0 %v537
  %689 = vmatpush.bf16.msra.mxu0 %v536
  %690 = vmatpush.bf16.msra.mxu0 %v535
  %691 = vmatpush.bf16.msra.mxu0 %v534
  %692 = vmatmul.bf16.gmra.mxu0 %v232
  %v693 = vpop.f32.mrf.mxu0
  %v694 = vadd.f32 %v675, %v693
  %v695 = vpop.f32.mrf.mxu0
  %v696 = vadd.f32 %v677, %v695
  %697 = vmatmul.bf16.gmra.mxu0 %v240
  %v698 = vpop.f32.mrf.mxu0
  %v699 = vadd.f32 %v680, %v698
  %v700 = vpop.f32.mrf.mxu0
  %v701 = vadd.f32 %v682, %v700
  %702 = vdwg.mxu0
  %703 = vmatpush.bf16.msra.mxu0 %v549
  %704 = vmatpush.bf16.msra.mxu0 %v548
  %705 = vmatpush.bf16.msra.mxu0 %v547
  %706 = vmatpush.bf16.msra.mxu0 %v546
  %707 = vmatpush.bf16.msra.mxu0 %v545
  %708 = vmatpush.bf16.msra.mxu0 %v544
  %709 = vmatpush.bf16.msra.mxu0 %v543
  %710 = vmatpush.bf16.msra.mxu0 %v542
  %711 = vmatmul.bf16.gmra.mxu0 %v233
  %v712 = vpop.f32.mrf.mxu0
  %v713 = vadd.f32 %v694, %v712
  %v714 = vpop.f32.mrf.mxu0
  %v715 = vadd.f32 %v696, %v714
  %716 = vmatmul.bf16.gmra.mxu0 %v241
  %v717 = vpop.f32.mrf.mxu0
  %v718 = vadd.f32 %v699, %v717
  %v719 = vpop.f32.mrf.mxu0
  %v720 = vadd.f32 %v701, %v719
  %721 = vdwg.mxu0
  %722 = vmatpush.bf16.msra.mxu0 %v557
  %723 = vmatpush.bf16.msra.mxu0 %v556
  %724 = vmatpush.bf16.msra.mxu0 %v555
  %725 = vmatpush.bf16.msra.mxu0 %v554
  %726 = vmatpush.bf16.msra.mxu0 %v553
  %727 = vmatpush.bf16.msra.mxu0 %v552
  %728 = vmatpush.bf16.msra.mxu0 %v551
  %729 = vmatpush.bf16.msra.mxu0 %v550
  %730 = vmatmul.bf16.gmra.mxu0 %v234
  %v731 = vpop.f32.mrf.mxu0
  %v732 = vadd.f32 %v713, %v731
  %v733 = vpop.f32.mrf.mxu0
  %v734 = vadd.f32 %v715, %v733
  %735 = vmatmul.bf16.gmra.mxu0 %v242
  %v736 = vpop.f32.mrf.mxu0
  %v737 = vadd.f32 %v718, %v736
  %v738 = vpop.f32.mrf.mxu0
  %v739 = vadd.f32 %v720, %v738
  %740 = vdwg.mxu0
  %741 = vmatpush.bf16.msra.mxu0 %v565
  %742 = vmatpush.bf16.msra.mxu0 %v564
  %743 = vmatpush.bf16.msra.mxu0 %v563
  %744 = vmatpush.bf16.msra.mxu0 %v562
  %745 = vmatpush.bf16.msra.mxu0 %v561
  %746 = vmatpush.bf16.msra.mxu0 %v560
  %747 = vmatpush.bf16.msra.mxu0 %v559
  %748 = vmatpush.bf16.msra.mxu0 %v558
  %749 = vmatmul.bf16.gmra.mxu0 %v235
  %v750 = vpop.f32.mrf.mxu0
  %v751 = vadd.f32 %v732, %v750
  %v752 = vpop.f32.mrf.mxu0
  %v753 = vadd.f32 %v734, %v752
  %754 = vmatmul.bf16.gmra.mxu0 %v243
  %v755 = vpop.f32.mrf.mxu0
  %v756 = vadd.f32 %v737, %v755
  %v757 = vpop.f32.mrf.mxu0
  %v758 = vadd.f32 %v739, %v757
  %759 = vdwg.mxu0
  %760 = vmatpush.bf16.msra.mxu0 %v573
  %761 = vmatpush.bf16.msra.mxu0 %v572
  %762 = vmatpush.bf16.msra.mxu0 %v571
  %763 = vmatpush.bf16.msra.mxu0 %v570
  %764 = vmatpush.bf16.msra.mxu0 %v569
  %765 = vmatpush.bf16.msra.mxu0 %v568
  %766 = vmatpush.bf16.msra.mxu0 %v567
  %767 = vmatpush.bf16.msra.mxu0 %v566
  %768 = vmatmul.bf16.gmra.mxu0 %v236
  %v769 = vpop.f32.mrf.mxu0
  %v770 = vadd.f32 %v751, %v769
  %v771 = vpop.f32.mrf.mxu0
  %v772 = vadd.f32 %v753, %v771
  %773 = vmatmul.bf16.gmra.mxu0 %v244
  %v774 = vpop.f32.mrf.mxu0
  %v775 = vadd.f32 %v756, %v774
  %v776 = vpop.f32.mrf.mxu0
  %v777 = vadd.f32 %v758, %v776
  %778 = vdwg.mxu0
  %779 = vmatpush.bf16.msra.mxu0 %v581
  %780 = vmatpush.bf16.msra.mxu0 %v580
  %781 = vmatpush.bf16.msra.mxu0 %v579
  %782 = vmatpush.bf16.msra.mxu0 %v578
  %783 = vmatpush.bf16.msra.mxu0 %v577
  %784 = vmatpush.bf16.msra.mxu0 %v576
  %785 = vmatpush.bf16.msra.mxu0 %v575
  %786 = vmatpush.bf16.msra.mxu0 %v574
  %787 = vmatmul.bf16.gmra.mxu0 %v237
  %v788 = vpop.f32.mrf.mxu0
  %v789 = vadd.f32 %v770, %v788
  %v790 = vpop.f32.mrf.mxu0
  %v791 = vadd.f32 %v772, %v790
  %792 = vmatmul.bf16.gmra.mxu0 %v245
  %v793 = vpop.f32.mrf.mxu0
  %v794 = vadd.f32 %v775, %v793
  %v795 = vpop.f32.mrf.mxu0
  %v796 = vadd.f32 %v777, %v795
  %797 = vdwg.mxu0
  %v798 = vmax.f32 %v789, 0.0
  %v799 = vmax.f32 %v791, 0.0
  %v800 = vmax.f32 %v794, 0.0
  %v801 = vmax.f32 %v796, 0.0
  %v802 = vpack.c.bf16 %v798, %v798
  %v803 = vpack.c.bf16 %v799, %v799
  %v804 = vpack.c.bf16 %v800, %v800
  %v805 = vpack.c.bf16 %v801, %v801
  %806 = vst [vmem:[%s3] sm:$0xf] %v802
  %807 = vst [vmem:[%s3 + $0x4] sm:$0xf] %v803
  %808 = vst [vmem:[%s3 + $0x8] sm:$0xf] %v804
  %809 = vst [vmem:[%s3 + $0xc] sm:$0xf] %v805
  // Predicated region
  $region14: #{eeg_generator_forward.5} parent=0 // pred_check
    _
  $region15: #{eeg_generator_forward.5} parent=0 // pred_check_branch
    %811 = sbr.rel (0) target = $region17
  $region16: #{eeg_generator_forward.5} parent=0 // pred_region
    _
  $region17: #{eeg_generator_forward.5} parent=0 // pred_fallthru
    _
  // Predicated region
  $region18: #{eeg_generator_forward.5} parent=0 // pred_check
    _
  $region19: #{eeg_generator_forward.5} parent=0 // pred_check_branch
    %813 = sbr.rel (0) target = $region21
  $region20: #{eeg_generator_forward.5} parent=0 // pred_region
    _
  $region21: #{eeg_generator_forward.5} parent=0 // pred_fallthru
    _

// kernel: eeg_generator_forward.6
$region0: #{eeg_generator_forward.6}
  #allocation0 [shape = 'u32[]', space=smem, size = 0x4, offset = 0x4, fixed_abs, tag = 'smem constant byte address 0x4 - core index']
  #allocation1 [shape = 'u32[72,128]{1,0:T(1,128)}', space=vmem, size = 0x9000, scoped, tag = 'internal scratch']
  %s0 = inlined_call_operand.vmem [shape: bf16[16,512], index: 0, kind: input, shape index: {}]
  %s1 = inlined_call_operand.vmem [shape: bf16[512,512], index: 1, kind: input, shape index: {}]
  %s2 = inlined_call_operand.vmem [shape: f32[16,1], index: 2, kind: input, shape index: {}]
  %s3 = inlined_call_operand.vmem [shape: bf16[16,512], index: 3, kind: output, shape index: {}]
  %s4 = sld [smem:[#allocation0]]
  $region117: #{eeg_generator_forward.6} parent=0
    _
  %s6 = ssub.s32 1, %s4
  %s7 = scalar_select 0, %s6, %s4
  $region1: #{eeg_generator_forward.6} parent=0
    #allocation2 [shape = 'u8[524288]{0}', space=vmem, size = 0x80000, scoped, tag = 'input window, operand 1']
    #allocation3 [shape = 'u8[16384]{0}', space=vmem, size = 0x4000, scoped, tag = 'output window, operand 0']
    loop: start=0, step=1, limit=4
    $region2: #{eeg_generator_forward.6} parent=1 // loop_pre_header
      _
    $region3: #{eeg_generator_forward.6} parent=1 // loop_header
      %s9 = sphi 0, %s13
      %p10 = scmp.ge.s32.totalorder %s9, 4
      %s17 = sphi 0, %s17
      %s19 = sphi 0, %s17
      %s20 = sphi 0, %s19
      %s34 = sphi 0, %s20
      %s40 = sphi 0, %s42
      %s43 = sphi 0, %s40
      %s44 = sphi 0, %s43
      %s60 = sphi 0, %s44
      %s64 = sphi 0, %s64
      %s66 = sphi 0, %s64
      %s67 = sphi 0, %s66
      %s81 = sphi 0, %s67
      %s87 = sphi 0, %s89
      %s90 = sphi 0, %s87
      %s91 = sphi 0, %s90
      %s107 = sphi 0, %s91
    $region4: #{eeg_generator_forward.6} parent=1 // loop_header_branch
      %12 = sbr.rel (%p10) target = $region8
    $region5: #{eeg_generator_forward.6} parent=1 // loop_body
      %s14 = ssub.s32 %s9, 1
      %s15 = ssub.s32 %s9, 2
      %s16 = sadd.s32 %s9, 1
      %s18 = sadd.s32 %s17, 1
      %p21 = scmp.eq.s32.totalorder %s9, 1
      %p22 = scmp.ne.s32.totalorder %s17, %s19
      %p23 = scmp.eq.s32.totalorder %s9, 0
      %p24 = por %p22, %p23
      %p25 = scmp.ne.s32.totalorder %s17, %s19
      %p26 = scmp.eq.s32.totalorder %s14, 1
      %p27 = por %p25, %p26
      %p28 = scmp.ne.s32.totalorder %s19, %s20
      %p29 = scmp.eq.s32.totalorder %s14, 0
      %p30 = por %p28, %p29
      %p31 = scmp.ne.s32.totalorder %s19, %s20
      %p32 = scmp.eq.s32.totalorder %s15, 1
      %p33 = por %p31, %p32
      %p35 = scmp.ne.s32.totalorder %s20, %s34
      %p36 = scmp.eq.s32.totalorder %s15, 0
      %p37 = por %p35, %p36
      %s38 = ssub.s32 %s9, %s16
      %p39 = scmp.eq.s32.totalorder %s38, 0
      %s41 = sadd.s32 %s40, 1
      %s42 = scalar_select %p39, %s40, %s41
      %p45 = pneg %p39
      %p46 = scmp.eq.s32.totalorder %s9, 1
      %p47 = por %p45, %p46
      %p48 = scmp.ne.s32.totalorder %s40, %s43
      %p49 = scmp.eq.s32.totalorder %s9, 0
      %p50 = por %p48, %p49
      %p51 = scmp.ne.s32.totalorder %s40, %s43
      %p52 = scmp.eq.s32.totalorder %s14, 1
      %p53 = por %p51, %p52
      %p54 = scmp.ne.s32.totalorder %s43, %s44
      %p55 = scmp.eq.s32.totalorder %s14, 0
      %p56 = por %p54, %p55
      %p57 = scmp.ne.s32.totalorder %s43, %s44
      %p58 = scmp.eq.s32.totalorder %s15, 1
      %p59 = por %p57, %p58
      %p61 = scmp.ne.s32.totalorder %s44, %s60
      %p62 = scmp.eq.s32.totalorder %s15, 0
      %p63 = por %p61, %p62
      %s65 = sadd.s32 %s64, 1
      %p68 = scmp.eq.s32.totalorder %s9, 1
      %p69 = scmp.ne.s32.totalorder %s64, %s66
      %p70 = scmp.eq.s32.totalorder %s9, 0
      %p71 = por %p69, %p70
      %p72 = scmp.ne.s32.totalorder %s64, %s66
      %p73 = scmp.eq.s32.totalorder %s14, 1
      %p74 = por %p72, %p73
      %p75 = scmp.ne.s32.totalorder %s66, %s67
      %p76 = scmp.eq.s32.totalorder %s14, 0
      %p77 = por %p75, %p76
      %p78 = scmp.ne.s32.totalorder %s66, %s67
      %p79 = scmp.eq.s32.totalorder %s15, 1
      %p80 = por %p78, %p79
      %p82 = scmp.ne.s32.totalorder %s67, %s81
      %p83 = scmp.eq.s32.totalorder %s15, 0
      %p84 = por %p82, %p83
      %s85 = ssub.s32 %s9, %s16
      %p86 = scmp.eq.s32.totalorder %s85, 0
      %s88 = sadd.s32 %s87, 1
      %s89 = scalar_select %p86, %s87, %s88
      %p92 = pneg %p86
      %p93 = scmp.eq.s32.totalorder %s9, 1
      %p94 = por %p92, %p93
      %p95 = scmp.ne.s32.totalorder %s87, %s90
      %p96 = scmp.eq.s32.totalorder %s9, 0
      %p97 = por %p95, %p96
      %p98 = scmp.ne.s32.totalorder %s87, %s90
      %p99 = scmp.eq.s32.totalorder %s14, 1
      %p100 = por %p98, %p99
      %p101 = scmp.ne.s32.totalorder %s90, %s91
      %p102 = scmp.eq.s32.totalorder %s14, 0
      %p103 = por %p101, %p102
      %p104 = scmp.ne.s32.totalorder %s90, %s91
      %p105 = scmp.eq.s32.totalorder %s15, 1
      %p106 = por %p104, %p105
      %p108 = scmp.ne.s32.totalorder %s91, %s107
      %p109 = scmp.eq.s32.totalorder %s15, 0
      %p110 = por %p108, %p109
      %p111 = scmp.le.s32.totalorder 1, %s9
      %p112 = scmp.lt.s32.totalorder %s9, 3
      %p113 = pnand %p111, %p112
      %p114 = pneg %p113
      // Predicated region
      $region9: #{eeg_generator_forward.6} parent=5 // pred_check
        _
      $region10: #{eeg_generator_forward.6} parent=5 // pred_check_branch
        %116 = sbr.rel (%p113) target = $region12
      $region11: #{eeg_generator_forward.6} parent=5 // pred_region
        %s117 = ssub.s32 %s9, 1
        // Predicated region
        $region13: #{eeg_generator_forward.6} parent=11 // pred_check
          %p118 = pneg %p30
        $region14: #{eeg_generator_forward.6} parent=11 // pred_check_branch
          %120 = sbr.rel (%p118) target = $region16
        $region15: #{eeg_generator_forward.6} parent=11 // pred_region
          _
        $region16: #{eeg_generator_forward.6} parent=11 // pred_fallthru
          _
        // Predicated region
        $region17: #{eeg_generator_forward.6} parent=11 // pred_check
          %p121 = pneg %p77
        $region18: #{eeg_generator_forward.6} parent=11 // pred_check_branch
          %123 = sbr.rel (%p121) target = $region20
        $region19: #{eeg_generator_forward.6} parent=11 // pred_region
          _
        $region20: #{eeg_generator_forward.6} parent=11 // pred_fallthru
          _
      $region12: #{eeg_generator_forward.6} parent=5 // pred_fallthru
        _
      %p124 = scmp.lt.s32.totalorder %s9, 2
      // Predicated region
      $region21: #{eeg_generator_forward.6} parent=5 // pred_check
        %p125 = pneg %p124
      $region22: #{eeg_generator_forward.6} parent=5 // pred_check_branch
        %127 = sbr.rel (%p125) target = $region24
      $region23: #{eeg_generator_forward.6} parent=5 // pred_region
        // Predicated region
        $region25: #{eeg_generator_forward.6} parent=23 // pred_check
          %p128 = pneg %p50
        $region26: #{eeg_generator_forward.6} parent=23 // pred_check_branch
          %130 = sbr.rel (%p128) target = $region28
        $region27: #{eeg_generator_forward.6} parent=23 // pred_region
          %s131 = sand.u32 %s40, 1
          %s132 = sand.u32 %s40, 1
          %s133 = smul.addr %s132, 512
          %s134 = scalar_lea.vmem [#allocation2], %s133
          %s135 = smul.u32 2, %s9
          %s136 = smul.addr %s135, 4
          %s137 = scalar_lea.vmem %s1, %s136
          // Predicated region
          $region29: #{eeg_generator_forward.6} parent=27 // pred_check
            _
          $region30: #{eeg_generator_forward.6} parent=27 // pred_check_branch
            %139 = sbr.rel (0) target = $region32
          $region31: #{eeg_generator_forward.6} parent=27 // pred_region
            // Predicated region
            $region33: #{eeg_generator_forward.6} parent=31 // pred_check
              _
            $region34: #{eeg_generator_forward.6} parent=31 // pred_check_branch
              %141 = sbr.rel (0) target = $region36
            $region35: #{eeg_generator_forward.6} parent=31 // pred_region
              // Predicated region
              $region48: #{eeg_generator_forward.6} parent=35 // pred_check
                _
              $region49: #{eeg_generator_forward.6} parent=35 // pred_check_branch
                %283 = sbr.rel (0) target = $region51
              $region50: #{eeg_generator_forward.6} parent=35 // pred_region
                loop: start=0, step=1, limit=1
                $region52: #{eeg_generator_forward.6} parent=50 // loop_pre_header
                  _
                $region53: #{eeg_generator_forward.6} parent=50 // loop_header
                  %s285 = sphi 0, %s289
                  %p286 = scmp.ge.s32.totalorder %s285, 1
                  %s290 = sphi %s137, %s137
                  %s291 = sphi %s134, %s134
                $region54: #{eeg_generator_forward.6} parent=50 // loop_header_branch
                  %288 = sbr.rel (%p286) target = $region58
                $region55: #{eeg_generator_forward.6} parent=50 // loop_body
                  %v292 = vld [vmem:[%s290] sm:$0xff]
                  %293 = vst [vmem:[%s291] sm:$0xff] %v292
                  %v294 = vld [vmem:[%s290 + $0x10] sm:$0xff]
                  %295 = vst [vmem:[%s291 + $0x8] sm:$0xff] %v294
                  %v296 = vld [vmem:[%s290 + $0x20] sm:$0xff]
                  %297 = vst [vmem:[%s291 + $0x10] sm:$0xff] %v296
                  %v298 = vld [vmem:[%s290 + $0x30] sm:$0xff]
                  %299 = vst [vmem:[%s291 + $0x18] sm:$0xff] %v298
                  %v300 = vld [vmem:[%s290 + $0x40] sm:$0xff]
                  %301 = vst [vmem:[%s291 + $0x20] sm:$0xff] %v300
                  %v302 = vld [vmem:[%s290 + $0x50] sm:$0xff]
                  %303 = vst [vmem:[%s291 + $0x28] sm:$0xff] %v302
                  %v304 = vld [vmem:[%s290 + $0x60] sm:$0xff]
                  %305 = vst [vmem:[%s291 + $0x30] sm:$0xff] %v304
                  %v306 = vld [vmem:[%s290 + $0x70] sm:$0xff]
                  %307 = vst [vmem:[%s291 + $0x38] sm:$0xff] %v306
                  %v308 = vld [vmem:[%s290 + $0x80] sm:$0xff]
                  %309 = vst [vmem:[%s291 + $0x40] sm:$0xff] %v308
                  %v310 = vld [vmem:[%s290 + $0x90] sm:$0xff]
                  %311 = vst [vmem:[%s291 + $0x48] sm:$0xff] %v310
                  %v312 = vld [vmem:[%s290 + $0xa0] sm:$0xff]
                  %313 = vst [vmem:[%s291 + $0x50] sm:$0xff] %v312
                  %v314 = vld [vmem:[%s290 + $0xb0] sm:$0xff]
                  %315 = vst [vmem:[%s291 + $0x58] sm:$0xff] %v314
                  %v316 = vld [vmem:[%s290 + $0xc0] sm:$0xff]
                  %317 = vst [vmem:[%s291 + $0x60] sm:$0xff] %v316
                  %v318 = vld [vmem:[%s290 + $0xd0] sm:$0xff]
                  %319 = vst [vmem:[%s291 + $0x68] sm:$0xff] %v318
                  %v320 = vld [vmem:[%s290 + $0xe0] sm:$0xff]
                  %321 = vst [vmem:[%s291 + $0x70] sm:$0xff] %v320
                  %v322 = vld [vmem:[%s290 + $0xf0] sm:$0xff]
                  %323 = vst [vmem:[%s291 + $0x78] sm:$0xff] %v322
                  %v324 = vld [vmem:[%s290 + $0x100] sm:$0xff]
                  %325 = vst [vmem:[%s291 + $0x80] sm:$0xff] %v324
                  %v326 = vld [vmem:[%s290 + $0x110] sm:$0xff]
                  %327 = vst [vmem:[%s291 + $0x88] sm:$0xff] %v326
                  %v328 = vld [vmem:[%s290 + $0x120] sm:$0xff]
                  %329 = vst [vmem:[%s291 + $0x90] sm:$0xff] %v328
                  %v330 = vld [vmem:[%s290 + $0x130] sm:$0xff]
                  %331 = vst [vmem:[%s291 + $0x98] sm:$0xff] %v330
                  %v332 = vld [vmem:[%s290 + $0x140] sm:$0xff]
                  %333 = vst [vmem:[%s291 + $0xa0] sm:$0xff] %v332
                  %v334 = vld [vmem:[%s290 + $0x150] sm:$0xff]
                  %335 = vst [vmem:[%s291 + $0xa8] sm:$0xff] %v334
                  %v336 = vld [vmem:[%s290 + $0x160] sm:$0xff]
                  %337 = vst [vmem:[%s291 + $0xb0] sm:$0xff] %v336
                  %v338 = vld [vmem:[%s290 + $0x170] sm:$0xff]
                  %339 = vst [vmem:[%s291 + $0xb8] sm:$0xff] %v338
                  %v340 = vld [vmem:[%s290 + $0x180] sm:$0xff]
                  %341 = vst [vmem:[%s291 + $0xc0] sm:$0xff] %v340
                  %v342 = vld [vmem:[%s290 + $0x190] sm:$0xff]
                  %343 = vst [vmem:[%s291 + $0xc8] sm:$0xff] %v342
                  %v344 = vld [vmem:[%s290 + $0x1a0] sm:$0xff]
                  %345 = vst [vmem:[%s291 + $0xd0] sm:$0xff] %v344
                  %v346 = vld [vmem:[%s290 + $0x1b0] sm:$0xff]
                  %347 = vst [vmem:[%s291 + $0xd8] sm:$0xff] %v346
                  %v348 = vld [vmem:[%s290 + $0x1c0] sm:$0xff]
                  %349 = vst [vmem:[%s291 + $0xe0] sm:$0xff] %v348
                  %v350 = vld [vmem:[%s290 + $0x1d0] sm:$0xff]
                  %351 = vst [vmem:[%s291 + $0xe8] sm:$0xff] %v350
                  %v352 = vld [vmem:[%s290 + $0x1e0] sm:$0xff]
                  %353 = vst [vmem:[%s291 + $0xf0] sm:$0xff] %v352
                  %v354 = vld [vmem:[%s290 + $0x1f0] sm:$0xff]
                  %355 = vst [vmem:[%s291 + $0xf8] sm:$0xff] %v354
                  %v356 = vld [vmem:[%s290 + $0x200] sm:$0xff]
                  %357 = vst [vmem:[%s291 + $0x100] sm:$0xff] %v356
                  %v358 = vld [vmem:[%s290 + $0x210] sm:$0xff]
                  %359 = vst [vmem:[%s291 + $0x108] sm:$0xff] %v358
                  %v360 = vld [vmem:[%s290 + $0x220] sm:$0xff]
                  %361 = vst [vmem:[%s291 + $0x110] sm:$0xff] %v360
                  %v362 = vld [vmem:[%s290 + $0x230] sm:$0xff]
                  %363 = vst [vmem:[%s291 + $0x118] sm:$0xff] %v362
                  %v364 = vld [vmem:[%s290 + $0x240] sm:$0xff]
                  %365 = vst [vmem:[%s291 + $0x120] sm:$0xff] %v364
                  %v366 = vld [vmem:[%s290 + $0x250] sm:$0xff]
                  %367 = vst [vmem:[%s291 + $0x128] sm:$0xff] %v366
                  %v368 = vld [vmem:[%s290 + $0x260] sm:$0xff]
                  %369 = vst [vmem:[%s291 + $0x130] sm:$0xff] %v368
                  %v370 = vld [vmem:[%s290 + $0x270] sm:$0xff]
                  %371 = vst [vmem:[%s291 + $0x138] sm:$0xff] %v370
                  %v372 = vld [vmem:[%s290 + $0x280] sm:$0xff]
                  %373 = vst [vmem:[%s291 + $0x140] sm:$0xff] %v372
                  %v374 = vld [vmem:[%s290 + $0x290] sm:$0xff]
                  %375 = vst [vmem:[%s291 + $0x148] sm:$0xff] %v374
                  %v376 = vld [vmem:[%s290 + $0x2a0] sm:$0xff]
                  %377 = vst [vmem:[%s291 + $0x150] sm:$0xff] %v376
                  %v378 = vld [vmem:[%s290 + $0x2b0] sm:$0xff]
                  %379 = vst [vmem:[%s291 + $0x158] sm:$0xff] %v378
                  %v380 = vld [vmem:[%s290 + $0x2c0] sm:$0xff]
                  %381 = vst [vmem:[%s291 + $0x160] sm:$0xff] %v380
                  %v382 = vld [vmem:[%s290 + $0x2d0] sm:$0xff]
                  %383 = vst [vmem:[%s291 + $0x168] sm:$0xff] %v382
                  %v384 = vld [vmem:[%s290 + $0x2e0] sm:$0xff]
                  %385 = vst [vmem:[%s291 + $0x170] sm:$0xff] %v384
                  %v386 = vld [vmem:[%s290 + $0x2f0] sm:$0xff]
                  %387 = vst [vmem:[%s291 + $0x178] sm:$0xff] %v386
                  %v388 = vld [vmem:[%s290 + $0x300] sm:$0xff]
                  %389 = vst [vmem:[%s291 + $0x180] sm:$0xff] %v388
                  %v390 = vld [vmem:[%s290 + $0x310] sm:$0xff]
                  %391 = vst [vmem:[%s291 + $0x188] sm:$0xff] %v390
                  %v392 = vld [vmem:[%s290 + $0x320] sm:$0xff]
                  %393 = vst [vmem:[%s291 + $0x190] sm:$0xff] %v392
                  %v394 = vld [vmem:[%s290 + $0x330] sm:$0xff]
                  %395 = vst [vmem:[%s291 + $0x198] sm:$0xff] %v394
                  %v396 = vld [vmem:[%s290 + $0x340] sm:$0xff]
                  %397 = vst [vmem:[%s291 + $0x1a0] sm:$0xff] %v396
                  %v398 = vld [vmem:[%s290 + $0x350] sm:$0xff]
                  %399 = vst [vmem:[%s291 + $0x1a8] sm:$0xff] %v398
                  %v400 = vld [vmem:[%s290 + $0x360] sm:$0xff]
                  %401 = vst [vmem:[%s291 + $0x1b0] sm:$0xff] %v400
                  %v402 = vld [vmem:[%s290 + $0x370] sm:$0xff]
                  %403 = vst [vmem:[%s291 + $0x1b8] sm:$0xff] %v402
                  %v404 = vld [vmem:[%s290 + $0x380] sm:$0xff]
                  %405 = vst [vmem:[%s291 + $0x1c0] sm:$0xff] %v404
                  %v406 = vld [vmem:[%s290 + $0x390] sm:$0xff]
                  %407 = vst [vmem:[%s291 + $0x1c8] sm:$0xff] %v406
                  %v408 = vld [vmem:[%s290 + $0x3a0] sm:$0xff]
                  %409 = vst [vmem:[%s291 + $0x1d0] sm:$0xff] %v408
                  %v410 = vld [vmem:[%s290 + $0x3b0] sm:$0xff]
                  %411 = vst [vmem:[%s291 + $0x1d8] sm:$0xff] %v410
                  %v412 = vld [vmem:[%s290 + $0x3c0] sm:$0xff]
                  %413 = vst [vmem:[%s291 + $0x1e0] sm:$0xff] %v412
                  %v414 = vld [vmem:[%s290 + $0x3d0] sm:$0xff]
                  %415 = vst [vmem:[%s291 + $0x1e8] sm:$0xff] %v414
                  %v416 = vld [vmem:[%s290 + $0x3e0] sm:$0xff]
                  %417 = vst [vmem:[%s291 + $0x1f0] sm:$0xff] %v416
                  %v418 = vld [vmem:[%s290 + $0x3f0] sm:$0xff]
                  %419 = vst [vmem:[%s291 + $0x1f8] sm:$0xff] %v418
                $region56: #{eeg_generator_forward.6} parent=50 // loop_footer
                  %s289 = sadd.s32 1, %s285
                $region57: #{eeg_generator_forward.6} parent=50 // loop_footer_branch
                  %284 = sbr.rel target = $region53
                $region58: #{eeg_generator_forward.6} parent=50 // loop_exit
                  _
              $region51: #{eeg_generator_forward.6} parent=35 // pred_fallthru
                _
              // Predicated region
              $region59: #{eeg_generator_forward.6} parent=35 // pred_check
                _
              $region60: #{eeg_generator_forward.6} parent=35 // pred_check_branch
                %421 = sbr.rel target = $region62
              $region61: #{eeg_generator_forward.6} parent=35 // pred_region
                _
              $region62: #{eeg_generator_forward.6} parent=35 // pred_fallthru
                _
            $region36: #{eeg_generator_forward.6} parent=31 // pred_fallthru
              _
            // Predicated region
            $region37: #{eeg_generator_forward.6} parent=31 // pred_check
              _
            $region38: #{eeg_generator_forward.6} parent=31 // pred_check_branch
              %143 = sbr.rel target = $region40
            $region39: #{eeg_generator_forward.6} parent=31 // pred_region
              %s145 = ssub.s32 256, 1
              loop: start=0, step=1, limit=1
              $region41: #{eeg_generator_forward.6} parent=39 // loop_pre_header
                _
              $region42: #{eeg_generator_forward.6} parent=39 // loop_header
                %s147 = sphi 0, %s151
                %p148 = scmp.ge.s32.totalorder %s147, 1
                %s152 = sphi %s137, %s137
                %s153 = sphi %s134, %s134
              $region43: #{eeg_generator_forward.6} parent=39 // loop_header_branch
                %150 = sbr.rel (%p148) target = $region47
              $region44: #{eeg_generator_forward.6} parent=39 // loop_body
                %v154 = vld [vmem:[%s152] sm:%s145]
                %155 = vst [vmem:[%s153] sm:%s145] %v154
                %v156 = vld [vmem:[%s152 + $0x10] sm:%s145]
                %157 = vst [vmem:[%s153 + $0x8] sm:%s145] %v156
                %v158 = vld [vmem:[%s152 + $0x20] sm:%s145]
                %159 = vst [vmem:[%s153 + $0x10] sm:%s145] %v158
                %v160 = vld [vmem:[%s152 + $0x30] sm:%s145]
                %161 = vst [vmem:[%s153 + $0x18] sm:%s145] %v160
                %v162 = vld [vmem:[%s152 + $0x40] sm:%s145]
                %163 = vst [vmem:[%s153 + $0x20] sm:%s145] %v162
                %v164 = vld [vmem:[%s152 + $0x50] sm:%s145]
                %165 = vst [vmem:[%s153 + $0x28] sm:%s145] %v164
                %v166 = vld [vmem:[%s152 + $0x60] sm:%s145]
                %167 = vst [vmem:[%s153 + $0x30] sm:%s145] %v166
                %v168 = vld [vmem:[%s152 + $0x70] sm:%s145]
                %169 = vst [vmem:[%s153 + $0x38] sm:%s145] %v168
                %v170 = vld [vmem:[%s152 + $0x80] sm:%s145]
                %171 = vst [vmem:[%s153 + $0x40] sm:%s145] %v170
                %v172 = vld [vmem:[%s152 + $0x90] sm:%s145]
                %173 = vst [vmem:[%s153 + $0x48] sm:%s145] %v172
                %v174 = vld [vmem:[%s152 + $0xa0] sm:%s145]
                %175 = vst [vmem:[%s153 + $0x50] sm:%s145] %v174
                %v176 = vld [vmem:[%s152 + $0xb0] sm:%s145]
                %177 = vst [vmem:[%s153 + $0x58] sm:%s145] %v176
                %v178 = vld [vmem:[%s152 + $0xc0] sm:%s145]
                %179 = vst [vmem:[%s153 + $0x60] sm:%s145] %v178
                %v180 = vld [vmem:[%s152 + $0xd0] sm:%s145]
                %181 = vst [vmem:[%s153 + $0x68] sm:%s145] %v180
                %v182 = vld [vmem:[%s152 + $0xe0] sm:%s145]
                %183 = vst [vmem:[%s153 + $0x70] sm:%s145] %v182
                %v184 = vld [vmem:[%s152 + $0xf0] sm:%s145]
                %185 = vst [vmem:[%s153 + $0x78] sm:%s145] %v184
                %v186 = vld [vmem:[%s152 + $0x100] sm:%s145]
                %187 = vst [vmem:[%s153 + $0x80] sm:%s145] %v186
                %v188 = vld [vmem:[%s152 + $0x110] sm:%s145]
                %189 = vst [vmem:[%s153 + $0x88] sm:%s145] %v188
                %v190 = vld [vmem:[%s152 + $0x120] sm:%s145]
                %191 = vst [vmem:[%s153 + $0x90] sm:%s145] %v190
                %v192 = vld [vmem:[%s152 + $0x130] sm:%s145]
                %193 = vst [vmem:[%s153 + $0x98] sm:%s145] %v192
                %v194 = vld [vmem:[%s152 + $0x140] sm:%s145]
                %195 = vst [vmem:[%s153 + $0xa0] sm:%s145] %v194
                %v196 = vld [vmem:[%s152 + $0x150] sm:%s145]
                %197 = vst [vmem:[%s153 + $0xa8] sm:%s145] %v196
                %v198 = vld [vmem:[%s152 + $0x160] sm:%s145]
                %199 = vst [vmem:[%s153 + $0xb0] sm:%s145] %v198
                %v200 = vld [vmem:[%s152 + $0x170] sm:%s145]
                %201 = vst [vmem:[%s153 + $0xb8] sm:%s145] %v200
                %v202 = vld [vmem:[%s152 + $0x180] sm:%s145]
                %203 = vst [vmem:[%s153 + $0xc0] sm:%s145] %v202
                %v204 = vld [vmem:[%s152 + $0x190] sm:%s145]
                %205 = vst [vmem:[%s153 + $0xc8] sm:%s145] %v204
                %v206 = vld [vmem:[%s152 + $0x1a0] sm:%s145]
                %207 = vst [vmem:[%s153 + $0xd0] sm:%s145] %v206
                %v208 = vld [vmem:[%s152 + $0x1b0] sm:%s145]
                %209 = vst [vmem:[%s153 + $0xd8] sm:%s145] %v208
                %v210 = vld [vmem:[%s152 + $0x1c0] sm:%s145]
                %211 = vst [vmem:[%s153 + $0xe0] sm:%s145] %v210
                %v212 = vld [vmem:[%s152 + $0x1d0] sm:%s145]
                %213 = vst [vmem:[%s153 + $0xe8] sm:%s145] %v212
                %v214 = vld [vmem:[%s152 + $0x1e0] sm:%s145]
                %215 = vst [vmem:[%s153 + $0xf0] sm:%s145] %v214
                %v216 = vld [vmem:[%s152 + $0x1f0] sm:%s145]
                %217 = vst [vmem:[%s153 + $0xf8] sm:%s145] %v216
                %v218 = vld [vmem:[%s152 + $0x200] sm:%s145]
                %219 = vst [vmem:[%s153 + $0x100] sm:%s145] %v218
                %v220 = vld [vmem:[%s152 + $0x210] sm:%s145]
                %221 = vst [vmem:[%s153 + $0x108] sm:%s145] %v220
                %v222 = vld [vmem:[%s152 + $0x220] sm:%s145]
                %223 = vst [vmem:[%s153 + $0x110] sm:%s145] %v222
                %v224 = vld [vmem:[%s152 + $0x230] sm:%s145]
                %225 = vst [vmem:[%s153 + $0x118] sm:%s145] %v224
                %v226 = vld [vmem:[%s152 + $0x240] sm:%s145]
                %227 = vst [vmem:[%s153 + $0x120] sm:%s145] %v226
                %v228 = vld [vmem:[%s152 + $0x250] sm:%s145]
                %229 = vst [vmem:[%s153 + $0x128] sm:%s145] %v228
                %v230 = vld [vmem:[%s152 + $0x260] sm:%s145]
                %231 = vst [vmem:[%s153 + $0x130] sm:%s145] %v230
                %v232 = vld [vmem:[%s152 + $0x270] sm:%s145]
                %233 = vst [vmem:[%s153 + $0x138] sm:%s145] %v232
                %v234 = vld [vmem:[%s152 + $0x280] sm:%s145]
                %235 = vst [vmem:[%s153 + $0x140] sm:%s145] %v234
                %v236 = vld [vmem:[%s152 + $0x290] sm:%s145]
                %237 = vst [vmem:[%s153 + $0x148] sm:%s145] %v236
                %v238 = vld [vmem:[%s152 + $0x2a0] sm:%s145]
                %239 = vst [vmem:[%s153 + $0x150] sm:%s145] %v238
                %v240 = vld [vmem:[%s152 + $0x2b0] sm:%s145]
                %241 = vst [vmem:[%s153 + $0x158] sm:%s145] %v240
                %v242 = vld [vmem:[%s152 + $0x2c0] sm:%s145]
                %243 = vst [vmem:[%s153 + $0x160] sm:%s145] %v242
                %v244 = vld [vmem:[%s152 + $0x2d0] sm:%s145]
                %245 = vst [vmem:[%s153 + $0x168] sm:%s145] %v244
                %v246 = vld [vmem:[%s152 + $0x2e0] sm:%s145]
                %247 = vst [vmem:[%s153 + $0x170] sm:%s145] %v246
                %v248 = vld [vmem:[%s152 + $0x2f0] sm:%s145]
                %249 = vst [vmem:[%s153 + $0x178] sm:%s145] %v248
                %v250 = vld [vmem:[%s152 + $0x300] sm:%s145]
                %251 = vst [vmem:[%s153 + $0x180] sm:%s145] %v250
                %v252 = vld [vmem:[%s152 + $0x310] sm:%s145]
                %253 = vst [vmem:[%s153 + $0x188] sm:%s145] %v252
                %v254 = vld [vmem:[%s152 + $0x320] sm:%s145]
                %255 = vst [vmem:[%s153 + $0x190] sm:%s145] %v254
                %v256 = vld [vmem:[%s152 + $0x330] sm:%s145]
                %257 = vst [vmem:[%s153 + $0x198] sm:%s145] %v256
                %v258 = vld [vmem:[%s152 + $0x340] sm:%s145]
                %259 = vst [vmem:[%s153 + $0x1a0] sm:%s145] %v258
                %v260 = vld [vmem:[%s152 + $0x350] sm:%s145]
                %261 = vst [vmem:[%s153 + $0x1a8] sm:%s145] %v260
                %v262 = vld [vmem:[%s152 + $0x360] sm:%s145]
                %263 = vst [vmem:[%s153 + $0x1b0] sm:%s145] %v262
                %v264 = vld [vmem:[%s152 + $0x370] sm:%s145]
                %265 = vst [vmem:[%s153 + $0x1b8] sm:%s145] %v264
                %v266 = vld [vmem:[%s152 + $0x380] sm:%s145]
                %267 = vst [vmem:[%s153 + $0x1c0] sm:%s145] %v266
                %v268 = vld [vmem:[%s152 + $0x390] sm:%s145]
                %269 = vst [vmem:[%s153 + $0x1c8] sm:%s145] %v268
                %v270 = vld [vmem:[%s152 + $0x3a0] sm:%s145]
                %271 = vst [vmem:[%s153 + $0x1d0] sm:%s145] %v270
                %v272 = vld [vmem:[%s152 + $0x3b0] sm:%s145]
                %273 = vst [vmem:[%s153 + $0x1d8] sm:%s145] %v272
                %v274 = vld [vmem:[%s152 + $0x3c0] sm:%s145]
                %275 = vst [vmem:[%s153 + $0x1e0] sm:%s145] %v274
                %v276 = vld [vmem:[%s152 + $0x3d0] sm:%s145]
                %277 = vst [vmem:[%s153 + $0x1e8] sm:%s145] %v276
                %v278 = vld [vmem:[%s152 + $0x3e0] sm:%s145]
                %279 = vst [vmem:[%s153 + $0x1f0] sm:%s145] %v278
                %v280 = vld [vmem:[%s152 + $0x3f0] sm:%s145]
                %281 = vst [vmem:[%s153 + $0x1f8] sm:%s145] %v280
              $region45: #{eeg_generator_forward.6} parent=39 // loop_footer
                %s151 = sadd.s32 1, %s147
              $region46: #{eeg_generator_forward.6} parent=39 // loop_footer_branch
                %146 = sbr.rel target = $region42
              $region47: #{eeg_generator_forward.6} parent=39 // loop_exit
                _
            $region40: #{eeg_generator_forward.6} parent=31 // pred_fallthru
              _
          $region32: #{eeg_generator_forward.6} parent=27 // pred_fallthru
            _
          %422 = vnop
        $region28: #{eeg_generator_forward.6} parent=23 // pred_fallthru
          _
      $region24: #{eeg_generator_forward.6} parent=5 // pred_fallthru
        _
      %p423 = scmp.le.s32.totalorder 1, %s9
      %p424 = scmp.lt.s32.totalorder %s9, 3
      %p425 = pnand %p423, %p424
      %p426 = pneg %p425
      // Predicated region
      $region63: #{eeg_generator_forward.6} parent=5 // pred_check
        _
      $region64: #{eeg_generator_forward.6} parent=5 // pred_check_branch
        %428 = sbr.rel (%p425) target = $region66
      $region65: #{eeg_generator_forward.6} parent=5 // pred_region
        %s429 = ssub.s32 %s9, 1
        %s430 = sand.u32 %s43, 1
        %s431 = sand.u32 %s43, 1
        %s432 = smul.addr %s431, 512
        %s433 = scalar_lea.vmem [#allocation2], %s432
        // Predicated region
        $region67: #{eeg_generator_forward.6} parent=65 // pred_check
          %p434 = pneg %p56
        $region68: #{eeg_generator_forward.6} parent=65 // pred_check_branch
          %436 = sbr.rel (%p434) target = $region70
        $region69: #{eeg_generator_forward.6} parent=65 // pred_region
          _
        $region70: #{eeg_generator_forward.6} parent=65 // pred_fallthru
          _
        %p437 = pneg %p30
        %p438 = pneg %p27
        %s439 = sand.u32 %s43, 1
        %s440 = sand.u32 %s43, 1
        %s441 = smul.addr %s440, 512
        %s442 = scalar_lea.vmem [#allocation2], %s441
        %p443 = pneg %p56
        %p444 = pneg %p53
        %p445 = pneg %p77
        %p446 = pneg %p74
        %p447 = pneg %p103
        %p448 = pneg %p100
        %s449 = sand.u32 %s90, 1
        %s450 = sand.u32 %s90, 1
        %s451 = smul.addr %s450, 16
        %s452 = scalar_lea.vmem [#allocation3], %s451
        %s453 = smul.u32 2, %s14
        %s454 = smul.u32 2, %s14
        %v455 = vld [vmem:[%s0] sm:$0xff]
        %v456 = vld [vmem:[%s0 + $0x8] sm:$0xff]
        %v457 = vld [vmem:[%s0 + $0x10] sm:$0xff]
        %v458 = vld [vmem:[%s0 + $0x18] sm:$0xff]
        %v459 = vld [vmem:[%s433] sm:$0xff]
        %v460 = vld [vmem:[%s433 + $0x8] sm:$0xff]
        %v461 = vld [vmem:[%s433 + $0x10] sm:$0xff]
        %v462 = vld [vmem:[%s433 + $0x18] sm:$0xff]
        %v463 = vld [vmem:[%s433 + $0x20] sm:$0xff]
        %v464 = vld [vmem:[%s433 + $0x28] sm:$0xff]
        %v465 = vld [vmem:[%s433 + $0x30] sm:$0xff]
        %v466 = vld [vmem:[%s433 + $0x38] sm:$0xff]
        %v467 = vld [vmem:[%s433 + $0x40] sm:$0xff]
        %v468 = vld [vmem:[%s433 + $0x48] sm:$0xff]
        %v469 = vld [vmem:[%s433 + $0x50] sm:$0xff]
        %v470 = vld [vmem:[%s433 + $0x58] sm:$0xff]
        %v471 = vld [vmem:[%s433 + $0x60] sm:$0xff]
        %v472 = vld [vmem:[%s433 + $0x68] sm:$0xff]
        %v473 = vld [vmem:[%s433 + $0x70] sm:$0xff]
        %v474 = vld [vmem:[%s433 + $0x78] sm:$0xff]
        %v475 = vld [vmem:[%s433 + $0x80] sm:$0xff]
        %v476 = vld [vmem:[%s433 + $0x88] sm:$0xff]
        %v477 = vld [vmem:[%s433 + $0x90] sm:$0xff]
        %v478 = vld [vmem:[%s433 + $0x98] sm:$0xff]
        %v479 = vld [vmem:[%s433 + $0xa0] sm:$0xff]
        %v480 = vld [vmem:[%s433 + $0xa8] sm:$0xff]
        %v481 = vld [vmem:[%s433 + $0xb0] sm:$0xff]
        %v482 = vld [vmem:[%s433 + $0xb8] sm:$0xff]
        %v483 = vld [vmem:[%s433 + $0xc0] sm:$0xff]
        %v484 = vld [vmem:[%s433 + $0xc8] sm:$0xff]
        %v485 = vld [vmem:[%s433 + $0xd0] sm:$0xff]
        %v486 = vld [vmem:[%s433 + $0xd8] sm:$0xff]
        %v487 = vld [vmem:[%s433 + $0xe0] sm:$0xff]
        %v488 = vld [vmem:[%s433 + $0xe8] sm:$0xff]
        %v489 = vld [vmem:[%s433 + $0xf0] sm:$0xff]
        %v490 = vld [vmem:[%s433 + $0xf8] sm:$0xff]
        %v491 = vld [vmem:[%s433 + $0x100] sm:$0xff]
        %v492 = vld [vmem:[%s433 + $0x108] sm:$0xff]
        %v493 = vld [vmem:[%s433 + $0x110] sm:$0xff]
        %v494 = vld [vmem:[%s433 + $0x118] sm:$0xff]
        %v495 = vld [vmem:[%s433 + $0x120] sm:$0xff]
        %v496 = vld [vmem:[%s433 + $0x128] sm:$0xff]
        %v497 = vld [vmem:[%s433 + $0x130] sm:$0xff]
        %v498 = vld [vmem:[%s433 + $0x138] sm:$0xff]
        %v499 = vld [vmem:[%s433 + $0x140] sm:$0xff]
        %v500 = vld [vmem:[%s433 + $0x148] sm:$0xff]
        %v501 = vld [vmem:[%s433 + $0x150] sm:$0xff]
        %v502 = vld [vmem:[%s433 + $0x158] sm:$0xff]
        %v503 = vld [vmem:[%s433 + $0x160] sm:$0xff]
        %v504 = vld [vmem:[%s433 + $0x168] sm:$0xff]
        %v505 = vld [vmem:[%s433 + $0x170] sm:$0xff]
        %v506 = vld [vmem:[%s433 + $0x178] sm:$0xff]
        %v507 = vld [vmem:[%s433 + $0x180] sm:$0xff]
        %v508 = vld [vmem:[%s433 + $0x188] sm:$0xff]
        %v509 = vld [vmem:[%s433 + $0x190] sm:$0xff]
        %v510 = vld [vmem:[%s433 + $0x198] sm:$0xff]
        %v511 = vld [vmem:[%s433 + $0x1a0] sm:$0xff]
        %v512 = vld [vmem:[%s433 + $0x1a8] sm:$0xff]
        %v513 = vld [vmem:[%s433 + $0x1b0] sm:$0xff]
        %v514 = vld [vmem:[%s433 + $0x1b8] sm:$0xff]
        %v515 = vld [vmem:[%s433 + $0x1c0] sm:$0xff]
        %v516 = vld [vmem:[%s433 + $0x1c8] sm:$0xff]
        %v517 = vld [vmem:[%s433 + $0x1d0] sm:$0xff]
        %v518 = vld [vmem:[%s433 + $0x1d8] sm:$0xff]
        %v519 = vld [vmem:[%s433 + $0x1e0] sm:$0xff]
        %v520 = vld [vmem:[%s433 + $0x1e8] sm:$0xff]
        %v521 = vld [vmem:[%s433 + $0x1f0] sm:$0xff]
        %v522 = vld [vmem:[%s433 + $0x1f8] sm:$0xff]
        %v523 = vld [vmem:[%s2] sm:$0xff]
        %v524 = vld [vmem:[%s2 + $0x8] sm:$0xff]
        %526 = vset.pattern.permute.xlu0 0
        %527 = vperm.xlu0 %526, %v523
        %v528 = vpop.permute.xlu0 %527
        %531 = vset.pattern.permute.xlu0 0
        %532 = vperm.xlu0 %531, %v524
        %v533 = vpop.permute.xlu0 %532
        %v539 = vunpack.c.l.b16 %v455
        %v540 = vunpack.c.h.b16 %v455
        %v541 = vunpack.c.l.b16 %v456
        %v542 = vunpack.c.h.b16 %v456
        %v543 = vunpack.c.l.b16 %v457
        %v544 = vunpack.c.h.b16 %v457
        %v545 = vunpack.c.l.b16 %v458
        %v546 = vunpack.c.h.b16 %v458
        %v547 = vpack.c.b16 %v543, %v539
        %v548 = vpack.c.b16 %v544, %v540
        %v549 = vpack.c.b16 %v545, %v541
        %v550 = vpack.c.b16 %v546, %v542
        %v619 = vunpack.c.l.b16 %v459
        %v620 = vunpack.c.h.b16 %v459
        %v621 = vunpack.c.l.b16 %v460
        %v622 = vunpack.c.h.b16 %v460
        %v623 = vunpack.c.l.b16 %v461
        %v624 = vunpack.c.h.b16 %v461
        %v625 = vunpack.c.l.b16 %v462
        %v626 = vunpack.c.h.b16 %v462
        %v627 = vunpack.c.l.b16 %v463
        %v628 = vunpack.c.h.b16 %v463
        %v629 = vunpack.c.l.b16 %v464
        %v630 = vunpack.c.h.b16 %v464
        %v631 = vunpack.c.l.b16 %v465
        %v632 = vunpack.c.h.b16 %v465
        %v633 = vunpack.c.l.b16 %v466
        %v634 = vunpack.c.h.b16 %v466
        %v635 = vunpack.c.l.b16 %v467
        %v636 = vunpack.c.h.b16 %v467
        %v637 = vunpack.c.l.b16 %v468
        %v638 = vunpack.c.h.b16 %v468
        %v639 = vunpack.c.l.b16 %v469
        %v640 = vunpack.c.h.b16 %v469
        %v641 = vunpack.c.l.b16 %v470
        %v642 = vunpack.c.h.b16 %v470
        %v643 = vunpack.c.l.b16 %v471
        %v644 = vunpack.c.h.b16 %v471
        %v645 = vunpack.c.l.b16 %v472
        %v646 = vunpack.c.h.b16 %v472
        %v647 = vunpack.c.l.b16 %v473
        %v648 = vunpack.c.h.b16 %v473
        %v649 = vunpack.c.l.b16 %v474
        %v650 = vunpack.c.h.b16 %v474
        %v651 = vunpack.c.l.b16 %v475
        %v652 = vunpack.c.h.b16 %v475
        %v653 = vunpack.c.l.b16 %v476
        %v654 = vunpack.c.h.b16 %v476
        %v655 = vunpack.c.l.b16 %v477
        %v656 = vunpack.c.h.b16 %v477
        %v657 = vunpack.c.l.b16 %v478
        %v658 = vunpack.c.h.b16 %v478
        %v659 = vunpack.c.l.b16 %v479
        %v660 = vunpack.c.h.b16 %v479
        %v661 = vunpack.c.l.b16 %v480
        %v662 = vunpack.c.h.b16 %v480
        %v663 = vunpack.c.l.b16 %v481
        %v664 = vunpack.c.h.b16 %v481
        %v665 = vunpack.c.l.b16 %v482
        %v666 = vunpack.c.h.b16 %v482
        %v667 = vunpack.c.l.b16 %v483
        %v668 = vunpack.c.h.b16 %v483
        %v669 = vunpack.c.l.b16 %v484
        %v670 = vunpack.c.h.b16 %v484
        %v671 = vunpack.c.l.b16 %v485
        %v672 = vunpack.c.h.b16 %v485
        %v673 = vunpack.c.l.b16 %v486
        %v674 = vunpack.c.h.b16 %v486
        %v675 = vunpack.c.l.b16 %v487
        %v676 = vunpack.c.h.b16 %v487
        %v677 = vunpack.c.l.b16 %v488
        %v678 = vunpack.c.h.b16 %v488
        %v679 = vunpack.c.l.b16 %v489
        %v680 = vunpack.c.h.b16 %v489
        %v681 = vunpack.c.l.b16 %v490
        %v682 = vunpack.c.h.b16 %v490
        %v683 = vunpack.c.l.b16 %v491
        %v684 = vunpack.c.h.b16 %v491
        %v685 = vunpack.c.l.b16 %v492
        %v686 = vunpack.c.h.b16 %v492
        %v687 = vunpack.c.l.b16 %v493
        %v688 = vunpack.c.h.b16 %v493
        %v689 = vunpack.c.l.b16 %v494
        %v690 = vunpack.c.h.b16 %v494
        %v691 = vunpack.c.l.b16 %v495
        %v692 = vunpack.c.h.b16 %v495
        %v693 = vunpack.c.l.b16 %v496
        %v694 = vunpack.c.h.b16 %v496
        %v695 = vunpack.c.l.b16 %v497
        %v696 = vunpack.c.h.b16 %v497
        %v697 = vunpack.c.l.b16 %v498
        %v698 = vunpack.c.h.b16 %v498
        %v699 = vunpack.c.l.b16 %v499
        %v700 = vunpack.c.h.b16 %v499
        %v701 = vunpack.c.l.b16 %v500
        %v702 = vunpack.c.h.b16 %v500
        %v703 = vunpack.c.l.b16 %v501
        %v704 = vunpack.c.h.b16 %v501
        %v705 = vunpack.c.l.b16 %v502
        %v706 = vunpack.c.h.b16 %v502
        %v707 = vunpack.c.l.b16 %v503
        %v708 = vunpack.c.h.b16 %v503
        %v709 = vunpack.c.l.b16 %v504
        %v710 = vunpack.c.h.b16 %v504
        %v711 = vunpack.c.l.b16 %v505
        %v712 = vunpack.c.h.b16 %v505
        %v713 = vunpack.c.l.b16 %v506
        %v714 = vunpack.c.h.b16 %v506
        %v715 = vunpack.c.l.b16 %v507
        %v716 = vunpack.c.h.b16 %v507
        %v717 = vunpack.c.l.b16 %v508
        %v718 = vunpack.c.h.b16 %v508
        %v719 = vunpack.c.l.b16 %v509
        %v720 = vunpack.c.h.b16 %v509
        %v721 = vunpack.c.l.b16 %v510
        %v722 = vunpack.c.h.b16 %v510
        %v723 = vunpack.c.l.b16 %v511
        %v724 = vunpack.c.h.b16 %v511
        %v725 = vunpack.c.l.b16 %v512
        %v726 = vunpack.c.h.b16 %v512
        %v727 = vunpack.c.l.b16 %v513
        %v728 = vunpack.c.h.b16 %v513
        %v729 = vunpack.c.l.b16 %v514
        %v730 = vunpack.c.h.b16 %v514
        %v731 = vunpack.c.l.b16 %v515
        %v732 = vunpack.c.h.b16 %v515
        %v733 = vunpack.c.l.b16 %v516
        %v734 = vunpack.c.h.b16 %v516
        %v735 = vunpack.c.l.b16 %v517
        %v736 = vunpack.c.h.b16 %v517
        %v737 = vunpack.c.l.b16 %v518
        %v738 = vunpack.c.h.b16 %v518
        %v739 = vunpack.c.l.b16 %v519
        %v740 = vunpack.c.h.b16 %v519
        %v741 = vunpack.c.l.b16 %v520
        %v742 = vunpack.c.h.b16 %v520
        %v743 = vunpack.c.l.b16 %v521
        %v744 = vunpack.c.h.b16 %v521
        %v745 = vunpack.c.l.b16 %v522
        %v746 = vunpack.c.h.b16 %v522
        %v747 = vpack.c.b16 %v621, %v619
        %v748 = vpack.c.b16 %v622, %v620
        %v749 = vpack.c.b16 %v625, %v623
        %v750 = vpack.c.b16 %v626, %v624
        %v751 = vpack.c.b16 %v629, %v627
        %v752 = vpack.c.b16 %v630, %v628
        %v753 = vpack.c.b16 %v633, %v631
        %v754 = vpack.c.b16 %v634, %v632
        %v755 = vpack.c.b16 %v637, %v635
        %v756 = vpack.c.b16 %v638, %v636
        %v757 = vpack.c.b16 %v641, %v639
        %v758 = vpack.c.b16 %v642, %v640
        %v759 = vpack.c.b16 %v645, %v643
        %v760 = vpack.c.b16 %v646, %v644
        %v761 = vpack.c.b16 %v649, %v647
        %v762 = vpack.c.b16 %v650, %v648
        %v763 = vpack.c.b16 %v653, %v651
        %v764 = vpack.c.b16 %v654, %v652
        %v765 = vpack.c.b16 %v657, %v655
        %v766 = vpack.c.b16 %v658, %v656
        %v767 = vpack.c.b16 %v661, %v659
        %v768 = vpack.c.b16 %v662, %v660
        %v769 = vpack.c.b16 %v665, %v663
        %v770 = vpack.c.b16 %v666, %v664
        %v771 = vpack.c.b16 %v669, %v667
        %v772 = vpack.c.b16 %v670, %v668
        %v773 = vpack.c.b16 %v673, %v671
        %v774 = vpack.c.b16 %v674, %v672
        %v775 = vpack.c.b16 %v677, %v675
        %v776 = vpack.c.b16 %v678, %v676
        %v777 = vpack.c.b16 %v681, %v679
        %v778 = vpack.c.b16 %v682, %v680
        %v779 = vpack.c.b16 %v685, %v683
        %v780 = vpack.c.b16 %v686, %v684
        %v781 = vpack.c.b16 %v689, %v687
        %v782 = vpack.c.b16 %v690, %v688
        %v783 = vpack.c.b16 %v693, %v691
        %v784 = vpack.c.b16 %v694, %v692
        %v785 = vpack.c.b16 %v697, %v695
        %v786 = vpack.c.b16 %v698, %v696
        %v787 = vpack.c.b16 %v701, %v699
        %v788 = vpack.c.b16 %v702, %v700
        %v789 = vpack.c.b16 %v705, %v703
        %v790 = vpack.c.b16 %v706, %v704
        %v791 = vpack.c.b16 %v709, %v707
        %v792 = vpack.c.b16 %v710, %v708
        %v793 = vpack.c.b16 %v713, %v711
        %v794 = vpack.c.b16 %v714, %v712
        %v795 = vpack.c.b16 %v717, %v715
        %v796 = vpack.c.b16 %v718, %v716
        %v797 = vpack.c.b16 %v721, %v719
        %v798 = vpack.c.b16 %v722, %v720
        %v799 = vpack.c.b16 %v725, %v723
        %v800 = vpack.c.b16 %v726, %v724
        %v801 = vpack.c.b16 %v729, %v727
        %v802 = vpack.c.b16 %v730, %v728
        %v803 = vpack.c.b16 %v733, %v731
        %v804 = vpack.c.b16 %v734, %v732
        %v805 = vpack.c.b16 %v737, %v735
        %v806 = vpack.c.b16 %v738, %v736
        %v807 = vpack.c.b16 %v741, %v739
        %v808 = vpack.c.b16 %v742, %v740
        %v809 = vpack.c.b16 %v745, %v743
        %v810 = vpack.c.b16 %v746, %v744
        %875 = vmatpush.bf16.msra.mxu0 %v761
        %876 = vmatpush.bf16.msra.mxu0 %v759
        %877 = vmatpush.bf16.msra.mxu0 %v757
        %878 = vmatpush.bf16.msra.mxu0 %v755
        %879 = vmatpush.bf16.msra.mxu0 %v753
        %880 = vmatpush.bf16.msra.mxu0 %v751
        %881 = vmatpush.bf16.msra.mxu0 %v749
        %882 = vmatpush.bf16.msra.mxu0 %v747
        %883 = vmatmul.bf16.gmra.mxu0 %v547
        %v884 = vpop.f32.mrf.mxu0
        %v885 = vadd.f32 %v528, %v884
        %v886 = vpop.f32.mrf.mxu0
        %v887 = vadd.f32 %v533, %v886
        %888 = vdwg.mxu0
        %889 = vmatpush.bf16.msra.mxu0 %v777
        %890 = vmatpush.bf16.msra.mxu0 %v775
        %891 = vmatpush.bf16.msra.mxu0 %v773
        %892 = vmatpush.bf16.msra.mxu0 %v771
        %893 = vmatpush.bf16.msra.mxu0 %v769
        %894 = vmatpush.bf16.msra.mxu0 %v767
        %895 = vmatpush.bf16.msra.mxu0 %v765
        %896 = vmatpush.bf16.msra.mxu0 %v763
        %897 = vmatmul.bf16.gmra.mxu0 %v548
        %v898 = vpop.f32.mrf.mxu0
        %v899 = vadd.f32 %v885, %v898
        %v900 = vpop.f32.mrf.mxu0
        %v901 = vadd.f32 %v887, %v900
        %902 = vdwg.mxu0
        %903 = vmatpush.bf16.msra.mxu0 %v793
        %904 = vmatpush.bf16.msra.mxu0 %v791
        %905 = vmatpush.bf16.msra.mxu0 %v789
        %906 = vmatpush.bf16.msra.mxu0 %v787
        %907 = vmatpush.bf16.msra.mxu0 %v785
        %908 = vmatpush.bf16.msra.mxu0 %v783
        %909 = vmatpush.bf16.msra.mxu0 %v781
        %910 = vmatpush.bf16.msra.mxu0 %v779
        %911 = vmatmul.bf16.gmra.mxu0 %v549
        %v912 = vpop.f32.mrf.mxu0
        %v913 = vadd.f32 %v899, %v912
        %v914 = vpop.f32.mrf.mxu0
        %v915 = vadd.f32 %v901, %v914
        %916 = vdwg.mxu0
        %917 = vmatpush.bf16.msra.mxu0 %v809
        %918 = vmatpush.bf16.msra.mxu0 %v807
        %919 = vmatpush.bf16.msra.mxu0 %v805
        %920 = vmatpush.bf16.msra.mxu0 %v803
        %921 = vmatpush.bf16.msra.mxu0 %v801
        %922 = vmatpush.bf16.msra.mxu0 %v799
        %923 = vmatpush.bf16.msra.mxu0 %v797
        %924 = vmatpush.bf16.msra.mxu0 %v795
        %925 = vmatmul.bf16.gmra.mxu0 %v550
        %v926 = vpop.f32.mrf.mxu0
        %v927 = vadd.f32 %v913, %v926
        %v928 = vpop.f32.mrf.mxu0
        %v929 = vadd.f32 %v915, %v928
        %930 = vdwg.mxu0
        %931 = vmatpush.bf16.msra.mxu0 %v762
        %932 = vmatpush.bf16.msra.mxu0 %v760
        %933 = vmatpush.bf16.msra.mxu0 %v758
        %934 = vmatpush.bf16.msra.mxu0 %v756
        %935 = vmatpush.bf16.msra.mxu0 %v754
        %936 = vmatpush.bf16.msra.mxu0 %v752
        %937 = vmatpush.bf16.msra.mxu0 %v750
        %938 = vmatpush.bf16.msra.mxu0 %v748
        %939 = vmatmul.bf16.gmra.mxu0 %v547
        %v940 = vpop.f32.mrf.mxu0
        %v941 = vadd.f32 %v528, %v940
        %v942 = vpop.f32.mrf.mxu0
        %v943 = vadd.f32 %v533, %v942
        %944 = vdwg.mxu0
        %945 = vmatpush.bf16.msra.mxu0 %v778
        %946 = vmatpush.bf16.msra.mxu0 %v776
        %947 = vmatpush.bf16.msra.mxu0 %v774
        %948 = vmatpush.bf16.msra.mxu0 %v772
        %949 = vmatpush.bf16.msra.mxu0 %v770
        %950 = vmatpush.bf16.msra.mxu0 %v768
        %951 = vmatpush.bf16.msra.mxu0 %v766
        %952 = vmatpush.bf16.msra.mxu0 %v764
        %953 = vmatmul.bf16.gmra.mxu0 %v548
        %v954 = vpop.f32.mrf.mxu0
        %v955 = vadd.f32 %v941, %v954
        %v956 = vpop.f32.mrf.mxu0
        %v957 = vadd.f32 %v943, %v956
        %958 = vdwg.mxu0
        %959 = vmatpush.bf16.msra.mxu0 %v794
        %960 = vmatpush.bf16.msra.mxu0 %v792
        %961 = vmatpush.bf16.msra.mxu0 %v790
        %962 = vmatpush.bf16.msra.mxu0 %v788
        %963 = vmatpush.bf16.msra.mxu0 %v786
        %964 = vmatpush.bf16.msra.mxu0 %v784
        %965 = vmatpush.bf16.msra.mxu0 %v782
        %966 = vmatpush.bf16.msra.mxu0 %v780
        %967 = vmatmul.bf16.gmra.mxu0 %v549
        %v968 = vpop.f32.mrf.mxu0
        %v969 = vadd.f32 %v955, %v968
        %v970 = vpop.f32.mrf.mxu0
        %v971 = vadd.f32 %v957, %v970
        %972 = vdwg.mxu0
        %973 = vmatpush.bf16.msra.mxu0 %v810
        %974 = vmatpush.bf16.msra.mxu0 %v808
        %975 = vmatpush.bf16.msra.mxu0 %v806
        %976 = vmatpush.bf16.msra.mxu0 %v804
        %977 = vmatpush.bf16.msra.mxu0 %v802
        %978 = vmatpush.bf16.msra.mxu0 %v800
        %979 = vmatpush.bf16.msra.mxu0 %v798
        %980 = vmatpush.bf16.msra.mxu0 %v796
        %981 = vmatmul.bf16.gmra.mxu0 %v550
        %v982 = vpop.f32.mrf.mxu0
        %v983 = vadd.f32 %v969, %v982
        %v984 = vpop.f32.mrf.mxu0
        %v985 = vadd.f32 %v971, %v984
        %986 = vdwg.mxu0
        %v987 = vmax.f32 %v927, 0.0
        %v988 = vmax.f32 %v983, 0.0
        %v989 = vmax.f32 %v929, 0.0
        %v990 = vmax.f32 %v985, 0.0
        %v991 = vpack.c.bf16 %v988, %v987
        %v992 = vpack.c.bf16 %v990, %v989
        %993 = vst [vmem:[%s452] sm:$0xff] %v991
        %994 = vst [vmem:[%s452 + $0x8] sm:$0xff] %v992
        %s995 = sand.u32 %s90, 1
        %s996 = sand.u32 %s90, 1
        %s997 = smul.addr %s996, 16
        %s998 = scalar_lea.vmem [#allocation3], %s997
        // Predicated region
        $region71: #{eeg_generator_forward.6} parent=65 // pred_check
          %p999 = pneg %p100
        $region72: #{eeg_generator_forward.6} parent=65 // pred_check_branch
          %1001 = sbr.rel (%p999) target = $region74
        $region73: #{eeg_generator_forward.6} parent=65 // pred_region
          %s1002 = smul.u32 2, %s14
          %s1003 = smul.addr %s1002, 4
          %s1004 = scalar_lea.vmem %s3, %s1003
          // Predicated region
          $region75: #{eeg_generator_forward.6} parent=73 // pred_check
            _
          $region76: #{eeg_generator_forward.6} parent=73 // pred_check_branch
            %1006 = sbr.rel (0) target = $region78
          $region77: #{eeg_generator_forward.6} parent=73 // pred_region
            // Predicated region
            $region79: #{eeg_generator_forward.6} parent=77 // pred_check
              _
            $region80: #{eeg_generator_forward.6} parent=77 // pred_check_branch
              %1008 = sbr.rel (0) target = $region82
            $region81: #{eeg_generator_forward.6} parent=77 // pred_region
              // Predicated region
              $region94: #{eeg_generator_forward.6} parent=81 // pred_check
                _
              $region95: #{eeg_generator_forward.6} parent=81 // pred_check_branch
                %1026 = sbr.rel (0) target = $region97
              $region96: #{eeg_generator_forward.6} parent=81 // pred_region
                loop: start=0, step=1, limit=1
                $region98: #{eeg_generator_forward.6} parent=96 // loop_pre_header
                  _
                $region99: #{eeg_generator_forward.6} parent=96 // loop_header
                  %s1028 = sphi 0, %s1032
                  %p1029 = scmp.ge.s32.totalorder %s1028, 1
                  %s1033 = sphi %s998, %s998
                  %s1034 = sphi %s1004, %s1004
                $region100: #{eeg_generator_forward.6} parent=96 // loop_header_branch
                  %1031 = sbr.rel (%p1029) target = $region104
                $region101: #{eeg_generator_forward.6} parent=96 // loop_body
                  %v1035 = vld [vmem:[%s1033] sm:$0xff]
                  %1036 = vst [vmem:[%s1034] sm:$0xff] %v1035
                  %v1037 = vld [vmem:[%s1033 + $0x8] sm:$0xff]
                  %1038 = vst [vmem:[%s1034 + $0x10] sm:$0xff] %v1037
                $region102: #{eeg_generator_forward.6} parent=96 // loop_footer
                  %s1032 = sadd.s32 1, %s1028
                $region103: #{eeg_generator_forward.6} parent=96 // loop_footer_branch
                  %1027 = sbr.rel target = $region99
                $region104: #{eeg_generator_forward.6} parent=96 // loop_exit
                  _
              $region97: #{eeg_generator_forward.6} parent=81 // pred_fallthru
                _
              // Predicated region
              $region105: #{eeg_generator_forward.6} parent=81 // pred_check
                _
              $region106: #{eeg_generator_forward.6} parent=81 // pred_check_branch
                %1040 = sbr.rel target = $region108
              $region107: #{eeg_generator_forward.6} parent=81 // pred_region
                _
              $region108: #{eeg_generator_forward.6} parent=81 // pred_fallthru
                _
            $region82: #{eeg_generator_forward.6} parent=77 // pred_fallthru
              _
            // Predicated region
            $region83: #{eeg_generator_forward.6} parent=77 // pred_check
              _
            $region84: #{eeg_generator_forward.6} parent=77 // pred_check_branch
              %1010 = sbr.rel target = $region86
            $region85: #{eeg_generator_forward.6} parent=77 // pred_region
              %s1012 = ssub.s32 256, 1
              loop: start=0, step=1, limit=1
              $region87: #{eeg_generator_forward.6} parent=85 // loop_pre_header
                _
              $region88: #{eeg_generator_forward.6} parent=85 // loop_header
                %s1014 = sphi 0, %s1018
                %p1015 = scmp.ge.s32.totalorder %s1014, 1
                %s1019 = sphi %s998, %s998
                %s1020 = sphi %s1004, %s1004
              $region89: #{eeg_generator_forward.6} parent=85 // loop_header_branch
                %1017 = sbr.rel (%p1015) target = $region93
              $region90: #{eeg_generator_forward.6} parent=85 // loop_body
                %v1021 = vld [vmem:[%s1019] sm:%s1012]
                %1022 = vst [vmem:[%s1020] sm:%s1012] %v1021
                %v1023 = vld [vmem:[%s1019 + $0x8] sm:%s1012]
                %1024 = vst [vmem:[%s1020 + $0x10] sm:%s1012] %v1023
              $region91: #{eeg_generator_forward.6} parent=85 // loop_footer
                %s1018 = sadd.s32 1, %s1014
              $region92: #{eeg_generator_forward.6} parent=85 // loop_footer_branch
                %1013 = sbr.rel target = $region88
              $region93: #{eeg_generator_forward.6} parent=85 // loop_exit
                _
            $region86: #{eeg_generator_forward.6} parent=77 // pred_fallthru
              _
          $region78: #{eeg_generator_forward.6} parent=73 // pred_fallthru
            _
          %1041 = vnop
        $region74: #{eeg_generator_forward.6} parent=65 // pred_fallthru
          _
      $region66: #{eeg_generator_forward.6} parent=5 // pred_fallthru
        _
      %p1042 = scmp.le.s32.totalorder 2, %s9
      // Predicated region
      $region109: #{eeg_generator_forward.6} parent=5 // pred_check
        %p1043 = pneg %p1042
      $region110: #{eeg_generator_forward.6} parent=5 // pred_check_branch
        %1045 = sbr.rel (%p1043) target = $region112
      $region111: #{eeg_generator_forward.6} parent=5 // pred_region
        %s1046 = ssub.s32 %s9, 2
        // Predicated region
        $region113: #{eeg_generator_forward.6} parent=111 // pred_check
          %p1047 = pneg %p106
        $region114: #{eeg_generator_forward.6} parent=111 // pred_check_branch
          %1049 = sbr.rel (%p1047) target = $region116
        $region115: #{eeg_generator_forward.6} parent=111 // pred_region
          %s1050 = sand.u32 %s91, 1
          %s1051 = sand.u32 %s91, 1
          %s1052 = smul.addr %s1051, 16
          %s1053 = scalar_lea.vmem [#allocation3], %s1052
        $region116: #{eeg_generator_forward.6} parent=111 // pred_fallthru
          _
      $region112: #{eeg_generator_forward.6} parent=5 // pred_fallthru
        _
    $region6: #{eeg_generator_forward.6} parent=1 // loop_footer
      %s13 = sadd.s32 1, %s9
    $region7: #{eeg_generator_forward.6} parent=1 // loop_footer_branch
      %8 = sbr.rel target = $region3
    $region8: #{eeg_generator_forward.6} parent=1 // loop_exit
      _

// kernel: eeg_generator_forward.7
$region0: #{eeg_generator_forward.7}
  #allocation0 [shape = 'u32[]', space=smem, size = 0x4, offset = 0x4, fixed_abs, tag = 'smem constant byte address 0x4 - core index']
  #allocation1 [shape = 'u32[72,128]{1,0:T(1,128)}', space=vmem, size = 0x9000, scoped, tag = 'internal scratch']
  %s0 = inlined_call_operand.vmem [shape: bf16[16,256], index: 0, kind: input, shape index: {}]
  %s1 = inlined_call_operand.vmem [shape: bf16[256,2048], index: 1, kind: input, shape index: {}]
  %s2 = inlined_call_operand.vmem [shape: f32[16,1], index: 2, kind: input, shape index: {}]
  %s3 = inlined_call_operand.vmem [shape: f32[16,2048], index: 3, kind: output, shape index: {}]
  %s4 = sld [smem:[#allocation0]]
  $region87: #{eeg_generator_forward.7} parent=0
    _
  %s6 = ssub.s32 1, %s4
  %s7 = scalar_select 0, %s6, %s4
  $region1: #{eeg_generator_forward.7} parent=0
    #allocation2 [shape = 'u8[1048576]{0}', space=vmem, size = 0x100000, scoped, tag = 'input window, operand 1']
    #allocation3 [shape = 'u8[131072]{0}', space=vmem, size = 0x20000, scoped, tag = 'output window, operand 0']
    loop: start=0, step=1, limit=4
    $region2: #{eeg_generator_forward.7} parent=1 // loop_pre_header
      _
    $region3: #{eeg_generator_forward.7} parent=1 // loop_header
      %s9 = sphi 0, %s13
      %p10 = scmp.ge.s32.totalorder %s9, 4
      %s17 = sphi 0, %s17
      %s19 = sphi 0, %s17
      %s20 = sphi 0, %s19
      %s34 = sphi 0, %s20
      %s40 = sphi 0, %s42
      %s43 = sphi 0, %s40
      %s44 = sphi 0, %s43
      %s60 = sphi 0, %s44
      %s64 = sphi 0, %s64
      %s66 = sphi 0, %s64
      %s67 = sphi 0, %s66
      %s81 = sphi 0, %s67
      %s87 = sphi 0, %s89
      %s90 = sphi 0, %s87
      %s91 = sphi 0, %s90
      %s107 = sphi 0, %s91
    $region4: #{eeg_generator_forward.7} parent=1 // loop_header_branch
      %12 = sbr.rel (%p10) target = $region8
    $region5: #{eeg_generator_forward.7} parent=1 // loop_body
      %s14 = ssub.s32 %s9, 1
      %s15 = ssub.s32 %s9, 2
      %s16 = sadd.s32 %s9, 1
      %s18 = sadd.s32 %s17, 1
      %p21 = scmp.eq.s32.totalorder %s9, 1
      %p22 = scmp.ne.s32.totalorder %s17, %s19
      %p23 = scmp.eq.s32.totalorder %s9, 0
      %p24 = por %p22, %p23
      %p25 = scmp.ne.s32.totalorder %s17, %s19
      %p26 = scmp.eq.s32.totalorder %s14, 1
      %p27 = por %p25, %p26
      %p28 = scmp.ne.s32.totalorder %s19, %s20
      %p29 = scmp.eq.s32.totalorder %s14, 0
      %p30 = por %p28, %p29
      %p31 = scmp.ne.s32.totalorder %s19, %s20
      %p32 = scmp.eq.s32.totalorder %s15, 1
      %p33 = por %p31, %p32
      %p35 = scmp.ne.s32.totalorder %s20, %s34
      %p36 = scmp.eq.s32.totalorder %s15, 0
      %p37 = por %p35, %p36
      %s38 = ssub.s32 %s9, %s16
      %p39 = scmp.eq.s32.totalorder %s38, 0
      %s41 = sadd.s32 %s40, 1
      %s42 = scalar_select %p39, %s40, %s41
      %p45 = pneg %p39
      %p46 = scmp.eq.s32.totalorder %s9, 1
      %p47 = por %p45, %p46
      %p48 = scmp.ne.s32.totalorder %s40, %s43
      %p49 = scmp.eq.s32.totalorder %s9, 0
      %p50 = por %p48, %p49
      %p51 = scmp.ne.s32.totalorder %s40, %s43
      %p52 = scmp.eq.s32.totalorder %s14, 1
      %p53 = por %p51, %p52
      %p54 = scmp.ne.s32.totalorder %s43, %s44
      %p55 = scmp.eq.s32.totalorder %s14, 0
      %p56 = por %p54, %p55
      %p57 = scmp.ne.s32.totalorder %s43, %s44
      %p58 = scmp.eq.s32.totalorder %s15, 1
      %p59 = por %p57, %p58
      %p61 = scmp.ne.s32.totalorder %s44, %s60
      %p62 = scmp.eq.s32.totalorder %s15, 0
      %p63 = por %p61, %p62
      %s65 = sadd.s32 %s64, 1
      %p68 = scmp.eq.s32.totalorder %s9, 1
      %p69 = scmp.ne.s32.totalorder %s64, %s66
      %p70 = scmp.eq.s32.totalorder %s9, 0
      %p71 = por %p69, %p70
      %p72 = scmp.ne.s32.totalorder %s64, %s66
      %p73 = scmp.eq.s32.totalorder %s14, 1
      %p74 = por %p72, %p73
      %p75 = scmp.ne.s32.totalorder %s66, %s67
      %p76 = scmp.eq.s32.totalorder %s14, 0
      %p77 = por %p75, %p76
      %p78 = scmp.ne.s32.totalorder %s66, %s67
      %p79 = scmp.eq.s32.totalorder %s15, 1
      %p80 = por %p78, %p79
      %p82 = scmp.ne.s32.totalorder %s67, %s81
      %p83 = scmp.eq.s32.totalorder %s15, 0
      %p84 = por %p82, %p83
      %s85 = ssub.s32 %s9, %s16
      %p86 = scmp.eq.s32.totalorder %s85, 0
      %s88 = sadd.s32 %s87, 1
      %s89 = scalar_select %p86, %s87, %s88
      %p92 = pneg %p86
      %p93 = scmp.eq.s32.totalorder %s9, 1
      %p94 = por %p92, %p93
      %p95 = scmp.ne.s32.totalorder %s87, %s90
      %p96 = scmp.eq.s32.totalorder %s9, 0
      %p97 = por %p95, %p96
      %p98 = scmp.ne.s32.totalorder %s87, %s90
      %p99 = scmp.eq.s32.totalorder %s14, 1
      %p100 = por %p98, %p99
      %p101 = scmp.ne.s32.totalorder %s90, %s91
      %p102 = scmp.eq.s32.totalorder %s14, 0
      %p103 = por %p101, %p102
      %p104 = scmp.ne.s32.totalorder %s90, %s91
      %p105 = scmp.eq.s32.totalorder %s15, 1
      %p106 = por %p104, %p105
      %p108 = scmp.ne.s32.totalorder %s91, %s107
      %p109 = scmp.eq.s32.totalorder %s15, 0
      %p110 = por %p108, %p109
      %p111 = scmp.le.s32.totalorder 1, %s9
      %p112 = scmp.lt.s32.totalorder %s9, 3
      %p113 = pnand %p111, %p112
      %p114 = pneg %p113
      // Predicated region
      $region9: #{eeg_generator_forward.7} parent=5 // pred_check
        _
      $region10: #{eeg_generator_forward.7} parent=5 // pred_check_branch
        %116 = sbr.rel (%p113) target = $region12
      $region11: #{eeg_generator_forward.7} parent=5 // pred_region
        %s117 = ssub.s32 %s9, 1
        // Predicated region
        $region13: #{eeg_generator_forward.7} parent=11 // pred_check
          %p118 = pneg %p30
        $region14: #{eeg_generator_forward.7} parent=11 // pred_check_branch
          %120 = sbr.rel (%p118) target = $region16
        $region15: #{eeg_generator_forward.7} parent=11 // pred_region
          _
        $region16: #{eeg_generator_forward.7} parent=11 // pred_fallthru
          _
        // Predicated region
        $region17: #{eeg_generator_forward.7} parent=11 // pred_check
          %p121 = pneg %p77
        $region18: #{eeg_generator_forward.7} parent=11 // pred_check_branch
          %123 = sbr.rel (%p121) target = $region20
        $region19: #{eeg_generator_forward.7} parent=11 // pred_region
          _
        $region20: #{eeg_generator_forward.7} parent=11 // pred_fallthru
          _
      $region12: #{eeg_generator_forward.7} parent=5 // pred_fallthru
        _
      %p124 = scmp.lt.s32.totalorder %s9, 2
      // Predicated region
      $region21: #{eeg_generator_forward.7} parent=5 // pred_check
        %p125 = pneg %p124
      $region22: #{eeg_generator_forward.7} parent=5 // pred_check_branch
        %127 = sbr.rel (%p125) target = $region24
      $region23: #{eeg_generator_forward.7} parent=5 // pred_region
        // Predicated region
        $region25: #{eeg_generator_forward.7} parent=23 // pred_check
          %p128 = pneg %p50
        $region26: #{eeg_generator_forward.7} parent=23 // pred_check_branch
          %130 = sbr.rel (%p128) target = $region28
        $region27: #{eeg_generator_forward.7} parent=23 // pred_region
          %s131 = sand.u32 %s40, 1
          %s132 = sand.u32 %s40, 1
          %s133 = smul.addr %s132, 1024
          %s134 = scalar_lea.vmem [#allocation2], %s133
          %s135 = smul.u32 8, %s9
          %s136 = smul.addr %s135, 4
          %s137 = scalar_lea.vmem %s1, %s136
          // Predicated region
          $region29: #{eeg_generator_forward.7} parent=27 // pred_check
            _
          $region30: #{eeg_generator_forward.7} parent=27 // pred_check_branch
            %139 = sbr.rel (0) target = $region32
          $region31: #{eeg_generator_forward.7} parent=27 // pred_region
            // Predicated region
            $region33: #{eeg_generator_forward.7} parent=31 // pred_check
              _
            $region34: #{eeg_generator_forward.7} parent=31 // pred_check_branch
              %141 = sbr.rel (0) target = $region36
            $region35: #{eeg_generator_forward.7} parent=31 // pred_region
              loop: start=0, step=1, limit=1
              $region37: #{eeg_generator_forward.7} parent=35 // loop_pre_header
                _
              $region38: #{eeg_generator_forward.7} parent=35 // loop_header
                %s143 = sphi 0, %s147
                %p144 = scmp.ge.s32.totalorder %s143, 1
                %s148 = sphi %s137, %s137
                %s149 = sphi %s134, %s134
              $region39: #{eeg_generator_forward.7} parent=35 // loop_header_branch
                %146 = sbr.rel (%p144) target = $region43
              $region40: #{eeg_generator_forward.7} parent=35 // loop_body
                %v150 = vld [vmem:[%s148] sm:$0xff]
                %151 = vst [vmem:[%s149] sm:$0xff] %v150
                %v152 = vld [vmem:[%s148 + $0x8] sm:$0xff]
                %153 = vst [vmem:[%s149 + $0x8] sm:$0xff] %v152
                %v154 = vld [vmem:[%s148 + $0x10] sm:$0xff]
                %155 = vst [vmem:[%s149 + $0x10] sm:$0xff] %v154
                %v156 = vld [vmem:[%s148 + $0x18] sm:$0xff]
                %157 = vst [vmem:[%s149 + $0x18] sm:$0xff] %v156
                %v158 = vld [vmem:[%s148 + $0x40] sm:$0xff]
                %159 = vst [vmem:[%s149 + $0x20] sm:$0xff] %v158
                %v160 = vld [vmem:[%s148 + $0x48] sm:$0xff]
                %161 = vst [vmem:[%s149 + $0x28] sm:$0xff] %v160
                %v162 = vld [vmem:[%s148 + $0x50] sm:$0xff]
                %163 = vst [vmem:[%s149 + $0x30] sm:$0xff] %v162
                %v164 = vld [vmem:[%s148 + $0x58] sm:$0xff]
                %165 = vst [vmem:[%s149 + $0x38] sm:$0xff] %v164
                %v166 = vld [vmem:[%s148 + $0x80] sm:$0xff]
                %167 = vst [vmem:[%s149 + $0x40] sm:$0xff] %v166
                %v168 = vld [vmem:[%s148 + $0x88] sm:$0xff]
                %169 = vst [vmem:[%s149 + $0x48] sm:$0xff] %v168
                %v170 = vld [vmem:[%s148 + $0x90] sm:$0xff]
                %171 = vst [vmem:[%s149 + $0x50] sm:$0xff] %v170
                %v172 = vld [vmem:[%s148 + $0x98] sm:$0xff]
                %173 = vst [vmem:[%s149 + $0x58] sm:$0xff] %v172
                %v174 = vld [vmem:[%s148 + $0xc0] sm:$0xff]
                %175 = vst [vmem:[%s149 + $0x60] sm:$0xff] %v174
                %v176 = vld [vmem:[%s148 + $0xc8] sm:$0xff]
                %177 = vst [vmem:[%s149 + $0x68] sm:$0xff] %v176
                %v178 = vld [vmem:[%s148 + $0xd0] sm:$0xff]
                %179 = vst [vmem:[%s149 + $0x70] sm:$0xff] %v178
                %v180 = vld [vmem:[%s148 + $0xd8] sm:$0xff]
                %181 = vst [vmem:[%s149 + $0x78] sm:$0xff] %v180
                %v182 = vld [vmem:[%s148 + $0x100] sm:$0xff]
                %183 = vst [vmem:[%s149 + $0x80] sm:$0xff] %v182
                %v184 = vld [vmem:[%s148 + $0x108] sm:$0xff]
                %185 = vst [vmem:[%s149 + $0x88] sm:$0xff] %v184
                %v186 = vld [vmem:[%s148 + $0x110] sm:$0xff]
                %187 = vst [vmem:[%s149 + $0x90] sm:$0xff] %v186
                %v188 = vld [vmem:[%s148 + $0x118] sm:$0xff]
                %189 = vst [vmem:[%s149 + $0x98] sm:$0xff] %v188
                %v190 = vld [vmem:[%s148 + $0x140] sm:$0xff]
                %191 = vst [vmem:[%s149 + $0xa0] sm:$0xff] %v190
                %v192 = vld [vmem:[%s148 + $0x148] sm:$0xff]
                %193 = vst [vmem:[%s149 + $0xa8] sm:$0xff] %v192
                %v194 = vld [vmem:[%s148 + $0x150] sm:$0xff]
                %195 = vst [vmem:[%s149 + $0xb0] sm:$0xff] %v194
                %v196 = vld [vmem:[%s148 + $0x158] sm:$0xff]
                %197 = vst [vmem:[%s149 + $0xb8] sm:$0xff] %v196
                %v198 = vld [vmem:[%s148 + $0x180] sm:$0xff]
                %199 = vst [vmem:[%s149 + $0xc0] sm:$0xff] %v198
                %v200 = vld [vmem:[%s148 + $0x188] sm:$0xff]
                %201 = vst [vmem:[%s149 + $0xc8] sm:$0xff] %v200
                %v202 = vld [vmem:[%s148 + $0x190] sm:$0xff]
                %203 = vst [vmem:[%s149 + $0xd0] sm:$0xff] %v202
                %v204 = vld [vmem:[%s148 + $0x198] sm:$0xff]
                %205 = vst [vmem:[%s149 + $0xd8] sm:$0xff] %v204
                %v206 = vld [vmem:[%s148 + $0x1c0] sm:$0xff]
                %207 = vst [vmem:[%s149 + $0xe0] sm:$0xff] %v206
                %v208 = vld [vmem:[%s148 + $0x1c8] sm:$0xff]
                %209 = vst [vmem:[%s149 + $0xe8] sm:$0xff] %v208
                %v210 = vld [vmem:[%s148 + $0x1d0] sm:$0xff]
                %211 = vst [vmem:[%s149 + $0xf0] sm:$0xff] %v210
                %v212 = vld [vmem:[%s148 + $0x1d8] sm:$0xff]
                %213 = vst [vmem:[%s149 + $0xf8] sm:$0xff] %v212
                %v214 = vld [vmem:[%s148 + $0x200] sm:$0xff]
                %215 = vst [vmem:[%s149 + $0x100] sm:$0xff] %v214
                %v216 = vld [vmem:[%s148 + $0x208] sm:$0xff]
                %217 = vst [vmem:[%s149 + $0x108] sm:$0xff] %v216
                %v218 = vld [vmem:[%s148 + $0x210] sm:$0xff]
                %219 = vst [vmem:[%s149 + $0x110] sm:$0xff] %v218
                %v220 = vld [vmem:[%s148 + $0x218] sm:$0xff]
                %221 = vst [vmem:[%s149 + $0x118] sm:$0xff] %v220
                %v222 = vld [vmem:[%s148 + $0x240] sm:$0xff]
                %223 = vst [vmem:[%s149 + $0x120] sm:$0xff] %v222
                %v224 = vld [vmem:[%s148 + $0x248] sm:$0xff]
                %225 = vst [vmem:[%s149 + $0x128] sm:$0xff] %v224
                %v226 = vld [vmem:[%s148 + $0x250] sm:$0xff]
                %227 = vst [vmem:[%s149 + $0x130] sm:$0xff] %v226
                %v228 = vld [vmem:[%s148 + $0x258] sm:$0xff]
                %229 = vst [vmem:[%s149 + $0x138] sm:$0xff] %v228
                %v230 = vld [vmem:[%s148 + $0x280] sm:$0xff]
                %231 = vst [vmem:[%s149 + $0x140] sm:$0xff] %v230
                %v232 = vld [vmem:[%s148 + $0x288] sm:$0xff]
                %233 = vst [vmem:[%s149 + $0x148] sm:$0xff] %v232
                %v234 = vld [vmem:[%s148 + $0x290] sm:$0xff]
                %235 = vst [vmem:[%s149 + $0x150] sm:$0xff] %v234
                %v236 = vld [vmem:[%s148 + $0x298] sm:$0xff]
                %237 = vst [vmem:[%s149 + $0x158] sm:$0xff] %v236
                %v238 = vld [vmem:[%s148 + $0x2c0] sm:$0xff]
                %239 = vst [vmem:[%s149 + $0x160] sm:$0xff] %v238
                %v240 = vld [vmem:[%s148 + $0x2c8] sm:$0xff]
                %241 = vst [vmem:[%s149 + $0x168] sm:$0xff] %v240
                %v242 = vld [vmem:[%s148 + $0x2d0] sm:$0xff]
                %243 = vst [vmem:[%s149 + $0x170] sm:$0xff] %v242
                %v244 = vld [vmem:[%s148 + $0x2d8] sm:$0xff]
                %245 = vst [vmem:[%s149 + $0x178] sm:$0xff] %v244
                %v246 = vld [vmem:[%s148 + $0x300] sm:$0xff]
                %247 = vst [vmem:[%s149 + $0x180] sm:$0xff] %v246
                %v248 = vld [vmem:[%s148 + $0x308] sm:$0xff]
                %249 = vst [vmem:[%s149 + $0x188] sm:$0xff] %v248
                %v250 = vld [vmem:[%s148 + $0x310] sm:$0xff]
                %251 = vst [vmem:[%s149 + $0x190] sm:$0xff] %v250
                %v252 = vld [vmem:[%s148 + $0x318] sm:$0xff]
                %253 = vst [vmem:[%s149 + $0x198] sm:$0xff] %v252
                %v254 = vld [vmem:[%s148 + $0x340] sm:$0xff]
                %255 = vst [vmem:[%s149 + $0x1a0] sm:$0xff] %v254
                %v256 = vld [vmem:[%s148 + $0x348] sm:$0xff]
                %257 = vst [vmem:[%s149 + $0x1a8] sm:$0xff] %v256
                %v258 = vld [vmem:[%s148 + $0x350] sm:$0xff]
                %259 = vst [vmem:[%s149 + $0x1b0] sm:$0xff] %v258
                %v260 = vld [vmem:[%s148 + $0x358] sm:$0xff]
                %261 = vst [vmem:[%s149 + $0x1b8] sm:$0xff] %v260
                %v262 = vld [vmem:[%s148 + $0x380] sm:$0xff]
                %263 = vst [vmem:[%s149 + $0x1c0] sm:$0xff] %v262
                %v264 = vld [vmem:[%s148 + $0x388] sm:$0xff]
                %265 = vst [vmem:[%s149 + $0x1c8] sm:$0xff] %v264
                %v266 = vld [vmem:[%s148 + $0x390] sm:$0xff]
                %267 = vst [vmem:[%s149 + $0x1d0] sm:$0xff] %v266
                %v268 = vld [vmem:[%s148 + $0x398] sm:$0xff]
                %269 = vst [vmem:[%s149 + $0x1d8] sm:$0xff] %v268
                %v270 = vld [vmem:[%s148 + $0x3c0] sm:$0xff]
                %271 = vst [vmem:[%s149 + $0x1e0] sm:$0xff] %v270
                %v272 = vld [vmem:[%s148 + $0x3c8] sm:$0xff]
                %273 = vst [vmem:[%s149 + $0x1e8] sm:$0xff] %v272
                %v274 = vld [vmem:[%s148 + $0x3d0] sm:$0xff]
                %275 = vst [vmem:[%s149 + $0x1f0] sm:$0xff] %v274
                %v276 = vld [vmem:[%s148 + $0x3d8] sm:$0xff]
                %277 = vst [vmem:[%s149 + $0x1f8] sm:$0xff] %v276
                %v278 = vld [vmem:[%s148 + $0x400] sm:$0xff]
                %279 = vst [vmem:[%s149 + $0x200] sm:$0xff] %v278
                %v280 = vld [vmem:[%s148 + $0x408] sm:$0xff]
                %281 = vst [vmem:[%s149 + $0x208] sm:$0xff] %v280
                %v282 = vld [vmem:[%s148 + $0x410] sm:$0xff]
                %283 = vst [vmem:[%s149 + $0x210] sm:$0xff] %v282
                %v284 = vld [vmem:[%s148 + $0x418] sm:$0xff]
                %285 = vst [vmem:[%s149 + $0x218] sm:$0xff] %v284
                %v286 = vld [vmem:[%s148 + $0x440] sm:$0xff]
                %287 = vst [vmem:[%s149 + $0x220] sm:$0xff] %v286
                %v288 = vld [vmem:[%s148 + $0x448] sm:$0xff]
                %289 = vst [vmem:[%s149 + $0x228] sm:$0xff] %v288
                %v290 = vld [vmem:[%s148 + $0x450] sm:$0xff]
                %291 = vst [vmem:[%s149 + $0x230] sm:$0xff] %v290
                %v292 = vld [vmem:[%s148 + $0x458] sm:$0xff]
                %293 = vst [vmem:[%s149 + $0x238] sm:$0xff] %v292
                %v294 = vld [vmem:[%s148 + $0x480] sm:$0xff]
                %295 = vst [vmem:[%s149 + $0x240] sm:$0xff] %v294
                %v296 = vld [vmem:[%s148 + $0x488] sm:$0xff]
                %297 = vst [vmem:[%s149 + $0x248] sm:$0xff] %v296
                %v298 = vld [vmem:[%s148 + $0x490] sm:$0xff]
                %299 = vst [vmem:[%s149 + $0x250] sm:$0xff] %v298
                %v300 = vld [vmem:[%s148 + $0x498] sm:$0xff]
                %301 = vst [vmem:[%s149 + $0x258] sm:$0xff] %v300
                %v302 = vld [vmem:[%s148 + $0x4c0] sm:$0xff]
                %303 = vst [vmem:[%s149 + $0x260] sm:$0xff] %v302
                %v304 = vld [vmem:[%s148 + $0x4c8] sm:$0xff]
                %305 = vst [vmem:[%s149 + $0x268] sm:$0xff] %v304
                %v306 = vld [vmem:[%s148 + $0x4d0] sm:$0xff]
                %307 = vst [vmem:[%s149 + $0x270] sm:$0xff] %v306
                %v308 = vld [vmem:[%s148 + $0x4d8] sm:$0xff]
                %309 = vst [vmem:[%s149 + $0x278] sm:$0xff] %v308
                %v310 = vld [vmem:[%s148 + $0x500] sm:$0xff]
                %311 = vst [vmem:[%s149 + $0x280] sm:$0xff] %v310
                %v312 = vld [vmem:[%s148 + $0x508] sm:$0xff]
                %313 = vst [vmem:[%s149 + $0x288] sm:$0xff] %v312
                %v314 = vld [vmem:[%s148 + $0x510] sm:$0xff]
                %315 = vst [vmem:[%s149 + $0x290] sm:$0xff] %v314
                %v316 = vld [vmem:[%s148 + $0x518] sm:$0xff]
                %317 = vst [vmem:[%s149 + $0x298] sm:$0xff] %v316
                %v318 = vld [vmem:[%s148 + $0x540] sm:$0xff]
                %319 = vst [vmem:[%s149 + $0x2a0] sm:$0xff] %v318
                %v320 = vld [vmem:[%s148 + $0x548] sm:$0xff]
                %321 = vst [vmem:[%s149 + $0x2a8] sm:$0xff] %v320
                %v322 = vld [vmem:[%s148 + $0x550] sm:$0xff]
                %323 = vst [vmem:[%s149 + $0x2b0] sm:$0xff] %v322
                %v324 = vld [vmem:[%s148 + $0x558] sm:$0xff]
                %325 = vst [vmem:[%s149 + $0x2b8] sm:$0xff] %v324
                %v326 = vld [vmem:[%s148 + $0x580] sm:$0xff]
                %327 = vst [vmem:[%s149 + $0x2c0] sm:$0xff] %v326
                %v328 = vld [vmem:[%s148 + $0x588] sm:$0xff]
                %329 = vst [vmem:[%s149 + $0x2c8] sm:$0xff] %v328
                %v330 = vld [vmem:[%s148 + $0x590] sm:$0xff]
                %331 = vst [vmem:[%s149 + $0x2d0] sm:$0xff] %v330
                %v332 = vld [vmem:[%s148 + $0x598] sm:$0xff]
                %333 = vst [vmem:[%s149 + $0x2d8] sm:$0xff] %v332
                %v334 = vld [vmem:[%s148 + $0x5c0] sm:$0xff]
                %335 = vst [vmem:[%s149 + $0x2e0] sm:$0xff] %v334
                %v336 = vld [vmem:[%s148 + $0x5c8] sm:$0xff]
                %337 = vst [vmem:[%s149 + $0x2e8] sm:$0xff] %v336
                %v338 = vld [vmem:[%s148 + $0x5d0] sm:$0xff]
                %339 = vst [vmem:[%s149 + $0x2f0] sm:$0xff] %v338
                %v340 = vld [vmem:[%s148 + $0x5d8] sm:$0xff]
                %341 = vst [vmem:[%s149 + $0x2f8] sm:$0xff] %v340
                %v342 = vld [vmem:[%s148 + $0x600] sm:$0xff]
                %343 = vst [vmem:[%s149 + $0x300] sm:$0xff] %v342
                %v344 = vld [vmem:[%s148 + $0x608] sm:$0xff]
                %345 = vst [vmem:[%s149 + $0x308] sm:$0xff] %v344
                %v346 = vld [vmem:[%s148 + $0x610] sm:$0xff]
                %347 = vst [vmem:[%s149 + $0x310] sm:$0xff] %v346
                %v348 = vld [vmem:[%s148 + $0x618] sm:$0xff]
                %349 = vst [vmem:[%s149 + $0x318] sm:$0xff] %v348
                %v350 = vld [vmem:[%s148 + $0x640] sm:$0xff]
                %351 = vst [vmem:[%s149 + $0x320] sm:$0xff] %v350
                %v352 = vld [vmem:[%s148 + $0x648] sm:$0xff]
                %353 = vst [vmem:[%s149 + $0x328] sm:$0xff] %v352
                %v354 = vld [vmem:[%s148 + $0x650] sm:$0xff]
                %355 = vst [vmem:[%s149 + $0x330] sm:$0xff] %v354
                %v356 = vld [vmem:[%s148 + $0x658] sm:$0xff]
                %357 = vst [vmem:[%s149 + $0x338] sm:$0xff] %v356
                %v358 = vld [vmem:[%s148 + $0x680] sm:$0xff]
                %359 = vst [vmem:[%s149 + $0x340] sm:$0xff] %v358
                %v360 = vld [vmem:[%s148 + $0x688] sm:$0xff]
                %361 = vst [vmem:[%s149 + $0x348] sm:$0xff] %v360
                %v362 = vld [vmem:[%s148 + $0x690] sm:$0xff]
                %363 = vst [vmem:[%s149 + $0x350] sm:$0xff] %v362
                %v364 = vld [vmem:[%s148 + $0x698] sm:$0xff]
                %365 = vst [vmem:[%s149 + $0x358] sm:$0xff] %v364
                %v366 = vld [vmem:[%s148 + $0x6c0] sm:$0xff]
                %367 = vst [vmem:[%s149 + $0x360] sm:$0xff] %v366
                %v368 = vld [vmem:[%s148 + $0x6c8] sm:$0xff]
                %369 = vst [vmem:[%s149 + $0x368] sm:$0xff] %v368
                %v370 = vld [vmem:[%s148 + $0x6d0] sm:$0xff]
                %371 = vst [vmem:[%s149 + $0x370] sm:$0xff] %v370
                %v372 = vld [vmem:[%s148 + $0x6d8] sm:$0xff]
                %373 = vst [vmem:[%s149 + $0x378] sm:$0xff] %v372
                %v374 = vld [vmem:[%s148 + $0x700] sm:$0xff]
                %375 = vst [vmem:[%s149 + $0x380] sm:$0xff] %v374
                %v376 = vld [vmem:[%s148 + $0x708] sm:$0xff]
                %377 = vst [vmem:[%s149 + $0x388] sm:$0xff] %v376
                %v378 = vld [vmem:[%s148 + $0x710] sm:$0xff]
                %379 = vst [vmem:[%s149 + $0x390] sm:$0xff] %v378
                %v380 = vld [vmem:[%s148 + $0x718] sm:$0xff]
                %381 = vst [vmem:[%s149 + $0x398] sm:$0xff] %v380
                %v382 = vld [vmem:[%s148 + $0x740] sm:$0xff]
                %383 = vst [vmem:[%s149 + $0x3a0] sm:$0xff] %v382
                %v384 = vld [vmem:[%s148 + $0x748] sm:$0xff]
                %385 = vst [vmem:[%s149 + $0x3a8] sm:$0xff] %v384
                %v386 = vld [vmem:[%s148 + $0x750] sm:$0xff]
                %387 = vst [vmem:[%s149 + $0x3b0] sm:$0xff] %v386
                %v388 = vld [vmem:[%s148 + $0x758] sm:$0xff]
                %389 = vst [vmem:[%s149 + $0x3b8] sm:$0xff] %v388
                %v390 = vld [vmem:[%s148 + $0x780] sm:$0xff]
                %391 = vst [vmem:[%s149 + $0x3c0] sm:$0xff] %v390
                %v392 = vld [vmem:[%s148 + $0x788] sm:$0xff]
                %393 = vst [vmem:[%s149 + $0x3c8] sm:$0xff] %v392
                %v394 = vld [vmem:[%s148 + $0x790] sm:$0xff]
                %395 = vst [vmem:[%s149 + $0x3d0] sm:$0xff] %v394
                %v396 = vld [vmem:[%s148 + $0x798] sm:$0xff]
                %397 = vst [vmem:[%s149 + $0x3d8] sm:$0xff] %v396
                %v398 = vld [vmem:[%s148 + $0x7c0] sm:$0xff]
                %399 = vst [vmem:[%s149 + $0x3e0] sm:$0xff] %v398
                %v400 = vld [vmem:[%s148 + $0x7c8] sm:$0xff]
                %401 = vst [vmem:[%s149 + $0x3e8] sm:$0xff] %v400
                %v402 = vld [vmem:[%s148 + $0x7d0] sm:$0xff]
                %403 = vst [vmem:[%s149 + $0x3f0] sm:$0xff] %v402
                %v404 = vld [vmem:[%s148 + $0x7d8] sm:$0xff]
                %405 = vst [vmem:[%s149 + $0x3f8] sm:$0xff] %v404
              $region41: #{eeg_generator_forward.7} parent=35 // loop_footer
                %s147 = sadd.s32 1, %s143
              $region42: #{eeg_generator_forward.7} parent=35 // loop_footer_branch
                %142 = sbr.rel target = $region38
              $region43: #{eeg_generator_forward.7} parent=35 // loop_exit
                _
            $region36: #{eeg_generator_forward.7} parent=31 // pred_fallthru
              _
            // Predicated region
            $region44: #{eeg_generator_forward.7} parent=31 // pred_check
              _
            $region45: #{eeg_generator_forward.7} parent=31 // pred_check_branch
              %407 = sbr.rel target = $region47
            $region46: #{eeg_generator_forward.7} parent=31 // pred_region
              _
            $region47: #{eeg_generator_forward.7} parent=31 // pred_fallthru
              _
          $region32: #{eeg_generator_forward.7} parent=27 // pred_fallthru
            _
          %408 = vnop
        $region28: #{eeg_generator_forward.7} parent=23 // pred_fallthru
          _
      $region24: #{eeg_generator_forward.7} parent=5 // pred_fallthru
        _
      %p409 = scmp.le.s32.totalorder 1, %s9
      %p410 = scmp.lt.s32.totalorder %s9, 3
      %p411 = pnand %p409, %p410
      %p412 = pneg %p411
      // Predicated region
      $region48: #{eeg_generator_forward.7} parent=5 // pred_check
        _
      $region49: #{eeg_generator_forward.7} parent=5 // pred_check_branch
        %414 = sbr.rel (%p411) target = $region51
      $region50: #{eeg_generator_forward.7} parent=5 // pred_region
        %s415 = ssub.s32 %s9, 1
        %s416 = sand.u32 %s43, 1
        %s417 = sand.u32 %s43, 1
        %s418 = smul.addr %s417, 1024
        %s419 = scalar_lea.vmem [#allocation2], %s418
        // Predicated region
        $region52: #{eeg_generator_forward.7} parent=50 // pred_check
          %p420 = pneg %p56
        $region53: #{eeg_generator_forward.7} parent=50 // pred_check_branch
          %422 = sbr.rel (%p420) target = $region55
        $region54: #{eeg_generator_forward.7} parent=50 // pred_region
          _
        $region55: #{eeg_generator_forward.7} parent=50 // pred_fallthru
          _
        %p423 = pneg %p30
        %p424 = pneg %p27
        %s425 = sand.u32 %s43, 1
        %s426 = sand.u32 %s43, 1
        %s427 = smul.addr %s426, 1024
        %s428 = scalar_lea.vmem [#allocation2], %s427
        %p429 = pneg %p56
        %p430 = pneg %p53
        %p431 = pneg %p77
        %p432 = pneg %p74
        %p433 = pneg %p103
        %p434 = pneg %p100
        %s435 = sand.u32 %s90, 1
        %s436 = sand.u32 %s90, 1
        %s437 = smul.addr %s436, 128
        %s438 = scalar_lea.vmem [#allocation3], %s437
        %s439 = smul.u32 8, %s14
        %s440 = smul.u32 8, %s14
        %v441 = vld [vmem:[%s0] sm:$0xff]
        %v442 = vld [vmem:[%s0 + $0x8] sm:$0xff]
        %v443 = vld [vmem:[%s419] sm:$0xff]
        %v444 = vld [vmem:[%s419 + $0x8] sm:$0xff]
        %v445 = vld [vmem:[%s419 + $0x10] sm:$0xff]
        %v446 = vld [vmem:[%s419 + $0x18] sm:$0xff]
        %v447 = vld [vmem:[%s419 + $0x20] sm:$0xff]
        %v448 = vld [vmem:[%s419 + $0x28] sm:$0xff]
        %v449 = vld [vmem:[%s419 + $0x30] sm:$0xff]
        %v450 = vld [vmem:[%s419 + $0x38] sm:$0xff]
        %v451 = vld [vmem:[%s419 + $0x40] sm:$0xff]
        %v452 = vld [vmem:[%s419 + $0x48] sm:$0xff]
        %v453 = vld [vmem:[%s419 + $0x50] sm:$0xff]
        %v454 = vld [vmem:[%s419 + $0x58] sm:$0xff]
        %v455 = vld [vmem:[%s419 + $0x60] sm:$0xff]
        %v456 = vld [vmem:[%s419 + $0x68] sm:$0xff]
        %v457 = vld [vmem:[%s419 + $0x70] sm:$0xff]
        %v458 = vld [vmem:[%s419 + $0x78] sm:$0xff]
        %v459 = vld [vmem:[%s419 + $0x80] sm:$0xff]
        %v460 = vld [vmem:[%s419 + $0x88] sm:$0xff]
        %v461 = vld [vmem:[%s419 + $0x90] sm:$0xff]
        %v462 = vld [vmem:[%s419 + $0x98] sm:$0xff]
        %v463 = vld [vmem:[%s419 + $0xa0] sm:$0xff]
        %v464 = vld [vmem:[%s419 + $0xa8] sm:$0xff]
        %v465 = vld [vmem:[%s419 + $0xb0] sm:$0xff]
        %v466 = vld [vmem:[%s419 + $0xb8] sm:$0xff]
        %v467 = vld [vmem:[%s419 + $0xc0] sm:$0xff]
        %v468 = vld [vmem:[%s419 + $0xc8] sm:$0xff]
        %v469 = vld [vmem:[%s419 + $0xd0] sm:$0xff]
        %v470 = vld [vmem:[%s419 + $0xd8] sm:$0xff]
        %v471 = vld [vmem:[%s419 + $0xe0] sm:$0xff]
        %v472 = vld [vmem:[%s419 + $0xe8] sm:$0xff]
        %v473 = vld [vmem:[%s419 + $0xf0] sm:$0xff]
        %v474 = vld [vmem:[%s419 + $0xf8] sm:$0xff]
        %v475 = vld [vmem:[%s419 + $0x100] sm:$0xff]
        %v476 = vld [vmem:[%s419 + $0x108] sm:$0xff]
        %v477 = vld [vmem:[%s419 + $0x110] sm:$0xff]
        %v478 = vld [vmem:[%s419 + $0x118] sm:$0xff]
        %v479 = vld [vmem:[%s419 + $0x120] sm:$0xff]
        %v480 = vld [vmem:[%s419 + $0x128] sm:$0xff]
        %v481 = vld [vmem:[%s419 + $0x130] sm:$0xff]
        %v482 = vld [vmem:[%s419 + $0x138] sm:$0xff]
        %v483 = vld [vmem:[%s419 + $0x140] sm:$0xff]
        %v484 = vld [vmem:[%s419 + $0x148] sm:$0xff]
        %v485 = vld [vmem:[%s419 + $0x150] sm:$0xff]
        %v486 = vld [vmem:[%s419 + $0x158] sm:$0xff]
        %v487 = vld [vmem:[%s419 + $0x160] sm:$0xff]
        %v488 = vld [vmem:[%s419 + $0x168] sm:$0xff]
        %v489 = vld [vmem:[%s419 + $0x170] sm:$0xff]
        %v490 = vld [vmem:[%s419 + $0x178] sm:$0xff]
        %v491 = vld [vmem:[%s419 + $0x180] sm:$0xff]
        %v492 = vld [vmem:[%s419 + $0x188] sm:$0xff]
        %v493 = vld [vmem:[%s419 + $0x190] sm:$0xff]
        %v494 = vld [vmem:[%s419 + $0x198] sm:$0xff]
        %v495 = vld [vmem:[%s419 + $0x1a0] sm:$0xff]
        %v496 = vld [vmem:[%s419 + $0x1a8] sm:$0xff]
        %v497 = vld [vmem:[%s419 + $0x1b0] sm:$0xff]
        %v498 = vld [vmem:[%s419 + $0x1b8] sm:$0xff]
        %v499 = vld [vmem:[%s419 + $0x1c0] sm:$0xff]
        %v500 = vld [vmem:[%s419 + $0x1c8] sm:$0xff]
        %v501 = vld [vmem:[%s419 + $0x1d0] sm:$0xff]
        %v502 = vld [vmem:[%s419 + $0x1d8] sm:$0xff]
        %v503 = vld [vmem:[%s419 + $0x1e0] sm:$0xff]
        %v504 = vld [vmem:[%s419 + $0x1e8] sm:$0xff]
        %v505 = vld [vmem:[%s419 + $0x1f0] sm:$0xff]
        %v506 = vld [vmem:[%s419 + $0x1f8] sm:$0xff]
        %v507 = vld [vmem:[%s419 + $0x200] sm:$0xff]
        %v508 = vld [vmem:[%s419 + $0x208] sm:$0xff]
        %v509 = vld [vmem:[%s419 + $0x210] sm:$0xff]
        %v510 = vld [vmem:[%s419 + $0x218] sm:$0xff]
        %v511 = vld [vmem:[%s419 + $0x220] sm:$0xff]
        %v512 = vld [vmem:[%s419 + $0x228] sm:$0xff]
        %v513 = vld [vmem:[%s419 + $0x230] sm:$0xff]
        %v514 = vld [vmem:[%s419 + $0x238] sm:$0xff]
        %v515 = vld [vmem:[%s419 + $0x240] sm:$0xff]
        %v516 = vld [vmem:[%s419 + $0x248] sm:$0xff]
        %v517 = vld [vmem:[%s419 + $0x250] sm:$0xff]
        %v518 = vld [vmem:[%s419 + $0x258] sm:$0xff]
        %v519 = vld [vmem:[%s419 + $0x260] sm:$0xff]
        %v520 = vld [vmem:[%s419 + $0x268] sm:$0xff]
        %v521 = vld [vmem:[%s419 + $0x270] sm:$0xff]
        %v522 = vld [vmem:[%s419 + $0x278] sm:$0xff]
        %v523 = vld [vmem:[%s419 + $0x280] sm:$0xff]
        %v524 = vld [vmem:[%s419 + $0x288] sm:$0xff]
        %v525 = vld [vmem:[%s419 + $0x290] sm:$0xff]
        %v526 = vld [vmem:[%s419 + $0x298] sm:$0xff]
        %v527 = vld [vmem:[%s419 + $0x2a0] sm:$0xff]
        %v528 = vld [vmem:[%s419 + $0x2a8] sm:$0xff]
        %v529 = vld [vmem:[%s419 + $0x2b0] sm:$0xff]
        %v530 = vld [vmem:[%s419 + $0x2b8] sm:$0xff]
        %v531 = vld [vmem:[%s419 + $0x2c0] sm:$0xff]
        %v532 = vld [vmem:[%s419 + $0x2c8] sm:$0xff]
        %v533 = vld [vmem:[%s419 + $0x2d0] sm:$0xff]
        %v534 = vld [vmem:[%s419 + $0x2d8] sm:$0xff]
        %v535 = vld [vmem:[%s419 + $0x2e0] sm:$0xff]
        %v536 = vld [vmem:[%s419 + $0x2e8] sm:$0xff]
        %v537 = vld [vmem:[%s419 + $0x2f0] sm:$0xff]
        %v538 = vld [vmem:[%s419 + $0x2f8] sm:$0xff]
        %v539 = vld [vmem:[%s419 + $0x300] sm:$0xff]
        %v540 = vld [vmem:[%s419 + $0x308] sm:$0xff]
        %v541 = vld [vmem:[%s419 + $0x310] sm:$0xff]
        %v542 = vld [vmem:[%s419 + $0x318] sm:$0xff]
        %v543 = vld [vmem:[%s419 + $0x320] sm:$0xff]
        %v544 = vld [vmem:[%s419 + $0x328] sm:$0xff]
        %v545 = vld [vmem:[%s419 + $0x330] sm:$0xff]
        %v546 = vld [vmem:[%s419 + $0x338] sm:$0xff]
        %v547 = vld [vmem:[%s419 + $0x340] sm:$0xff]
        %v548 = vld [vmem:[%s419 + $0x348] sm:$0xff]
        %v549 = vld [vmem:[%s419 + $0x350] sm:$0xff]
        %v550 = vld [vmem:[%s419 + $0x358] sm:$0xff]
        %v551 = vld [vmem:[%s419 + $0x360] sm:$0xff]
        %v552 = vld [vmem:[%s419 + $0x368] sm:$0xff]
        %v553 = vld [vmem:[%s419 + $0x370] sm:$0xff]
        %v554 = vld [vmem:[%s419 + $0x378] sm:$0xff]
        %v555 = vld [vmem:[%s419 + $0x380] sm:$0xff]
        %v556 = vld [vmem:[%s419 + $0x388] sm:$0xff]
        %v557 = vld [vmem:[%s419 + $0x390] sm:$0xff]
        %v558 = vld [vmem:[%s419 + $0x398] sm:$0xff]
        %v559 = vld [vmem:[%s419 + $0x3a0] sm:$0xff]
        %v560 = vld [vmem:[%s419 + $0x3a8] sm:$0xff]
        %v561 = vld [vmem:[%s419 + $0x3b0] sm:$0xff]
        %v562 = vld [vmem:[%s419 + $0x3b8] sm:$0xff]
        %v563 = vld [vmem:[%s419 + $0x3c0] sm:$0xff]
        %v564 = vld [vmem:[%s419 + $0x3c8] sm:$0xff]
        %v565 = vld [vmem:[%s419 + $0x3d0] sm:$0xff]
        %v566 = vld [vmem:[%s419 + $0x3d8] sm:$0xff]
        %v567 = vld [vmem:[%s419 + $0x3e0] sm:$0xff]
        %v568 = vld [vmem:[%s419 + $0x3e8] sm:$0xff]
        %v569 = vld [vmem:[%s419 + $0x3f0] sm:$0xff]
        %v570 = vld [vmem:[%s419 + $0x3f8] sm:$0xff]
        %v571 = vld [vmem:[%s2] sm:$0xff]
        %v572 = vld [vmem:[%s2 + $0x8] sm:$0xff]
        %574 = vset.pattern.permute.xlu0 0
        %575 = vperm.xlu0 %574, %v571
        %v576 = vpop.permute.xlu0 %575
        %579 = vset.pattern.permute.xlu0 0
        %580 = vperm.xlu0 %579, %v572
        %v581 = vpop.permute.xlu0 %580
        %v585 = vunpack.c.l.b16 %v441
        %v586 = vunpack.c.h.b16 %v441
        %v587 = vunpack.c.l.b16 %v442
        %v588 = vunpack.c.h.b16 %v442
        %v589 = vpack.c.b16 %v587, %v585
        %v590 = vpack.c.b16 %v588, %v586
        %v721 = vunpack.c.l.b16 %v443
        %v722 = vunpack.c.h.b16 %v443
        %v723 = vunpack.c.l.b16 %v444
        %v724 = vunpack.c.h.b16 %v444
        %v725 = vunpack.c.l.b16 %v445
        %v726 = vunpack.c.h.b16 %v445
        %v727 = vunpack.c.l.b16 %v446
        %v728 = vunpack.c.h.b16 %v446
        %v729 = vunpack.c.l.b16 %v447
        %v730 = vunpack.c.h.b16 %v447
        %v731 = vunpack.c.l.b16 %v448
        %v732 = vunpack.c.h.b16 %v448
        %v733 = vunpack.c.l.b16 %v449
        %v734 = vunpack.c.h.b16 %v449
        %v735 = vunpack.c.l.b16 %v450
        %v736 = vunpack.c.h.b16 %v450
        %v737 = vunpack.c.l.b16 %v451
        %v738 = vunpack.c.h.b16 %v451
        %v739 = vunpack.c.l.b16 %v452
        %v740 = vunpack.c.h.b16 %v452
        %v741 = vunpack.c.l.b16 %v453
        %v742 = vunpack.c.h.b16 %v453
        %v743 = vunpack.c.l.b16 %v454
        %v744 = vunpack.c.h.b16 %v454
        %v745 = vunpack.c.l.b16 %v455
        %v746 = vunpack.c.h.b16 %v455
        %v747 = vunpack.c.l.b16 %v456
        %v748 = vunpack.c.h.b16 %v456
        %v749 = vunpack.c.l.b16 %v457
        %v750 = vunpack.c.h.b16 %v457
        %v751 = vunpack.c.l.b16 %v458
        %v752 = vunpack.c.h.b16 %v458
        %v753 = vunpack.c.l.b16 %v459
        %v754 = vunpack.c.h.b16 %v459
        %v755 = vunpack.c.l.b16 %v460
        %v756 = vunpack.c.h.b16 %v460
        %v757 = vunpack.c.l.b16 %v461
        %v758 = vunpack.c.h.b16 %v461
        %v759 = vunpack.c.l.b16 %v462
        %v760 = vunpack.c.h.b16 %v462
        %v761 = vunpack.c.l.b16 %v463
        %v762 = vunpack.c.h.b16 %v463
        %v763 = vunpack.c.l.b16 %v464
        %v764 = vunpack.c.h.b16 %v464
        %v765 = vunpack.c.l.b16 %v465
        %v766 = vunpack.c.h.b16 %v465
        %v767 = vunpack.c.l.b16 %v466
        %v768 = vunpack.c.h.b16 %v466
        %v769 = vunpack.c.l.b16 %v467
        %v770 = vunpack.c.h.b16 %v467
        %v771 = vunpack.c.l.b16 %v468
        %v772 = vunpack.c.h.b16 %v468
        %v773 = vunpack.c.l.b16 %v469
        %v774 = vunpack.c.h.b16 %v469
        %v775 = vunpack.c.l.b16 %v470
        %v776 = vunpack.c.h.b16 %v470
        %v777 = vunpack.c.l.b16 %v471
        %v778 = vunpack.c.h.b16 %v471
        %v779 = vunpack.c.l.b16 %v472
        %v780 = vunpack.c.h.b16 %v472
        %v781 = vunpack.c.l.b16 %v473
        %v782 = vunpack.c.h.b16 %v473
        %v783 = vunpack.c.l.b16 %v474
        %v784 = vunpack.c.h.b16 %v474
        %v785 = vunpack.c.l.b16 %v475
        %v786 = vunpack.c.h.b16 %v475
        %v787 = vunpack.c.l.b16 %v476
        %v788 = vunpack.c.h.b16 %v476
        %v789 = vunpack.c.l.b16 %v477
        %v790 = vunpack.c.h.b16 %v477
        %v791 = vunpack.c.l.b16 %v478
        %v792 = vunpack.c.h.b16 %v478
        %v793 = vunpack.c.l.b16 %v479
        %v794 = vunpack.c.h.b16 %v479
        %v795 = vunpack.c.l.b16 %v480
        %v796 = vunpack.c.h.b16 %v480
        %v797 = vunpack.c.l.b16 %v481
        %v798 = vunpack.c.h.b16 %v481
        %v799 = vunpack.c.l.b16 %v482
        %v800 = vunpack.c.h.b16 %v482
        %v801 = vunpack.c.l.b16 %v483
        %v802 = vunpack.c.h.b16 %v483
        %v803 = vunpack.c.l.b16 %v484
        %v804 = vunpack.c.h.b16 %v484
        %v805 = vunpack.c.l.b16 %v485
        %v806 = vunpack.c.h.b16 %v485
        %v807 = vunpack.c.l.b16 %v486
        %v808 = vunpack.c.h.b16 %v486
        %v809 = vunpack.c.l.b16 %v487
        %v810 = vunpack.c.h.b16 %v487
        %v811 = vunpack.c.l.b16 %v488
        %v812 = vunpack.c.h.b16 %v488
        %v813 = vunpack.c.l.b16 %v489
        %v814 = vunpack.c.h.b16 %v489
        %v815 = vunpack.c.l.b16 %v490
        %v816 = vunpack.c.h.b16 %v490
        %v817 = vunpack.c.l.b16 %v491
        %v818 = vunpack.c.h.b16 %v491
        %v819 = vunpack.c.l.b16 %v492
        %v820 = vunpack.c.h.b16 %v492
        %v821 = vunpack.c.l.b16 %v493
        %v822 = vunpack.c.h.b16 %v493
        %v823 = vunpack.c.l.b16 %v494
        %v824 = vunpack.c.h.b16 %v494
        %v825 = vunpack.c.l.b16 %v495
        %v826 = vunpack.c.h.b16 %v495
        %v827 = vunpack.c.l.b16 %v496
        %v828 = vunpack.c.h.b16 %v496
        %v829 = vunpack.c.l.b16 %v497
        %v830 = vunpack.c.h.b16 %v497
        %v831 = vunpack.c.l.b16 %v498
        %v832 = vunpack.c.h.b16 %v498
        %v833 = vunpack.c.l.b16 %v499
        %v834 = vunpack.c.h.b16 %v499
        %v835 = vunpack.c.l.b16 %v500
        %v836 = vunpack.c.h.b16 %v500
        %v837 = vunpack.c.l.b16 %v501
        %v838 = vunpack.c.h.b16 %v501
        %v839 = vunpack.c.l.b16 %v502
        %v840 = vunpack.c.h.b16 %v502
        %v841 = vunpack.c.l.b16 %v503
        %v842 = vunpack.c.h.b16 %v503
        %v843 = vunpack.c.l.b16 %v504
        %v844 = vunpack.c.h.b16 %v504
        %v845 = vunpack.c.l.b16 %v505
        %v846 = vunpack.c.h.b16 %v505
        %v847 = vunpack.c.l.b16 %v506
        %v848 = vunpack.c.h.b16 %v506
        %v849 = vunpack.c.l.b16 %v507
        %v850 = vunpack.c.h.b16 %v507
        %v851 = vunpack.c.l.b16 %v508
        %v852 = vunpack.c.h.b16 %v508
        %v853 = vunpack.c.l.b16 %v509
        %v854 = vunpack.c.h.b16 %v509
        %v855 = vunpack.c.l.b16 %v510
        %v856 = vunpack.c.h.b16 %v510
        %v857 = vunpack.c.l.b16 %v511
        %v858 = vunpack.c.h.b16 %v511
        %v859 = vunpack.c.l.b16 %v512
        %v860 = vunpack.c.h.b16 %v512
        %v861 = vunpack.c.l.b16 %v513
        %v862 = vunpack.c.h.b16 %v513
        %v863 = vunpack.c.l.b16 %v514
        %v864 = vunpack.c.h.b16 %v514
        %v865 = vunpack.c.l.b16 %v515
        %v866 = vunpack.c.h.b16 %v515
        %v867 = vunpack.c.l.b16 %v516
        %v868 = vunpack.c.h.b16 %v516
        %v869 = vunpack.c.l.b16 %v517
        %v870 = vunpack.c.h.b16 %v517
        %v871 = vunpack.c.l.b16 %v518
        %v872 = vunpack.c.h.b16 %v518
        %v873 = vunpack.c.l.b16 %v519
        %v874 = vunpack.c.h.b16 %v519
        %v875 = vunpack.c.l.b16 %v520
        %v876 = vunpack.c.h.b16 %v520
        %v877 = vunpack.c.l.b16 %v521
        %v878 = vunpack.c.h.b16 %v521
        %v879 = vunpack.c.l.b16 %v522
        %v880 = vunpack.c.h.b16 %v522
        %v881 = vunpack.c.l.b16 %v523
        %v882 = vunpack.c.h.b16 %v523
        %v883 = vunpack.c.l.b16 %v524
        %v884 = vunpack.c.h.b16 %v524
        %v885 = vunpack.c.l.b16 %v525
        %v886 = vunpack.c.h.b16 %v525
        %v887 = vunpack.c.l.b16 %v526
        %v888 = vunpack.c.h.b16 %v526
        %v889 = vunpack.c.l.b16 %v527
        %v890 = vunpack.c.h.b16 %v527
        %v891 = vunpack.c.l.b16 %v528
        %v892 = vunpack.c.h.b16 %v528
        %v893 = vunpack.c.l.b16 %v529
        %v894 = vunpack.c.h.b16 %v529
        %v895 = vunpack.c.l.b16 %v530
        %v896 = vunpack.c.h.b16 %v530
        %v897 = vunpack.c.l.b16 %v531
        %v898 = vunpack.c.h.b16 %v531
        %v899 = vunpack.c.l.b16 %v532
        %v900 = vunpack.c.h.b16 %v532
        %v901 = vunpack.c.l.b16 %v533
        %v902 = vunpack.c.h.b16 %v533
        %v903 = vunpack.c.l.b16 %v534
        %v904 = vunpack.c.h.b16 %v534
        %v905 = vunpack.c.l.b16 %v535
        %v906 = vunpack.c.h.b16 %v535
        %v907 = vunpack.c.l.b16 %v536
        %v908 = vunpack.c.h.b16 %v536
        %v909 = vunpack.c.l.b16 %v537
        %v910 = vunpack.c.h.b16 %v537
        %v911 = vunpack.c.l.b16 %v538
        %v912 = vunpack.c.h.b16 %v538
        %v913 = vunpack.c.l.b16 %v539
        %v914 = vunpack.c.h.b16 %v539
        %v915 = vunpack.c.l.b16 %v540
        %v916 = vunpack.c.h.b16 %v540
        %v917 = vunpack.c.l.b16 %v541
        %v918 = vunpack.c.h.b16 %v541
        %v919 = vunpack.c.l.b16 %v542
        %v920 = vunpack.c.h.b16 %v542
        %v921 = vunpack.c.l.b16 %v543
        %v922 = vunpack.c.h.b16 %v543
        %v923 = vunpack.c.l.b16 %v544
        %v924 = vunpack.c.h.b16 %v544
        %v925 = vunpack.c.l.b16 %v545
        %v926 = vunpack.c.h.b16 %v545
        %v927 = vunpack.c.l.b16 %v546
        %v928 = vunpack.c.h.b16 %v546
        %v929 = vunpack.c.l.b16 %v547
        %v930 = vunpack.c.h.b16 %v547
        %v931 = vunpack.c.l.b16 %v548
        %v932 = vunpack.c.h.b16 %v548
        %v933 = vunpack.c.l.b16 %v549
        %v934 = vunpack.c.h.b16 %v549
        %v935 = vunpack.c.l.b16 %v550
        %v936 = vunpack.c.h.b16 %v550
        %v937 = vunpack.c.l.b16 %v551
        %v938 = vunpack.c.h.b16 %v551
        %v939 = vunpack.c.l.b16 %v552
        %v940 = vunpack.c.h.b16 %v552
        %v941 = vunpack.c.l.b16 %v553
        %v942 = vunpack.c.h.b16 %v553
        %v943 = vunpack.c.l.b16 %v554
        %v944 = vunpack.c.h.b16 %v554
        %v945 = vunpack.c.l.b16 %v555
        %v946 = vunpack.c.h.b16 %v555
        %v947 = vunpack.c.l.b16 %v556
        %v948 = vunpack.c.h.b16 %v556
        %v949 = vunpack.c.l.b16 %v557
        %v950 = vunpack.c.h.b16 %v557
        %v951 = vunpack.c.l.b16 %v558
        %v952 = vunpack.c.h.b16 %v558
        %v953 = vunpack.c.l.b16 %v559
        %v954 = vunpack.c.h.b16 %v559
        %v955 = vunpack.c.l.b16 %v560
        %v956 = vunpack.c.h.b16 %v560
        %v957 = vunpack.c.l.b16 %v561
        %v958 = vunpack.c.h.b16 %v561
        %v959 = vunpack.c.l.b16 %v562
        %v960 = vunpack.c.h.b16 %v562
        %v961 = vunpack.c.l.b16 %v563
        %v962 = vunpack.c.h.b16 %v563
        %v963 = vunpack.c.l.b16 %v564
        %v964 = vunpack.c.h.b16 %v564
        %v965 = vunpack.c.l.b16 %v565
        %v966 = vunpack.c.h.b16 %v565
        %v967 = vunpack.c.l.b16 %v566
        %v968 = vunpack.c.h.b16 %v566
        %v969 = vunpack.c.l.b16 %v567
        %v970 = vunpack.c.h.b16 %v567
        %v971 = vunpack.c.l.b16 %v568
        %v972 = vunpack.c.h.b16 %v568
        %v973 = vunpack.c.l.b16 %v569
        %v974 = vunpack.c.h.b16 %v569
        %v975 = vunpack.c.l.b16 %v570
        %v976 = vunpack.c.h.b16 %v570
        %v977 = vpack.c.b16 %v729, %v721
        %v978 = vpack.c.b16 %v730, %v722
        %v979 = vpack.c.b16 %v731, %v723
        %v980 = vpack.c.b16 %v732, %v724
        %v981 = vpack.c.b16 %v733, %v725
        %v982 = vpack.c.b16 %v734, %v726
        %v983 = vpack.c.b16 %v735, %v727
        %v984 = vpack.c.b16 %v736, %v728
        %v985 = vpack.c.b16 %v745, %v737
        %v986 = vpack.c.b16 %v746, %v738
        %v987 = vpack.c.b16 %v747, %v739
        %v988 = vpack.c.b16 %v748, %v740
        %v989 = vpack.c.b16 %v749, %v741
        %v990 = vpack.c.b16 %v750, %v742
        %v991 = vpack.c.b16 %v751, %v743
        %v992 = vpack.c.b16 %v752, %v744
        %v993 = vpack.c.b16 %v761, %v753
        %v994 = vpack.c.b16 %v762, %v754
        %v995 = vpack.c.b16 %v763, %v755
        %v996 = vpack.c.b16 %v764, %v756
        %v997 = vpack.c.b16 %v765, %v757
        %v998 = vpack.c.b16 %v766, %v758
        %v999 = vpack.c.b16 %v767, %v759
        %v1000 = vpack.c.b16 %v768, %v760
        %v1001 = vpack.c.b16 %v777, %v769
        %v1002 = vpack.c.b16 %v778, %v770
        %v1003 = vpack.c.b16 %v779, %v771
        %v1004 = vpack.c.b16 %v780, %v772
        %v1005 = vpack.c.b16 %v781, %v773
        %v1006 = vpack.c.b16 %v782, %v774
        %v1007 = vpack.c.b16 %v783, %v775
        %v1008 = vpack.c.b16 %v784, %v776
        %v1009 = vpack.c.b16 %v793, %v785
        %v1010 = vpack.c.b16 %v794, %v786
        %v1011 = vpack.c.b16 %v795, %v787
        %v1012 = vpack.c.b16 %v796, %v788
        %v1013 = vpack.c.b16 %v797, %v789
        %v1014 = vpack.c.b16 %v798, %v790
        %v1015 = vpack.c.b16 %v799, %v791
        %v1016 = vpack.c.b16 %v800, %v792
        %v1017 = vpack.c.b16 %v809, %v801
        %v1018 = vpack.c.b16 %v810, %v802
        %v1019 = vpack.c.b16 %v811, %v803
        %v1020 = vpack.c.b16 %v812, %v804
        %v1021 = vpack.c.b16 %v813, %v805
        %v1022 = vpack.c.b16 %v814, %v806
        %v1023 = vpack.c.b16 %v815, %v807
        %v1024 = vpack.c.b16 %v816, %v808
        %v1025 = vpack.c.b16 %v825, %v817
        %v1026 = vpack.c.b16 %v826, %v818
        %v1027 = vpack.c.b16 %v827, %v819
        %v1028 = vpack.c.b16 %v828, %v820
        %v1029 = vpack.c.b16 %v829, %v821
        %v1030 = vpack.c.b16 %v830, %v822
        %v1031 = vpack.c.b16 %v831, %v823
        %v1032 = vpack.c.b16 %v832, %v824
        %v1033 = vpack.c.b16 %v841, %v833
        %v1034 = vpack.c.b16 %v842, %v834
        %v1035 = vpack.c.b16 %v843, %v835
        %v1036 = vpack.c.b16 %v844, %v836
        %v1037 = vpack.c.b16 %v845, %v837
        %v1038 = vpack.c.b16 %v846, %v838
        %v1039 = vpack.c.b16 %v847, %v839
        %v1040 = vpack.c.b16 %v848, %v840
        %v1041 = vpack.c.b16 %v857, %v849
        %v1042 = vpack.c.b16 %v858, %v850
        %v1043 = vpack.c.b16 %v859, %v851
        %v1044 = vpack.c.b16 %v860, %v852
        %v1045 = vpack.c.b16 %v861, %v853
        %v1046 = vpack.c.b16 %v862, %v854
        %v1047 = vpack.c.b16 %v863, %v855
        %v1048 = vpack.c.b16 %v864, %v856
        %v1049 = vpack.c.b16 %v873, %v865
        %v1050 = vpack.c.b16 %v874, %v866
        %v1051 = vpack.c.b16 %v875, %v867
        %v1052 = vpack.c.b16 %v876, %v868
        %v1053 = vpack.c.b16 %v877, %v869
        %v1054 = vpack.c.b16 %v878, %v870
        %v1055 = vpack.c.b16 %v879, %v871
        %v1056 = vpack.c.b16 %v880, %v872
        %v1057 = vpack.c.b16 %v889, %v881
        %v1058 = vpack.c.b16 %v890, %v882
        %v1059 = vpack.c.b16 %v891, %v883
        %v1060 = vpack.c.b16 %v892, %v884
        %v1061 = vpack.c.b16 %v893, %v885
        %v1062 = vpack.c.b16 %v894, %v886
        %v1063 = vpack.c.b16 %v895, %v887
        %v1064 = vpack.c.b16 %v896, %v888
        %v1065 = vpack.c.b16 %v905, %v897
        %v1066 = vpack.c.b16 %v906, %v898
        %v1067 = vpack.c.b16 %v907, %v899
        %v1068 = vpack.c.b16 %v908, %v900
        %v1069 = vpack.c.b16 %v909, %v901
        %v1070 = vpack.c.b16 %v910, %v902
        %v1071 = vpack.c.b16 %v911, %v903
        %v1072 = vpack.c.b16 %v912, %v904
        %v1073 = vpack.c.b16 %v921, %v913
        %v1074 = vpack.c.b16 %v922, %v914
        %v1075 = vpack.c.b16 %v923, %v915
        %v1076 = vpack.c.b16 %v924, %v916
        %v1077 = vpack.c.b16 %v925, %v917
        %v1078 = vpack.c.b16 %v926, %v918
        %v1079 = vpack.c.b16 %v927, %v919
        %v1080 = vpack.c.b16 %v928, %v920
        %v1081 = vpack.c.b16 %v937, %v929
        %v1082 = vpack.c.b16 %v938, %v930
        %v1083 = vpack.c.b16 %v939, %v931
        %v1084 = vpack.c.b16 %v940, %v932
        %v1085 = vpack.c.b16 %v941, %v933
        %v1086 = vpack.c.b16 %v942, %v934
        %v1087 = vpack.c.b16 %v943, %v935
        %v1088 = vpack.c.b16 %v944, %v936
        %v1089 = vpack.c.b16 %v953, %v945
        %v1090 = vpack.c.b16 %v954, %v946
        %v1091 = vpack.c.b16 %v955, %v947
        %v1092 = vpack.c.b16 %v956, %v948
        %v1093 = vpack.c.b16 %v957, %v949
        %v1094 = vpack.c.b16 %v958, %v950
        %v1095 = vpack.c.b16 %v959, %v951
        %v1096 = vpack.c.b16 %v960, %v952
        %v1097 = vpack.c.b16 %v969, %v961
        %v1098 = vpack.c.b16 %v970, %v962
        %v1099 = vpack.c.b16 %v971, %v963
        %v1100 = vpack.c.b16 %v972, %v964
        %v1101 = vpack.c.b16 %v973, %v965
        %v1102 = vpack.c.b16 %v974, %v966
        %v1103 = vpack.c.b16 %v975, %v967
        %v1104 = vpack.c.b16 %v976, %v968
        %1233 = vmatpush.bf16.msra.mxu0 %v1033
        %1234 = vmatpush.bf16.msra.mxu0 %v1025
        %1235 = vmatpush.bf16.msra.mxu0 %v1017
        %1236 = vmatpush.bf16.msra.mxu0 %v1009
        %1237 = vmatpush.bf16.msra.mxu0 %v1001
        %1238 = vmatpush.bf16.msra.mxu0 %v993
        %1239 = vmatpush.bf16.msra.mxu0 %v985
        %1240 = vmatpush.bf16.msra.mxu0 %v977
        %1241 = vmatmul.bf16.gmra.mxu0 %v589
        %v1242 = vpop.f32.mrf.mxu0
        %v1243 = vadd.f32 %v576, %v1242
        %v1244 = vpop.f32.mrf.mxu0
        %v1245 = vadd.f32 %v581, %v1244
        %1246 = vdwg.mxu0
        %1247 = vmatpush.bf16.msra.mxu0 %v1097
        %1248 = vmatpush.bf16.msra.mxu0 %v1089
        %1249 = vmatpush.bf16.msra.mxu0 %v1081
        %1250 = vmatpush.bf16.msra.mxu0 %v1073
        %1251 = vmatpush.bf16.msra.mxu0 %v1065
        %1252 = vmatpush.bf16.msra.mxu0 %v1057
        %1253 = vmatpush.bf16.msra.mxu0 %v1049
        %1254 = vmatpush.bf16.msra.mxu0 %v1041
        %1255 = vmatmul.bf16.gmra.mxu0 %v590
        %v1256 = vpop.f32.mrf.mxu0
        %v1257 = vadd.f32 %v1243, %v1256
        %v1258 = vpop.f32.mrf.mxu0
        %v1259 = vadd.f32 %v1245, %v1258
        %1260 = vdwg.mxu0
        %1261 = vmatpush.bf16.msra.mxu0 %v1034
        %1262 = vmatpush.bf16.msra.mxu0 %v1026
        %1263 = vmatpush.bf16.msra.mxu0 %v1018
        %1264 = vmatpush.bf16.msra.mxu0 %v1010
        %1265 = vmatpush.bf16.msra.mxu0 %v1002
        %1266 = vmatpush.bf16.msra.mxu0 %v994
        %1267 = vmatpush.bf16.msra.mxu0 %v986
        %1268 = vmatpush.bf16.msra.mxu0 %v978
        %1269 = vmatmul.bf16.gmra.mxu0 %v589
        %v1270 = vpop.f32.mrf.mxu0
        %v1271 = vadd.f32 %v576, %v1270
        %v1272 = vpop.f32.mrf.mxu0
        %v1273 = vadd.f32 %v581, %v1272
        %1274 = vdwg.mxu0
        %1275 = vmatpush.bf16.msra.mxu0 %v1098
        %1276 = vmatpush.bf16.msra.mxu0 %v1090
        %1277 = vmatpush.bf16.msra.mxu0 %v1082
        %1278 = vmatpush.bf16.msra.mxu0 %v1074
        %1279 = vmatpush.bf16.msra.mxu0 %v1066
        %1280 = vmatpush.bf16.msra.mxu0 %v1058
        %1281 = vmatpush.bf16.msra.mxu0 %v1050
        %1282 = vmatpush.bf16.msra.mxu0 %v1042
        %1283 = vmatmul.bf16.gmra.mxu0 %v590
        %v1284 = vpop.f32.mrf.mxu0
        %v1285 = vadd.f32 %v1271, %v1284
        %v1286 = vpop.f32.mrf.mxu0
        %v1287 = vadd.f32 %v1273, %v1286
        %1288 = vdwg.mxu0
        %1289 = vmatpush.bf16.msra.mxu0 %v1035
        %1290 = vmatpush.bf16.msra.mxu0 %v1027
        %1291 = vmatpush.bf16.msra.mxu0 %v1019
        %1292 = vmatpush.bf16.msra.mxu0 %v1011
        %1293 = vmatpush.bf16.msra.mxu0 %v1003
        %1294 = vmatpush.bf16.msra.mxu0 %v995
        %1295 = vmatpush.bf16.msra.mxu0 %v987
        %1296 = vmatpush.bf16.msra.mxu0 %v979
        %1297 = vmatmul.bf16.gmra.mxu0 %v589
        %v1298 = vpop.f32.mrf.mxu0
        %v1299 = vadd.f32 %v576, %v1298
        %v1300 = vpop.f32.mrf.mxu0
        %v1301 = vadd.f32 %v581, %v1300
        %1302 = vdwg.mxu0
        %1303 = vmatpush.bf16.msra.mxu0 %v1099
        %1304 = vmatpush.bf16.msra.mxu0 %v1091
        %1305 = vmatpush.bf16.msra.mxu0 %v1083
        %1306 = vmatpush.bf16.msra.mxu0 %v1075
        %1307 = vmatpush.bf16.msra.mxu0 %v1067
        %1308 = vmatpush.bf16.msra.mxu0 %v1059
        %1309 = vmatpush.bf16.msra.mxu0 %v1051
        %1310 = vmatpush.bf16.msra.mxu0 %v1043
        %1311 = vmatmul.bf16.gmra.mxu0 %v590
        %v1312 = vpop.f32.mrf.mxu0
        %v1313 = vadd.f32 %v1299, %v1312
        %v1314 = vpop.f32.mrf.mxu0
        %v1315 = vadd.f32 %v1301, %v1314
        %1316 = vdwg.mxu0
        %1317 = vmatpush.bf16.msra.mxu0 %v1036
        %1318 = vmatpush.bf16.msra.mxu0 %v1028
        %1319 = vmatpush.bf16.msra.mxu0 %v1020
        %1320 = vmatpush.bf16.msra.mxu0 %v1012
        %1321 = vmatpush.bf16.msra.mxu0 %v1004
        %1322 = vmatpush.bf16.msra.mxu0 %v996
        %1323 = vmatpush.bf16.msra.mxu0 %v988
        %1324 = vmatpush.bf16.msra.mxu0 %v980
        %1325 = vmatmul.bf16.gmra.mxu0 %v589
        %v1326 = vpop.f32.mrf.mxu0
        %v1327 = vadd.f32 %v576, %v1326
        %v1328 = vpop.f32.mrf.mxu0
        %v1329 = vadd.f32 %v581, %v1328
        %1330 = vdwg.mxu0
        %1331 = vmatpush.bf16.msra.mxu0 %v1100
        %1332 = vmatpush.bf16.msra.mxu0 %v1092
        %1333 = vmatpush.bf16.msra.mxu0 %v1084
        %1334 = vmatpush.bf16.msra.mxu0 %v1076
        %1335 = vmatpush.bf16.msra.mxu0 %v1068
        %1336 = vmatpush.bf16.msra.mxu0 %v1060
        %1337 = vmatpush.bf16.msra.mxu0 %v1052
        %1338 = vmatpush.bf16.msra.mxu0 %v1044
        %1339 = vmatmul.bf16.gmra.mxu0 %v590
        %v1340 = vpop.f32.mrf.mxu0
        %v1341 = vadd.f32 %v1327, %v1340
        %v1342 = vpop.f32.mrf.mxu0
        %v1343 = vadd.f32 %v1329, %v1342
        %1344 = vdwg.mxu0
        %1345 = vmatpush.bf16.msra.mxu0 %v1037
        %1346 = vmatpush.bf16.msra.mxu0 %v1029
        %1347 = vmatpush.bf16.msra.mxu0 %v1021
        %1348 = vmatpush.bf16.msra.mxu0 %v1013
        %1349 = vmatpush.bf16.msra.mxu0 %v1005
        %1350 = vmatpush.bf16.msra.mxu0 %v997
        %1351 = vmatpush.bf16.msra.mxu0 %v989
        %1352 = vmatpush.bf16.msra.mxu0 %v981
        %1353 = vmatmul.bf16.gmra.mxu0 %v589
        %v1354 = vpop.f32.mrf.mxu0
        %v1355 = vadd.f32 %v576, %v1354
        %v1356 = vpop.f32.mrf.mxu0
        %v1357 = vadd.f32 %v581, %v1356
        %1358 = vdwg.mxu0
        %1359 = vmatpush.bf16.msra.mxu0 %v1101
        %1360 = vmatpush.bf16.msra.mxu0 %v1093
        %1361 = vmatpush.bf16.msra.mxu0 %v1085
        %1362 = vmatpush.bf16.msra.mxu0 %v1077
        %1363 = vmatpush.bf16.msra.mxu0 %v1069
        %1364 = vmatpush.bf16.msra.mxu0 %v1061
        %1365 = vmatpush.bf16.msra.mxu0 %v1053
        %1366 = vmatpush.bf16.msra.mxu0 %v1045
        %1367 = vmatmul.bf16.gmra.mxu0 %v590
        %v1368 = vpop.f32.mrf.mxu0
        %v1369 = vadd.f32 %v1355, %v1368
        %v1370 = vpop.f32.mrf.mxu0
        %v1371 = vadd.f32 %v1357, %v1370
        %1372 = vdwg.mxu0
        %1373 = vmatpush.bf16.msra.mxu0 %v1038
        %1374 = vmatpush.bf16.msra.mxu0 %v1030
        %1375 = vmatpush.bf16.msra.mxu0 %v1022
        %1376 = vmatpush.bf16.msra.mxu0 %v1014
        %1377 = vmatpush.bf16.msra.mxu0 %v1006
        %1378 = vmatpush.bf16.msra.mxu0 %v998
        %1379 = vmatpush.bf16.msra.mxu0 %v990
        %1380 = vmatpush.bf16.msra.mxu0 %v982
        %1381 = vmatmul.bf16.gmra.mxu0 %v589
        %v1382 = vpop.f32.mrf.mxu0
        %v1383 = vadd.f32 %v576, %v1382
        %v1384 = vpop.f32.mrf.mxu0
        %v1385 = vadd.f32 %v581, %v1384
        %1386 = vdwg.mxu0
        %1387 = vmatpush.bf16.msra.mxu0 %v1102
        %1388 = vmatpush.bf16.msra.mxu0 %v1094
        %1389 = vmatpush.bf16.msra.mxu0 %v1086
        %1390 = vmatpush.bf16.msra.mxu0 %v1078
        %1391 = vmatpush.bf16.msra.mxu0 %v1070
        %1392 = vmatpush.bf16.msra.mxu0 %v1062
        %1393 = vmatpush.bf16.msra.mxu0 %v1054
        %1394 = vmatpush.bf16.msra.mxu0 %v1046
        %1395 = vmatmul.bf16.gmra.mxu0 %v590
        %v1396 = vpop.f32.mrf.mxu0
        %v1397 = vadd.f32 %v1383, %v1396
        %v1398 = vpop.f32.mrf.mxu0
        %v1399 = vadd.f32 %v1385, %v1398
        %1400 = vdwg.mxu0
        %1401 = vmatpush.bf16.msra.mxu0 %v1039
        %1402 = vmatpush.bf16.msra.mxu0 %v1031
        %1403 = vmatpush.bf16.msra.mxu0 %v1023
        %1404 = vmatpush.bf16.msra.mxu0 %v1015
        %1405 = vmatpush.bf16.msra.mxu0 %v1007
        %1406 = vmatpush.bf16.msra.mxu0 %v999
        %1407 = vmatpush.bf16.msra.mxu0 %v991
        %1408 = vmatpush.bf16.msra.mxu0 %v983
        %1409 = vmatmul.bf16.gmra.mxu0 %v589
        %v1410 = vpop.f32.mrf.mxu0
        %v1411 = vadd.f32 %v576, %v1410
        %v1412 = vpop.f32.mrf.mxu0
        %v1413 = vadd.f32 %v581, %v1412
        %1414 = vdwg.mxu0
        %1415 = vmatpush.bf16.msra.mxu0 %v1103
        %1416 = vmatpush.bf16.msra.mxu0 %v1095
        %1417 = vmatpush.bf16.msra.mxu0 %v1087
        %1418 = vmatpush.bf16.msra.mxu0 %v1079
        %1419 = vmatpush.bf16.msra.mxu0 %v1071
        %1420 = vmatpush.bf16.msra.mxu0 %v1063
        %1421 = vmatpush.bf16.msra.mxu0 %v1055
        %1422 = vmatpush.bf16.msra.mxu0 %v1047
        %1423 = vmatmul.bf16.gmra.mxu0 %v590
        %v1424 = vpop.f32.mrf.mxu0
        %v1425 = vadd.f32 %v1411, %v1424
        %v1426 = vpop.f32.mrf.mxu0
        %v1427 = vadd.f32 %v1413, %v1426
        %1428 = vdwg.mxu0
        %1429 = vmatpush.bf16.msra.mxu0 %v1040
        %1430 = vmatpush.bf16.msra.mxu0 %v1032
        %1431 = vmatpush.bf16.msra.mxu0 %v1024
        %1432 = vmatpush.bf16.msra.mxu0 %v1016
        %1433 = vmatpush.bf16.msra.mxu0 %v1008
        %1434 = vmatpush.bf16.msra.mxu0 %v1000
        %1435 = vmatpush.bf16.msra.mxu0 %v992
        %1436 = vmatpush.bf16.msra.mxu0 %v984
        %1437 = vmatmul.bf16.gmra.mxu0 %v589
        %v1438 = vpop.f32.mrf.mxu0
        %v1439 = vadd.f32 %v576, %v1438
        %v1440 = vpop.f32.mrf.mxu0
        %v1441 = vadd.f32 %v581, %v1440
        %1442 = vdwg.mxu0
        %1443 = vmatpush.bf16.msra.mxu0 %v1104
        %1444 = vmatpush.bf16.msra.mxu0 %v1096
        %1445 = vmatpush.bf16.msra.mxu0 %v1088
        %1446 = vmatpush.bf16.msra.mxu0 %v1080
        %1447 = vmatpush.bf16.msra.mxu0 %v1072
        %1448 = vmatpush.bf16.msra.mxu0 %v1064
        %1449 = vmatpush.bf16.msra.mxu0 %v1056
        %1450 = vmatpush.bf16.msra.mxu0 %v1048
        %1451 = vmatmul.bf16.gmra.mxu0 %v590
        %v1452 = vpop.f32.mrf.mxu0
        %v1453 = vadd.f32 %v1439, %v1452
        %v1454 = vpop.f32.mrf.mxu0
        %v1455 = vadd.f32 %v1441, %v1454
        %1456 = vdwg.mxu0
        %v1457 = vtanh.pop %v1257
        %v1458 = vtanh.pop %v1285
        %v1459 = vtanh.pop %v1313
        %v1460 = vtanh.pop %v1341
        %v1461 = vtanh.pop %v1369
        %v1462 = vtanh.pop %v1397
        %v1463 = vtanh.pop %v1425
        %v1464 = vtanh.pop %v1453
        %v1465 = vtanh.pop %v1259
        %v1466 = vtanh.pop %v1287
        %v1467 = vtanh.pop %v1315
        %v1468 = vtanh.pop %v1343
        %v1469 = vtanh.pop %v1371
        %v1470 = vtanh.pop %v1399
        %v1471 = vtanh.pop %v1427
        %v1472 = vtanh.pop %v1455
        %1473 = vst [vmem:[%s438] sm:$0xff] %v1457
        %1474 = vst [vmem:[%s438 + $0x8] sm:$0xff] %v1458
        %1475 = vst [vmem:[%s438 + $0x10] sm:$0xff] %v1459
        %1476 = vst [vmem:[%s438 + $0x18] sm:$0xff] %v1460
        %1477 = vst [vmem:[%s438 + $0x20] sm:$0xff] %v1461
        %1478 = vst [vmem:[%s438 + $0x28] sm:$0xff] %v1462
        %1479 = vst [vmem:[%s438 + $0x30] sm:$0xff] %v1463
        %1480 = vst [vmem:[%s438 + $0x38] sm:$0xff] %v1464
        %1481 = vst [vmem:[%s438 + $0x40] sm:$0xff] %v1465
        %1482 = vst [vmem:[%s438 + $0x48] sm:$0xff] %v1466
        %1483 = vst [vmem:[%s438 + $0x50] sm:$0xff] %v1467
        %1484 = vst [vmem:[%s438 + $0x58] sm:$0xff] %v1468
        %1485 = vst [vmem:[%s438 + $0x60] sm:$0xff] %v1469
        %1486 = vst [vmem:[%s438 + $0x68] sm:$0xff] %v1470
        %1487 = vst [vmem:[%s438 + $0x70] sm:$0xff] %v1471
        %1488 = vst [vmem:[%s438 + $0x78] sm:$0xff] %v1472
        %s1489 = sand.u32 %s90, 1
        %s1490 = sand.u32 %s90, 1
        %s1491 = smul.addr %s1490, 128
        %s1492 = scalar_lea.vmem [#allocation3], %s1491
        // Predicated region
        $region56: #{eeg_generator_forward.7} parent=50 // pred_check
          %p1493 = pneg %p100
        $region57: #{eeg_generator_forward.7} parent=50 // pred_check_branch
          %1495 = sbr.rel (%p1493) target = $region59
        $region58: #{eeg_generator_forward.7} parent=50 // pred_region
          %s1496 = smul.u32 8, %s14
          %s1497 = smul.addr %s1496, 8
          %s1498 = scalar_lea.vmem %s3, %s1497
          // Predicated region
          $region60: #{eeg_generator_forward.7} parent=58 // pred_check
            _
          $region61: #{eeg_generator_forward.7} parent=58 // pred_check_branch
            %1500 = sbr.rel (0) target = $region63
          $region62: #{eeg_generator_forward.7} parent=58 // pred_region
            // Predicated region
            $region64: #{eeg_generator_forward.7} parent=62 // pred_check
              _
            $region65: #{eeg_generator_forward.7} parent=62 // pred_check_branch
              %1502 = sbr.rel (0) target = $region67
            $region66: #{eeg_generator_forward.7} parent=62 // pred_region
              loop: start=0, step=1, limit=1
              $region68: #{eeg_generator_forward.7} parent=66 // loop_pre_header
                _
              $region69: #{eeg_generator_forward.7} parent=66 // loop_header
                %s1504 = sphi 0, %s1508
                %p1505 = scmp.ge.s32.totalorder %s1504, 1
                %s1509 = sphi %s1492, %s1492
                %s1510 = sphi %s1498, %s1498
              $region70: #{eeg_generator_forward.7} parent=66 // loop_header_branch
                %1507 = sbr.rel (%p1505) target = $region74
              $region71: #{eeg_generator_forward.7} parent=66 // loop_body
                %v1511 = vld [vmem:[%s1509] sm:$0xff]
                %1512 = vst [vmem:[%s1510] sm:$0xff] %v1511
                %v1513 = vld [vmem:[%s1509 + $0x8] sm:$0xff]
                %1514 = vst [vmem:[%s1510 + $0x8] sm:$0xff] %v1513
                %v1515 = vld [vmem:[%s1509 + $0x10] sm:$0xff]
                %1516 = vst [vmem:[%s1510 + $0x10] sm:$0xff] %v1515
                %v1517 = vld [vmem:[%s1509 + $0x18] sm:$0xff]
                %1518 = vst [vmem:[%s1510 + $0x18] sm:$0xff] %v1517
                %v1519 = vld [vmem:[%s1509 + $0x20] sm:$0xff]
                %1520 = vst [vmem:[%s1510 + $0x20] sm:$0xff] %v1519
                %v1521 = vld [vmem:[%s1509 + $0x28] sm:$0xff]
                %1522 = vst [vmem:[%s1510 + $0x28] sm:$0xff] %v1521
                %v1523 = vld [vmem:[%s1509 + $0x30] sm:$0xff]
                %1524 = vst [vmem:[%s1510 + $0x30] sm:$0xff] %v1523
                %v1525 = vld [vmem:[%s1509 + $0x38] sm:$0xff]
                %1526 = vst [vmem:[%s1510 + $0x38] sm:$0xff] %v1525
                %v1527 = vld [vmem:[%s1509 + $0x40] sm:$0xff]
                %1528 = vst [vmem:[%s1510 + $0x80] sm:$0xff] %v1527
                %v1529 = vld [vmem:[%s1509 + $0x48] sm:$0xff]
                %1530 = vst [vmem:[%s1510 + $0x88] sm:$0xff] %v1529
                %v1531 = vld [vmem:[%s1509 + $0x50] sm:$0xff]
                %1532 = vst [vmem:[%s1510 + $0x90] sm:$0xff] %v1531
                %v1533 = vld [vmem:[%s1509 + $0x58] sm:$0xff]
                %1534 = vst [vmem:[%s1510 + $0x98] sm:$0xff] %v1533
                %v1535 = vld [vmem:[%s1509 + $0x60] sm:$0xff]
                %1536 = vst [vmem:[%s1510 + $0xa0] sm:$0xff] %v1535
                %v1537 = vld [vmem:[%s1509 + $0x68] sm:$0xff]
                %1538 = vst [vmem:[%s1510 + $0xa8] sm:$0xff] %v1537
                %v1539 = vld [vmem:[%s1509 + $0x70] sm:$0xff]
                %1540 = vst [vmem:[%s1510 + $0xb0] sm:$0xff] %v1539
                %v1541 = vld [vmem:[%s1509 + $0x78] sm:$0xff]
                %1542 = vst [vmem:[%s1510 + $0xb8] sm:$0xff] %v1541
              $region72: #{eeg_generator_forward.7} parent=66 // loop_footer
                %s1508 = sadd.s32 1, %s1504
              $region73: #{eeg_generator_forward.7} parent=66 // loop_footer_branch
                %1503 = sbr.rel target = $region69
              $region74: #{eeg_generator_forward.7} parent=66 // loop_exit
                _
            $region67: #{eeg_generator_forward.7} parent=62 // pred_fallthru
              _
            // Predicated region
            $region75: #{eeg_generator_forward.7} parent=62 // pred_check
              _
            $region76: #{eeg_generator_forward.7} parent=62 // pred_check_branch
              %1544 = sbr.rel target = $region78
            $region77: #{eeg_generator_forward.7} parent=62 // pred_region
              _
            $region78: #{eeg_generator_forward.7} parent=62 // pred_fallthru
              _
          $region63: #{eeg_generator_forward.7} parent=58 // pred_fallthru
            _
          %1545 = vnop
        $region59: #{eeg_generator_forward.7} parent=50 // pred_fallthru
          _
      $region51: #{eeg_generator_forward.7} parent=5 // pred_fallthru
        _
      %p1546 = scmp.le.s32.totalorder 2, %s9
      // Predicated region
      $region79: #{eeg_generator_forward.7} parent=5 // pred_check
        %p1547 = pneg %p1546
      $region80: #{eeg_generator_forward.7} parent=5 // pred_check_branch
        %1549 = sbr.rel (%p1547) target = $region82
      $region81: #{eeg_generator_forward.7} parent=5 // pred_region
        %s1550 = ssub.s32 %s9, 2
        // Predicated region
        $region83: #{eeg_generator_forward.7} parent=81 // pred_check
          %p1551 = pneg %p106
        $region84: #{eeg_generator_forward.7} parent=81 // pred_check_branch
          %1553 = sbr.rel (%p1551) target = $region86
        $region85: #{eeg_generator_forward.7} parent=81 // pred_region
          %s1554 = sand.u32 %s91, 1
          %s1555 = sand.u32 %s91, 1
          %s1556 = smul.addr %s1555, 128
          %s1557 = scalar_lea.vmem [#allocation3], %s1556
        $region86: #{eeg_generator_forward.7} parent=81 // pred_fallthru
          _
      $region82: #{eeg_generator_forward.7} parent=5 // pred_fallthru
        _
    $region6: #{eeg_generator_forward.7} parent=1 // loop_footer
      %s13 = sadd.s32 1, %s9
    $region7: #{eeg_generator_forward.7} parent=1 // loop_footer_branch
      %8 = sbr.rel target = $region3
    $region8: #{eeg_generator_forward.7} parent=1 // loop_exit
      _

</llo_original>
